<compile_context>
chip_gen: v5e
topology: v5e:2x2
jax: 0.10.0
libtpu: 0.0.40
codegen_flags: <defaults>
</compile_context>

<pallas_src>
import jax
import jax.numpy as jnp
from jax.experimental import pallas as pl
from jax.experimental.pallas import tpu as pltpu

# Layer sizes from the PyTorch module
D_IN, H1, H2, H3, D_OUT = 3 * 32 * 32, 512, 256, 80, 10
H3_PAD, D_OUT_PAD = 128, 128  # lane-dense padding of the narrow tail layers


def _round_up(x, m):
    return (x + m - 1) // m * m


def _mlp_kernel(x_ref, w1_ref, b1_ref, w2_ref, b2_ref,
                w3_ref, b3_ref, w4_ref, b4_ref, o_ref, acc_ref):
    """Fused 4-layer MLP.  Grid = (batch tiles, K chunks of layer 1).

    Layer 1 accumulates into an f32 VMEM scratch across the innermost
    ("arbitrary") K axis; bias/ReLU, layers 2-4 and the store run once on the
    last K step.  The f32->bf16 cast of x is done here (VPU has slack under
    the MXU) so the wrapper never makes an extra HBM pass over the input.
    """
    k = pl.program_id(1)

    @pl.when(k == 0)
    def _():
        acc_ref[...] = jnp.zeros_like(acc_ref)

    x = x_ref[...].astype(jnp.bfloat16)
    acc_ref[...] += jnp.dot(x, w1_ref[...], preferred_element_type=jnp.float32)

    @pl.when(k == pl.num_programs(1) - 1)
    def _():
        h = jnp.maximum(acc_ref[...] + b1_ref[...], 0.0).astype(jnp.bfloat16)

        h = jnp.dot(h, w2_ref[...], preferred_element_type=jnp.float32)
        h = jnp.maximum(h + b2_ref[...], 0.0).astype(jnp.bfloat16)

        h = jnp.dot(h, w3_ref[...], preferred_element_type=jnp.float32)
        h = jnp.maximum(h + b3_ref[...], 0.0).astype(jnp.bfloat16)

        out = jnp.dot(h, w4_ref[...], preferred_element_type=jnp.float32) + b4_ref[...]
        o_ref[...] = out.astype(o_ref.dtype)


def _tiling(B):
    """Generation-aware, balanced (TB, B_pad, nb, TK, nk, vmem_limit)."""
    try:
        vmem_bytes = pltpu.get_tpu_info().vmem_capacity_bytes
    except Exception:
        vmem_bytes = 64 << 20  # conservative (v7x-sized) fallback
    if vmem_bytes >= (128 << 20):            # v5e / v6e: 128 MiB physical VMEM
        tb_max, vmem_limit, min_steps = 2048, 96 << 20, 1
    else:                                    # v7x: 64 MiB physical, 2 TCs/chip
        tb_max, vmem_limit, min_steps = 1024, 48 << 20, 2

    # Balanced batch tiling: keeps padding waste below one tile and, on v7x,
    # guarantees >= 2 "parallel" grid steps so both TensorCores get work.
    n_steps = max(1, pl.cdiv(B, tb_max))
    if min_steps > 1 and B >= 32:
        n_steps = max(n_steps, min_steps)
    TB = _round_up(pl.cdiv(B, n_steps), 16)  # 16: bf16 sublane packing of h
    if TB > 256:
        TB = _round_up(TB, 128)              # MXU-friendly for large tiles
    TB = min(TB, tb_max)
    B_pad = _round_up(B, TB)
    nb = B_pad // TB

    # Small-batch path: chunk layer 1's K so the ~3 MiB W1 DMA overlaps the
    # previous chunk's matmul instead of sitting on the critical path.
    if B <= 128:
        TK = 1024
        nk = D_IN // TK
    else:
        TK, nk = D_IN, 1
    return TB, B_pad, nb, TK, nk, vmem_limit


def _build_mlp_call(TB, TK, nb, nk, B_pad, vmem_limit, single_buffer_consts):
    def const_spec(shape):
        # Constant index_map -> data is only DMA'd once; single-buffer it to
        # halve its VMEM footprint when the jax build supports pl.Buffered(1).
        if single_buffer_consts:
            return pl.BlockSpec(shape, lambda i, k: (0, 0),
                                pipeline_mode=pl.Buffered(1))
        return pl.BlockSpec(shape, lambda i, k: (0, 0))

    x_spec = pl.BlockSpec((TB, TK), lambda i, k: (i, k))
    if nk == 1:
        w1_spec = const_spec((TK, H1))
    else:
        w1_spec = pl.BlockSpec((TK, H1), lambda i, k: (k, 0))
    out_spec = pl.BlockSpec((TB, D_OUT_PAD), lambda i, k: (i, 0))

    flops = 2 * B_pad * (D_IN * H1 + H1 * H2 + H2 * H3_PAD + H3_PAD * D_OUT_PAD)
    w_bytes = 2 * (D_IN * H1 + H1 * H2 + H2 * H3_PAD + H3_PAD * D_OUT_PAD)
    b_bytes = 4 * (H1 + H2 + H3_PAD + D_OUT_PAD)
    bytes_accessed = (B_pad * D_IN * 4          # f32 x
                      + w_bytes + b_bytes       # bf16 W, f32 b
                      + B_pad * D_OUT_PAD * 4)  # f32 out

    return pl.pallas_call(
        _mlp_kernel,
        out_shape=jax.ShapeDtypeStruct((B_pad, D_OUT_PAD), jnp.float32),
        grid=(nb, nk),
        in_specs=[
            x_spec,
            w1_spec, const_spec((1, H1)),
            const_spec((H1, H2)), const_spec((1, H2)),
            const_spec((H2, H3_PAD)), const_spec((1, H3_PAD)),
            const_spec((H3_PAD, D_OUT_PAD)), const_spec((1, D_OUT_PAD)),
        ],
        out_specs=out_spec,
        scratch_shapes=[pltpu.VMEM((TB, H1), jnp.float32)],
        compiler_params=pltpu.CompilerParams(
            dimension_semantics=("parallel", "arbitrary"),
            vmem_limit_bytes=vmem_limit,
        ),
        cost_estimate=pl.CostEstimate(
            flops=flops, transcendentals=0, bytes_accessed=bytes_accessed),
    )


def pack_params(raw_params):
    """Pad tail dims (80->128, 10->128) with zeros and cast weights to bf16.
    Biases stay f32 (added to the f32 accumulator).  Zero-padded columns of
    W3/b3 produce ReLU(0)=0 activations, and zero-padded rows of W4 ignore
    them, so the padded math is exact."""
    (w1, b1), (w2, b2), (w3, b3), (w4, b4) = raw_params
    w3p = jnp.pad(w3, ((0, 0), (0, H3_PAD - H3)))
    b3p = jnp.pad(b3, ((0, 0), (0, H3_PAD - H3)))
    w4p = jnp.pad(w4, ((0, H3_PAD - H3), (0, D_OUT_PAD - D_OUT)))
    b4p = jnp.pad(b4, ((0, 0), (0, D_OUT_PAD - D_OUT)))
    bf = lambda w: w.astype(jnp.bfloat16)
    return ((bf(w1), b1), (bf(w2), b2), (bf(w3p), b3p), (bf(w4p), b4p))


def mlp_forward(x, packed_params):
    """x: (B, 3, 32, 32) float32. Returns (B, 10) float32."""
    B = x.shape[0]
    (w1, b1), (w2, b2), (w3, b3), (w4, b4) = packed_params

    x_flat = x.reshape(B, -1)  # torch.flatten(x, 1); stays f32, cast in-kernel

    TB, B_pad, nb, TK, nk, vmem_limit = _tiling(B)
    if B_pad != B:
        x_flat = jnp.pad(x_flat, ((0, B_pad - B), (0, 0)))

    args = (x_flat, w1, b1, w2, b2, w3, b3, w4, b4)
    try:
        out = _build_mlp_call(TB, TK, nb, nk, B_pad, vmem_limit, True)(*args)
    except Exception:
        # pl.Buffered(1) single-buffering not supported by this jax build:
        # fall back to default double-buffered blocks (correctness unchanged).
        out = _build_mlp_call(TB, TK, nb, nk, B_pad, vmem_limit, False)(*args)

    return out[:B, :D_OUT]


def init_params(key):
    """Deterministic init mimicking nn.Linear defaults (uniform +/- 1/sqrt(fan_in)).
    Weights stored as (in, out); biases as (1, out)."""
    params = []
    dims = [(D_IN, H1), (H1, H2), (H2, H3), (H3, D_OUT)]
    for fan_in, fan_out in dims:
        key, kw, kb = jax.random.split(key, 3)
        bound = 1.0 / jnp.sqrt(fan_in)
        w = jax.random.uniform(kw, (fan_in, fan_out), jnp.float32, -bound, bound)
        b = jax.random.uniform(kb, (1, fan_out), jnp.float32, -bound, bound)
        params.append((w, b))
    return params


def mlp_reference(x, raw_params):
    """Pure-JAX reference mirroring the kernel numerics (bf16 operands, f32 acc)."""
    B = x.shape[0]
    h = x.reshape(B, -1).astype(jnp.bfloat16)
    n = len(raw_params)
    for i, (w, b) in enumerate(raw_params):
        h = jnp.dot(h, w.astype(jnp.bfloat16),
                    preferred_element_type=jnp.float32) + b
        if i < n - 1:
            h = jnp.maximum(h, 0.0).astype(jnp.bfloat16)
    return h


if __name__ == "__main__":
    key = jax.random.PRNGKey(0)
    key, kx = jax.random.split(key)

    B = 2
    x = jax.random.normal(kx, (B, 3, 32, 32), dtype=jnp.float32)
    raw_params = init_params(key)
    packed_params = pack_params(raw_params)

    out = mlp_forward(x, packed_params)
    out = jax.block_until_ready(out)

    ref = mlp_reference(x, raw_params)
    assert out.shape == (B, D_OUT), out.shape
    max_err = float(jnp.max(jnp.abs(out - ref)))
    assert jnp.allclose(out, ref, atol=1e-2, rtol=1e-2), (
        "mismatch vs reference, max abs err = %f" % max_err)

    print("KERNEL_OK")
</pallas_src>

<mosaic_0001>
module attributes {stable_mosaic.version = 11 : i64} {
  func.func @_mlp_kernel(%arg0: i32, %arg1: i32, %arg2: memref<16x1024xf32, #tpu.memory_space<vmem>>, %arg3: memref<1024x512xbf16, #tpu.memory_space<vmem>>, %arg4: memref<1x512xf32, #tpu.memory_space<vmem>>, %arg5: memref<512x256xbf16, #tpu.memory_space<vmem>>, %arg6: memref<1x256xf32, #tpu.memory_space<vmem>>, %arg7: memref<256x128xbf16, #tpu.memory_space<vmem>>, %arg8: memref<1x128xf32, #tpu.memory_space<vmem>>, %arg9: memref<128x128xbf16, #tpu.memory_space<vmem>>, %arg10: memref<1x128xf32, #tpu.memory_space<vmem>>, %arg11: memref<16x128xf32, #tpu.memory_space<vmem>>, %arg12: memref<16x512xf32, #tpu.memory_space<vmem>>) attributes {dimension_semantics = [#tpu.dimension_semantics<parallel>, #tpu.dimension_semantics<arbitrary>], iteration_bounds = array<i64: 1, 3>, scalar_prefetch = 0 : i64, scratch_operands = 1 : i64, tpu.core_type = #tpu.core_type<tc>, window_params = [{transform_indices = @transform_0, window_bounds = array<i64: 16, 1024>}, {transform_indices = @transform_1, window_bounds = array<i64: 1024, 512>}, {pipeline_mode = #tpu.pipeline_mode<synchronous>, transform_indices = @transform_2, window_bounds = array<i64: 1, 512>}, {pipeline_mode = #tpu.pipeline_mode<synchronous>, transform_indices = @transform_3, window_bounds = array<i64: 512, 256>}, {pipeline_mode = #tpu.pipeline_mode<synchronous>, transform_indices = @transform_4, window_bounds = array<i64: 1, 256>}, {pipeline_mode = #tpu.pipeline_mode<synchronous>, transform_indices = @transform_5, window_bounds = array<i64: 256, 128>}, {pipeline_mode = #tpu.pipeline_mode<synchronous>, transform_indices = @transform_6, window_bounds = array<i64: 1, 128>}, {pipeline_mode = #tpu.pipeline_mode<synchronous>, transform_indices = @transform_7, window_bounds = array<i64: 128, 128>}, {pipeline_mode = #tpu.pipeline_mode<synchronous>, transform_indices = @transform_8, window_bounds = array<i64: 1, 128>}, {transform_indices = @transform_9, window_bounds = array<i64: 16, 128>}]} {
    %c0_i32 = arith.constant 0 : i32
    %0 = arith.cmpi eq, %arg1, %c0_i32 : i32
    %1 = arith.extui %0 : i1 to i32
    %c0_i32_0 = arith.constant 0 : i32
    %2 = arith.cmpi ne, %1, %c0_i32_0 : i32
    scf.if %2 {
      %cst_9 = arith.constant 0.000000e+00 : f32
      %13 = vector.broadcast %cst_9 : f32 to vector<16x512xf32>
      %c0_10 = arith.constant 0 : index
      %c0_11 = arith.constant 0 : index
      %14 = vector.load %arg12[%c0_10, %c0_11] : memref<16x512xf32, #tpu.memory_space<vmem>>, vector<16x512xf32>
      tpu.vector_store %arg12[%c0_10, %c0_11], %13 {strides = array<i32>} : memref<16x512xf32, #tpu.memory_space<vmem>>, vector<16x512xf32>,
    } else {
    }
    %c0 = arith.constant 0 : index
    %c0_1 = arith.constant 0 : index
    %3 = vector.load %arg2[%c0, %c0_1] : memref<16x1024xf32, #tpu.memory_space<vmem>>, vector<16x1024xf32>
    %4 = arith.truncf %3 : vector<16x1024xf32> to vector<16x1024xbf16>
    %c0_2 = arith.constant 0 : index
    %c0_3 = arith.constant 0 : index
    %5 = vector.load %arg12[%c0_2, %c0_3] : memref<16x512xf32, #tpu.memory_space<vmem>>, vector<16x512xf32>
    %c0_4 = arith.constant 0 : index
    %c0_5 = arith.constant 0 : index
    %6 = vector.load %arg3[%c0_4, %c0_5] : memref<1024x512xbf16, #tpu.memory_space<vmem>>, vector<1024x512xbf16>
    %cst = arith.constant dense<0.000000e+00> : vector<16x512xf32>
    %7 = tpu.matmul %4, %6, %cst {dimension_numbers = #tpu.dot_dimension_numbers<[1], [0], [0], [1], [0, 0, 1, 1], [], []>} : vector<16x1024xbf16>, vector<1024x512xbf16>, vector<16x512xf32> -> vector<16x512xf32>
    %8 = arith.addf %5, %7 : vector<16x512xf32>
    %c0_6 = arith.constant 0 : index
    %c0_7 = arith.constant 0 : index
    %9 = vector.load %arg12[%c0_6, %c0_7] : memref<16x512xf32, #tpu.memory_space<vmem>>, vector<16x512xf32>
    tpu.vector_store %arg12[%c0_6, %c0_7], %8 {strides = array<i32>} : memref<16x512xf32, #tpu.memory_space<vmem>>, vector<16x512xf32>,
    %c2_i32 = arith.constant 2 : i32
    %10 = arith.cmpi eq, %arg1, %c2_i32 : i32
    %11 = arith.extui %10 : i1 to i32
    %c0_i32_8 = arith.constant 0 : i32
    %12 = arith.cmpi ne, %11, %c0_i32_8 : i32
    scf.if %12 {
      %c0_9 = arith.constant 0 : index
      %c0_10 = arith.constant 0 : index
      %13 = vector.load %arg12[%c0_9, %c0_10] : memref<16x512xf32, #tpu.memory_space<vmem>>, vector<16x512xf32>
      %c0_11 = arith.constant 0 : index
      %c0_12 = arith.constant 0 : index
      %14 = vector.load %arg4[%c0_11, %c0_12] : memref<1x512xf32, #tpu.memory_space<vmem>>, vector<1x512xf32>
      %15 = vector.broadcast %14 : vector<1x512xf32> to vector<16x512xf32>
      %16 = arith.addf %13, %15 : vector<16x512xf32>
      %cst_13 = arith.constant 0.000000e+00 : f32
      %17 = vector.broadcast %cst_13 : f32 to vector<16x512xf32>
      %18 = arith.maximumf %16, %17 : vector<16x512xf32>
      %19 = arith.truncf %18 : vector<16x512xf32> to vector<16x512xbf16>
      %c0_14 = arith.constant 0 : index
      %c0_15 = arith.constant 0 : index
      %20 = vector.load %arg5[%c0_14, %c0_15] : memref<512x256xbf16, #tpu.memory_space<vmem>>, vector<512x256xbf16>
      %cst_16 = arith.constant dense<0.000000e+00> : vector<16x256xf32>
      %21 = tpu.matmul %19, %20, %cst_16 {dimension_numbers = #tpu.dot_dimension_numbers<[1], [0], [0], [1], [0, 0, 1, 1], [], []>} : vector<16x512xbf16>, vector<512x256xbf16>, vector<16x256xf32> -> vector<16x256xf32>
      %c0_17 = arith.constant 0 : index
      %c0_18 = arith.constant 0 : index
      %22 = vector.load %arg6[%c0_17, %c0_18] : memref<1x256xf32, #tpu.memory_space<vmem>>, vector<1x256xf32>
      %23 = vector.broadcast %22 : vector<1x256xf32> to vector<16x256xf32>
      %24 = arith.addf %21, %23 : vector<16x256xf32>
      %cst_19 = arith.constant 0.000000e+00 : f32
      %25 = vector.broadcast %cst_19 : f32 to vector<16x256xf32>
      %26 = arith.maximumf %24, %25 : vector<16x256xf32>
      %27 = arith.truncf %26 : vector<16x256xf32> to vector<16x256xbf16>
      %c0_20 = arith.constant 0 : index
      %c0_21 = arith.constant 0 : index
      %28 = vector.load %arg7[%c0_20, %c0_21] : memref<256x128xbf16, #tpu.memory_space<vmem>>, vector<256x128xbf16>
      %cst_22 = arith.constant dense<0.000000e+00> : vector<16x128xf32>
      %29 = tpu.matmul %27, %28, %cst_22 {dimension_numbers = #tpu.dot_dimension_numbers<[1], [0], [0], [1], [0, 0, 1, 1], [], []>} : vector<16x256xbf16>, vector<256x128xbf16>, vector<16x128xf32> -> vector<16x128xf32>
      %c0_23 = arith.constant 0 : index
      %c0_24 = arith.constant 0 : index
      %30 = vector.load %arg8[%c0_23, %c0_24] : memref<1x128xf32, #tpu.memory_space<vmem>>, vector<1x128xf32>
      %31 = vector.broadcast %30 : vector<1x128xf32> to vector<16x128xf32>
      %32 = arith.addf %29, %31 : vector<16x128xf32>
      %cst_25 = arith.constant 0.000000e+00 : f32
      %33 = vector.broadcast %cst_25 : f32 to vector<16x128xf32>
      %34 = arith.maximumf %32, %33 : vector<16x128xf32>
      %35 = arith.truncf %34 : vector<16x128xf32> to vector<16x128xbf16>
      %c0_26 = arith.constant 0 : index
      %c0_27 = arith.constant 0 : index
      %36 = vector.load %arg9[%c0_26, %c0_27] : memref<128x128xbf16, #tpu.memory_space<vmem>>, vector<128x128xbf16>
      %cst_28 = arith.constant dense<0.000000e+00> : vector<16x128xf32>
      %37 = tpu.matmul %35, %36, %cst_28 {dimension_numbers = #tpu.dot_dimension_numbers<[1], [0], [0], [1], [0, 0, 1, 1], [], []>} : vector<16x128xbf16>, vector<128x128xbf16>, vector<16x128xf32> -> vector<16x128xf32>
      %c0_29 = arith.constant 0 : index
      %c0_30 = arith.constant 0 : index
      %38 = vector.load %arg10[%c0_29, %c0_30] : memref<1x128xf32, #tpu.memory_space<vmem>>, vector<1x128xf32>
      %39 = vector.broadcast %38 : vector<1x128xf32> to vector<16x128xf32>
      %40 = arith.addf %37, %39 : vector<16x128xf32>
      %c0_31 = arith.constant 0 : index
      %c0_32 = arith.constant 0 : index
      %41 = vector.load %arg11[%c0_31, %c0_32] : memref<16x128xf32, #tpu.memory_space<vmem>>, vector<16x128xf32>
      tpu.vector_store %arg11[%c0_31, %c0_32], %40 {strides = array<i32>} : memref<16x128xf32, #tpu.memory_space<vmem>>, vector<16x128xf32>,
    } else {
    }
    return
  }
  func.func @transform_0(%arg0: i32, %arg1: i32) -> (i32, i32) {
    %c0_i32 = arith.constant 0 : i32
    return %arg0, %arg1 : i32, i32
  }
  func.func @transform_1(%arg0: i32, %arg1: i32) -> (i32, i32) {
    %c0_i32 = arith.constant 0 : i32
    %c0_i32_0 = arith.constant 0 : i32
    return %arg1, %c0_i32 : i32, i32
  }
  func.func @transform_2(%arg0: i32, %arg1: i32) -> (i32, i32) {
    %c0_i32 = arith.constant 0 : i32
    %c0_i32_0 = arith.constant 0 : i32
    %c0_i32_1 = arith.constant 0 : i32
    return %c0_i32, %c0_i32_0 : i32, i32
  }
  func.func @transform_3(%arg0: i32, %arg1: i32) -> (i32, i32) {
    %c0_i32 = arith.constant 0 : i32
    %c0_i32_0 = arith.constant 0 : i32
    %c0_i32_1 = arith.constant 0 : i32
    return %c0_i32, %c0_i32_0 : i32, i32
  }
  func.func @transform_4(%arg0: i32, %arg1: i32) -> (i32, i32) {
    %c0_i32 = arith.constant 0 : i32
    %c0_i32_0 = arith.constant 0 : i32
    %c0_i32_1 = arith.constant 0 : i32
    return %c0_i32, %c0_i32_0 : i32, i32
  }
  func.func @transform_5(%arg0: i32, %arg1: i32) -> (i32, i32) {
    %c0_i32 = arith.constant 0 : i32
    %c0_i32_0 = arith.constant 0 : i32
    %c0_i32_1 = arith.constant 0 : i32
    return %c0_i32, %c0_i32_0 : i32, i32
  }
  func.func @transform_6(%arg0: i32, %arg1: i32) -> (i32, i32) {
    %c0_i32 = arith.constant 0 : i32
    %c0_i32_0 = arith.constant 0 : i32
    %c0_i32_1 = arith.constant 0 : i32
    return %c0_i32, %c0_i32_0 : i32, i32
  }
  func.func @transform_7(%arg0: i32, %arg1: i32) -> (i32, i32) {
    %c0_i32 = arith.constant 0 : i32
    %c0_i32_0 = arith.constant 0 : i32
    %c0_i32_1 = arith.constant 0 : i32
    return %c0_i32, %c0_i32_0 : i32, i32
  }
  func.func @transform_8(%arg0: i32, %arg1: i32) -> (i32, i32) {
    %c0_i32 = arith.constant 0 : i32
    %c0_i32_0 = arith.constant 0 : i32
    %c0_i32_1 = arith.constant 0 : i32
    return %c0_i32, %c0_i32_0 : i32, i32
  }
  func.func @transform_9(%arg0: i32, %arg1: i32) -> (i32, i32) {
    %c0_i32 = arith.constant 0 : i32
    %c0_i32_0 = arith.constant 0 : i32
    return %arg0, %c0_i32 : i32, i32
  }
}

module attributes {stable_mosaic.version = 11 : i64} {
  func.func @_mlp_kernel(%arg0: i32, %arg1: i32, %arg2: memref<16x1024xf32, #tpu.memory_space<vmem>>, %arg3: memref<1024x512xbf16, #tpu.memory_space<vmem>>, %arg4: memref<1x512xf32, #tpu.memory_space<vmem>>, %arg5: memref<512x256xbf16, #tpu.memory_space<vmem>>, %arg6: memref<1x256xf32, #tpu.memory_space<vmem>>, %arg7: memref<256x128xbf16, #tpu.memory_space<vmem>>, %arg8: memref<1x128xf32, #tpu.memory_space<vmem>>, %arg9: memref<128x128xbf16, #tpu.memory_space<vmem>>, %arg10: memref<1x128xf32, #tpu.memory_space<vmem>>, %arg11: memref<16x128xf32, #tpu.memory_space<vmem>>, %arg12: memref<16x512xf32, #tpu.memory_space<vmem>>) attributes {dimension_semantics = [#tpu.dimension_semantics<parallel>, #tpu.dimension_semantics<arbitrary>], iteration_bounds = array<i64: 1, 3>, scalar_prefetch = 0 : i64, scratch_operands = 1 : i64, tpu.core_type = #tpu.core_type<tc>, window_params = [{transform_indices = @transform_0, window_bounds = array<i64: 16, 1024>}, {transform_indices = @transform_1, window_bounds = array<i64: 1024, 512>}, {pipeline_mode = #tpu.pipeline_mode<synchronous>, transform_indices = @transform_2, window_bounds = array<i64: 1, 512>}, {pipeline_mode = #tpu.pipeline_mode<synchronous>, transform_indices = @transform_3, window_bounds = array<i64: 512, 256>}, {pipeline_mode = #tpu.pipeline_mode<synchronous>, transform_indices = @transform_4, window_bounds = array<i64: 1, 256>}, {pipeline_mode = #tpu.pipeline_mode<synchronous>, transform_indices = @transform_5, window_bounds = array<i64: 256, 128>}, {pipeline_mode = #tpu.pipeline_mode<synchronous>, transform_indices = @transform_6, window_bounds = array<i64: 1, 128>}, {pipeline_mode = #tpu.pipeline_mode<synchronous>, transform_indices = @transform_7, window_bounds = array<i64: 128, 128>}, {pipeline_mode = #tpu.pipeline_mode<synchronous>, transform_indices = @transform_8, window_bounds = array<i64: 1, 128>}, {transform_indices = @transform_9, window_bounds = array<i64: 16, 128>}]} {
    %c0_i32 = arith.constant 0 : i32
    %0 = arith.cmpi eq, %arg1, %c0_i32 : i32
    %1 = arith.extui %0 : i1 to i32
    %c0_i32_0 = arith.constant 0 : i32
    %2 = arith.cmpi ne, %1, %c0_i32_0 : i32
    scf.if %2 {
      %cst_9 = arith.constant 0.000000e+00 : f32
      %13 = vector.broadcast %cst_9 : f32 to vector<16x512xf32>
      %c0_10 = arith.constant 0 : index
      %c0_11 = arith.constant 0 : index
      %14 = vector.load %arg12[%c0_10, %c0_11] : memref<16x512xf32, #tpu.memory_space<vmem>>, vector<16x512xf32>
      tpu.vector_store %arg12[%c0_10, %c0_11], %13 {strides = array<i32>} : memref<16x512xf32, #tpu.memory_space<vmem>>, vector<16x512xf32>,
    } else {
    }
    %c0 = arith.constant 0 : index
    %c0_1 = arith.constant 0 : index
    %3 = vector.load %arg2[%c0, %c0_1] : memref<16x1024xf32, #tpu.memory_space<vmem>>, vector<16x1024xf32>
    %4 = arith.truncf %3 : vector<16x1024xf32> to vector<16x1024xbf16>
    %c0_2 = arith.constant 0 : index
    %c0_3 = arith.constant 0 : index
    %5 = vector.load %arg12[%c0_2, %c0_3] : memref<16x512xf32, #tpu.memory_space<vmem>>, vector<16x512xf32>
    %c0_4 = arith.constant 0 : index
    %c0_5 = arith.constant 0 : index
    %6 = vector.load %arg3[%c0_4, %c0_5] : memref<1024x512xbf16, #tpu.memory_space<vmem>>, vector<1024x512xbf16>
    %cst = arith.constant dense<0.000000e+00> : vector<16x512xf32>
    %7 = tpu.matmul %4, %6, %cst {dimension_numbers = #tpu.dot_dimension_numbers<[1], [0], [0], [1], [0, 0, 1, 1], [], []>} : vector<16x1024xbf16>, vector<1024x512xbf16>, vector<16x512xf32> -> vector<16x512xf32>
    %8 = arith.addf %5, %7 : vector<16x512xf32>
    %c0_6 = arith.constant 0 : index
    %c0_7 = arith.constant 0 : index
    %9 = vector.load %arg12[%c0_6, %c0_7] : memref<16x512xf32, #tpu.memory_space<vmem>>, vector<16x512xf32>
    tpu.vector_store %arg12[%c0_6, %c0_7], %8 {strides = array<i32>} : memref<16x512xf32, #tpu.memory_space<vmem>>, vector<16x512xf32>,
    %c2_i32 = arith.constant 2 : i32
    %10 = arith.cmpi eq, %arg1, %c2_i32 : i32
    %11 = arith.extui %10 : i1 to i32
    %c0_i32_8 = arith.constant 0 : i32
    %12 = arith.cmpi ne, %11, %c0_i32_8 : i32
    scf.if %12 {
      %c0_9 = arith.constant 0 : index
      %c0_10 = arith.constant 0 : index
      %13 = vector.load %arg12[%c0_9, %c0_10] : memref<16x512xf32, #tpu.memory_space<vmem>>, vector<16x512xf32>
      %c0_11 = arith.constant 0 : index
      %c0_12 = arith.constant 0 : index
      %14 = vector.load %arg4[%c0_11, %c0_12] : memref<1x512xf32, #tpu.memory_space<vmem>>, vector<1x512xf32>
      %15 = vector.broadcast %14 : vector<1x512xf32> to vector<16x512xf32>
      %16 = arith.addf %13, %15 : vector<16x512xf32>
      %cst_13 = arith.constant 0.000000e+00 : f32
      %17 = vector.broadcast %cst_13 : f32 to vector<16x512xf32>
      %18 = arith.maximumf %16, %17 : vector<16x512xf32>
      %19 = arith.truncf %18 : vector<16x512xf32> to vector<16x512xbf16>
      %c0_14 = arith.constant 0 : index
      %c0_15 = arith.constant 0 : index
      %20 = vector.load %arg5[%c0_14, %c0_15] : memref<512x256xbf16, #tpu.memory_space<vmem>>, vector<512x256xbf16>
      %cst_16 = arith.constant dense<0.000000e+00> : vector<16x256xf32>
      %21 = tpu.matmul %19, %20, %cst_16 {dimension_numbers = #tpu.dot_dimension_numbers<[1], [0], [0], [1], [0, 0, 1, 1], [], []>} : vector<16x512xbf16>, vector<512x256xbf16>, vector<16x256xf32> -> vector<16x256xf32>
      %c0_17 = arith.constant 0 : index
      %c0_18 = arith.constant 0 : index
      %22 = vector.load %arg6[%c0_17, %c0_18] : memref<1x256xf32, #tpu.memory_space<vmem>>, vector<1x256xf32>
      %23 = vector.broadcast %22 : vector<1x256xf32> to vector<16x256xf32>
      %24 = arith.addf %21, %23 : vector<16x256xf32>
      %cst_19 = arith.constant 0.000000e+00 : f32
      %25 = vector.broadcast %cst_19 : f32 to vector<16x256xf32>
      %26 = arith.maximumf %24, %25 : vector<16x256xf32>
      %27 = arith.truncf %26 : vector<16x256xf32> to vector<16x256xbf16>
      %c0_20 = arith.constant 0 : index
      %c0_21 = arith.constant 0 : index
      %28 = vector.load %arg7[%c0_20, %c0_21] : memref<256x128xbf16, #tpu.memory_space<vmem>>, vector<256x128xbf16>
      %cst_22 = arith.constant dense<0.000000e+00> : vector<16x128xf32>
      %29 = tpu.matmul %27, %28, %cst_22 {dimension_numbers = #tpu.dot_dimension_numbers<[1], [0], [0], [1], [0, 0, 1, 1], [], []>} : vector<16x256xbf16>, vector<256x128xbf16>, vector<16x128xf32> -> vector<16x128xf32>
      %c0_23 = arith.constant 0 : index
      %c0_24 = arith.constant 0 : index
      %30 = vector.load %arg8[%c0_23, %c0_24] : memref<1x128xf32, #tpu.memory_space<vmem>>, vector<1x128xf32>
      %31 = vector.broadcast %30 : vector<1x128xf32> to vector<16x128xf32>
      %32 = arith.addf %29, %31 : vector<16x128xf32>
      %cst_25 = arith.constant 0.000000e+00 : f32
      %33 = vector.broadcast %cst_25 : f32 to vector<16x128xf32>
      %34 = arith.maximumf %32, %33 : vector<16x128xf32>
      %35 = arith.truncf %34 : vector<16x128xf32> to vector<16x128xbf16>
      %c0_26 = arith.constant 0 : index
      %c0_27 = arith.constant 0 : index
      %36 = vector.load %arg9[%c0_26, %c0_27] : memref<128x128xbf16, #tpu.memory_space<vmem>>, vector<128x128xbf16>
      %cst_28 = arith.constant dense<0.000000e+00> : vector<16x128xf32>
      %37 = tpu.matmul %35, %36, %cst_28 {dimension_numbers = #tpu.dot_dimension_numbers<[1], [0], [0], [1], [0, 0, 1, 1], [], []>} : vector<16x128xbf16>, vector<128x128xbf16>, vector<16x128xf32> -> vector<16x128xf32>
      %c0_29 = arith.constant 0 : index
      %c0_30 = arith.constant 0 : index
      %38 = vector.load %arg10[%c0_29, %c0_30] : memref<1x128xf32, #tpu.memory_space<vmem>>, vector<1x128xf32>
      %39 = vector.broadcast %38 : vector<1x128xf32> to vector<16x128xf32>
      %40 = arith.addf %37, %39 : vector<16x128xf32>
      %c0_31 = arith.constant 0 : index
      %c0_32 = arith.constant 0 : index
      %41 = vector.load %arg11[%c0_31, %c0_32] : memref<16x128xf32, #tpu.memory_space<vmem>>, vector<16x128xf32>
      tpu.vector_store %arg11[%c0_31, %c0_32], %40 {strides = array<i32>} : memref<16x128xf32, #tpu.memory_space<vmem>>, vector<16x128xf32>,
    } else {
    }
    return
  }
  func.func @transform_0(%arg0: i32, %arg1: i32) -> (i32, i32) {
    %c0_i32 = arith.constant 0 : i32
    return %arg0, %arg1 : i32, i32
  }
  func.func @transform_1(%arg0: i32, %arg1: i32) -> (i32, i32) {
    %c0_i32 = arith.constant 0 : i32
    %c0_i32_0 = arith.constant 0 : i32
    return %arg1, %c0_i32 : i32, i32
  }
  func.func @transform_2(%arg0: i32, %arg1: i32) -> (i32, i32) {
    %c0_i32 = arith.constant 0 : i32
    %c0_i32_0 = arith.constant 0 : i32
    %c0_i32_1 = arith.constant 0 : i32
    return %c0_i32, %c0_i32_0 : i32, i32
  }
  func.func @transform_3(%arg0: i32, %arg1: i32) -> (i32, i32) {
    %c0_i32 = arith.constant 0 : i32
    %c0_i32_0 = arith.constant 0 : i32
    %c0_i32_1 = arith.constant 0 : i32
    return %c0_i32, %c0_i32_0 : i32, i32
  }
  func.func @transform_4(%arg0: i32, %arg1: i32) -> (i32, i32) {
    %c0_i32 = arith.constant 0 : i32
    %c0_i32_0 = arith.constant 0 : i32
    %c0_i32_1 = arith.constant 0 : i32
    return %c0_i32, %c0_i32_0 : i32, i32
  }
  func.func @transform_5(%arg0: i32, %arg1: i32) -> (i32, i32) {
    %c0_i32 = arith.constant 0 : i32
    %c0_i32_0 = arith.constant 0 : i32
    %c0_i32_1 = arith.constant 0 : i32
    return %c0_i32, %c0_i32_0 : i32, i32
  }
  func.func @transform_6(%arg0: i32, %arg1: i32) -> (i32, i32) {
    %c0_i32 = arith.constant 0 : i32
    %c0_i32_0 = arith.constant 0 : i32
    %c0_i32_1 = arith.constant 0 : i32
    return %c0_i32, %c0_i32_0 : i32, i32
  }
  func.func @transform_7(%arg0: i32, %arg1: i32) -> (i32, i32) {
    %c0_i32 = arith.constant 0 : i32
    %c0_i32_0 = arith.constant 0 : i32
    %c0_i32_1 = arith.constant 0 : i32
    return %c0_i32, %c0_i32_0 : i32, i32
  }
  func.func @transform_8(%arg0: i32, %arg1: i32) -> (i32, i32) {
    %c0_i32 = arith.constant 0 : i32
    %c0_i32_0 = arith.constant 0 : i32
    %c0_i32_1 = arith.constant 0 : i32
    return %c0_i32, %c0_i32_0 : i32, i32
  }
  func.func @transform_9(%arg0: i32, %arg1: i32) -> (i32, i32) {
    %c0_i32 = arith.constant 0 : i32
    %c0_i32_0 = arith.constant 0 : i32
    return %arg0, %c0_i32 : i32, i32
  }
}

</mosaic_0001>

<llo_original>
// kernel: tpu_custom_call.1
$region0: #{tpu_custom_call.1}
  #allocation0 [shape = 'u32[]', space=smem, size = 0x4, offset = 0x4, fixed_abs, tag = 'smem constant byte address 0x4 - core index']
  #allocation1 [shape = 'u32[72,128]{1,0:T(1,128)}', space=vmem, size = 0x9000, scoped, tag = 'internal scratch']
  #allocation2 [shape = 'f32[16,512]{1,0:T(8,128)}', space=vmem, size = 0x8000, scoped, tag = 'scratch operand']
  %s0 = inlined_call_operand.hbm [shape: f32[16,3072], index: 0, kind: input, shape index: {}]
  %s1 = inlined_call_operand.hbm [shape: bf16[3072,512], index: 1, kind: input, shape index: {}]
  %s2 = inlined_call_operand.hbm [shape: f32[1,512], index: 2, kind: input, shape index: {}]
  %s3 = inlined_call_operand.hbm [shape: bf16[512,256], index: 3, kind: input, shape index: {}]
  %s4 = inlined_call_operand.hbm [shape: f32[1,256], index: 4, kind: input, shape index: {}]
  %s5 = inlined_call_operand.hbm [shape: bf16[256,128], index: 5, kind: input, shape index: {}]
  %s6 = inlined_call_operand.hbm [shape: f32[1,128], index: 6, kind: input, shape index: {}]
  %s7 = inlined_call_operand.hbm [shape: bf16[128,128], index: 7, kind: input, shape index: {}]
  %s8 = inlined_call_operand.hbm [shape: f32[1,128], index: 8, kind: input, shape index: {}]
  %s9 = inlined_call_operand.hbm [shape: f32[16,128], index: 9, kind: output, shape index: {}]
  %s10 = sld [smem:[#allocation0]]
  $region113: #{tpu_custom_call.1} parent=0
    _
  %s12 = ssub.s32 1, %s10
  %s13 = scalar_select 0, %s12, %s10
  $region1: #{tpu_custom_call.1} parent=0
    #allocation3 [shape = 'u8[131072]{0}', space=vmem, size = 0x20000, scoped, tag = 'input window, operand 0']
    #allocation4 [shape = 's32[2]{0}', space=sflag, size = 0x8, scoped, tag = 'scoped memory for tpu_custom_call.1']
    #allocation5 [shape = 's32[2]{0}', space=sflag, size = 0x8, scoped, tag = 'scoped memory for tpu_custom_call.1']
    #allocation6 [shape = 'u8[2097152]{0}', space=vmem, size = 0x200000, scoped, tag = 'input window, operand 1']
    #allocation7 [shape = 's32[2]{0}', space=sflag, size = 0x8, scoped, tag = 'scoped memory for tpu_custom_call.1']
    #allocation8 [shape = 'u8[2048]{0}', space=vmem, size = 0x800, scoped, tag = 'input window, operand 2, single buffered']
    #allocation9 [shape = 'u8[262144]{0}', space=vmem, size = 0x40000, scoped, tag = 'input window, operand 3, single buffered']
    #allocation10 [shape = 's32[1]{0}', space=sflag, size = 0x4, scoped, tag = 'scoped memory for tpu_custom_call.1']
    #allocation11 [shape = 'u8[1024]{0}', space=vmem, size = 0x400, scoped, tag = 'input window, operand 4, single buffered']
    #allocation12 [shape = 'u8[65536]{0}', space=vmem, size = 0x10000, scoped, tag = 'input window, operand 5, single buffered']
    #allocation13 [shape = 's32[1]{0}', space=sflag, size = 0x4, scoped, tag = 'scoped memory for tpu_custom_call.1']
    #allocation14 [shape = 'u8[512]{0}', space=vmem, size = 0x400, scoped, tag = 'input window, operand 6, single buffered']
    #allocation15 [shape = 'u8[32768]{0}', space=vmem, size = 0x8000, scoped, tag = 'input window, operand 7, single buffered']
    #allocation16 [shape = 's32[1]{0}', space=sflag, size = 0x4, scoped, tag = 'scoped memory for tpu_custom_call.1']
    #allocation17 [shape = 'u8[512]{0}', space=vmem, size = 0x400, scoped, tag = 'input window, operand 8, single buffered']
    #allocation18 [shape = 'u8[8192]{0}', space=vmem, size = 0x2000, scoped, tag = 'output window, operand 0, single buffered']
    %14 = vsyncpa [#allocation4], 0
    %s15 = scalar_lea.sflag [#allocation4], 1
    %16 = vsyncpa %s15, 0
    %17 = vsyncpa [#allocation7], 0
    %s18 = scalar_lea.sflag [#allocation7], 1
    %19 = vsyncpa %s18, 0
    %20 = vsyncpa [#allocation10], 0
    %21 = vsyncpa [#allocation13], 0
    %22 = vsyncpa [#allocation16], 0
    %23 = vsyncpa [#allocation5], 0
    loop: start=0, step=1, limit=5
    $region2: #{tpu_custom_call.1} parent=1 // loop_pre_header
      _
    $region3: #{tpu_custom_call.1} parent=1 // loop_header
      %s25 = sphi 0, %s29
      %p26 = scmp.ge.s32.totalorder %s25, 5
      %s32 = sphi 0, %s44
      %s33 = sphi 0, %s40
      %s34 = sphi 0, %s32
      %s35 = sphi 0, %s33
      %s36 = sphi 0, %s34
      %s37 = sphi 0, %s35
      %s49 = sphi 0, %s51
      %s52 = sphi 0, %s49
      %s53 = sphi 0, %s52
      %s69 = sphi 0, %s53
      %s75 = sphi 0, %s77
      %s78 = sphi 0, %s75
      %s79 = sphi 0, %s78
      %s95 = sphi 0, %s79
      %s99 = sphi 0, %s99
      %s101 = sphi 0, %s99
      %s102 = sphi 0, %s101
      %s116 = sphi 0, %s102
      %s120 = sphi 0, %s120
      %s122 = sphi 0, %s120
      %s123 = sphi 0, %s122
      %s137 = sphi 0, %s123
      %s141 = sphi 0, %s141
      %s143 = sphi 0, %s141
      %s144 = sphi 0, %s143
      %s158 = sphi 0, %s144
      %s162 = sphi 0, %s162
      %s164 = sphi 0, %s162
      %s165 = sphi 0, %s164
      %s179 = sphi 0, %s165
      %s183 = sphi 0, %s183
      %s185 = sphi 0, %s183
      %s186 = sphi 0, %s185
      %s200 = sphi 0, %s186
      %s204 = sphi 0, %s204
      %s206 = sphi 0, %s204
      %s207 = sphi 0, %s206
      %s221 = sphi 0, %s207
      %s225 = sphi 0, %s225
      %s227 = sphi 0, %s225
      %s228 = sphi 0, %s227
      %s242 = sphi 0, %s228
      %s248 = sphi 0, %s250
      %s251 = sphi 0, %s248
      %s252 = sphi 0, %s251
      %s268 = sphi 0, %s252
    $region4: #{tpu_custom_call.1} parent=1 // loop_header_branch
      %28 = sbr.rel (%p26) target = $region8
    $region5: #{tpu_custom_call.1} parent=1 // loop_body
      %s30 = ssub.s32 %s25, 1
      %s31 = ssub.s32 %s25, 2
      %s38 = sadd.s32 1, %s33
      %p39 = scmp.ge.s32.totalorder %s38, 3
      %s40 = scalar_select %p39, 0, %s38
      %s41 = sadd.s32 1, %s32
      %s42 = scalar_select %p39, %s41, %s32
      %p43 = scmp.ge.s32.totalorder %s42, 1
      %s44 = scalar_select %p43, 0, %s42
      %s45 = ssub.s32 %s32, %s44
      %s46 = ssub.s32 %s33, %s40
      %s47 = sor.u32 %s45, %s46
      %p48 = scmp.eq.s32.totalorder %s47, 0
      %s50 = sadd.s32 %s49, 1
      %s51 = scalar_select %p48, %s49, %s50
      %p54 = pneg %p48
      %p55 = scmp.eq.s32.totalorder %s25, 2
      %p56 = por %p54, %p55
      %p57 = scmp.ne.s32.totalorder %s49, %s52
      %p58 = scmp.eq.s32.totalorder %s25, 0
      %p59 = por %p57, %p58
      %p60 = scmp.ne.s32.totalorder %s49, %s52
      %p61 = scmp.eq.s32.totalorder %s30, 2
      %p62 = por %p60, %p61
      %p63 = scmp.ne.s32.totalorder %s52, %s53
      %p64 = scmp.eq.s32.totalorder %s30, 0
      %p65 = por %p63, %p64
      %p66 = scmp.ne.s32.totalorder %s52, %s53
      %p67 = scmp.eq.s32.totalorder %s31, 2
      %p68 = por %p66, %p67
      %p70 = scmp.ne.s32.totalorder %s53, %s69
      %p71 = scmp.eq.s32.totalorder %s31, 0
      %p72 = por %p70, %p71
      %s73 = ssub.s32 %s33, %s40
      %p74 = scmp.eq.s32.totalorder %s73, 0
      %s76 = sadd.s32 %s75, 1
      %s77 = scalar_select %p74, %s75, %s76
      %p80 = pneg %p74
      %p81 = scmp.eq.s32.totalorder %s25, 2
      %p82 = por %p80, %p81
      %p83 = scmp.ne.s32.totalorder %s75, %s78
      %p84 = scmp.eq.s32.totalorder %s25, 0
      %p85 = por %p83, %p84
      %p86 = scmp.ne.s32.totalorder %s75, %s78
      %p87 = scmp.eq.s32.totalorder %s30, 2
      %p88 = por %p86, %p87
      %p89 = scmp.ne.s32.totalorder %s78, %s79
      %p90 = scmp.eq.s32.totalorder %s30, 0
      %p91 = por %p89, %p90
      %p92 = scmp.ne.s32.totalorder %s78, %s79
      %p93 = scmp.eq.s32.totalorder %s31, 2
      %p94 = por %p92, %p93
      %p96 = scmp.ne.s32.totalorder %s79, %s95
      %p97 = scmp.eq.s32.totalorder %s31, 0
      %p98 = por %p96, %p97
      %s100 = sadd.s32 %s99, 1
      %p103 = scmp.eq.s32.totalorder %s25, 2
      %p104 = scmp.ne.s32.totalorder %s99, %s101
      %p105 = scmp.eq.s32.totalorder %s25, 0
      %p106 = por %p104, %p105
      %p107 = scmp.ne.s32.totalorder %s99, %s101
      %p108 = scmp.eq.s32.totalorder %s30, 2
      %p109 = por %p107, %p108
      %p110 = scmp.ne.s32.totalorder %s101, %s102
      %p111 = scmp.eq.s32.totalorder %s30, 0
      %p112 = por %p110, %p111
      %p113 = scmp.ne.s32.totalorder %s101, %s102
      %p114 = scmp.eq.s32.totalorder %s31, 2
      %p115 = por %p113, %p114
      %p117 = scmp.ne.s32.totalorder %s102, %s116
      %p118 = scmp.eq.s32.totalorder %s31, 0
      %p119 = por %p117, %p118
      %s121 = sadd.s32 %s120, 1
      %p124 = scmp.eq.s32.totalorder %s25, 2
      %p125 = scmp.ne.s32.totalorder %s120, %s122
      %p126 = scmp.eq.s32.totalorder %s25, 0
      %p127 = por %p125, %p126
      %p128 = scmp.ne.s32.totalorder %s120, %s122
      %p129 = scmp.eq.s32.totalorder %s30, 2
      %p130 = por %p128, %p129
      %p131 = scmp.ne.s32.totalorder %s122, %s123
      %p132 = scmp.eq.s32.totalorder %s30, 0
      %p133 = por %p131, %p132
      %p134 = scmp.ne.s32.totalorder %s122, %s123
      %p135 = scmp.eq.s32.totalorder %s31, 2
      %p136 = por %p134, %p135
      %p138 = scmp.ne.s32.totalorder %s123, %s137
      %p139 = scmp.eq.s32.totalorder %s31, 0
      %p140 = por %p138, %p139
      %s142 = sadd.s32 %s141, 1
      %p145 = scmp.eq.s32.totalorder %s25, 2
      %p146 = scmp.ne.s32.totalorder %s141, %s143
      %p147 = scmp.eq.s32.totalorder %s25, 0
      %p148 = por %p146, %p147
      %p149 = scmp.ne.s32.totalorder %s141, %s143
      %p150 = scmp.eq.s32.totalorder %s30, 2
      %p151 = por %p149, %p150
      %p152 = scmp.ne.s32.totalorder %s143, %s144
      %p153 = scmp.eq.s32.totalorder %s30, 0
      %p154 = por %p152, %p153
      %p155 = scmp.ne.s32.totalorder %s143, %s144
      %p156 = scmp.eq.s32.totalorder %s31, 2
      %p157 = por %p155, %p156
      %p159 = scmp.ne.s32.totalorder %s144, %s158
      %p160 = scmp.eq.s32.totalorder %s31, 0
      %p161 = por %p159, %p160
      %s163 = sadd.s32 %s162, 1
      %p166 = scmp.eq.s32.totalorder %s25, 2
      %p167 = scmp.ne.s32.totalorder %s162, %s164
      %p168 = scmp.eq.s32.totalorder %s25, 0
      %p169 = por %p167, %p168
      %p170 = scmp.ne.s32.totalorder %s162, %s164
      %p171 = scmp.eq.s32.totalorder %s30, 2
      %p172 = por %p170, %p171
      %p173 = scmp.ne.s32.totalorder %s164, %s165
      %p174 = scmp.eq.s32.totalorder %s30, 0
      %p175 = por %p173, %p174
      %p176 = scmp.ne.s32.totalorder %s164, %s165
      %p177 = scmp.eq.s32.totalorder %s31, 2
      %p178 = por %p176, %p177
      %p180 = scmp.ne.s32.totalorder %s165, %s179
      %p181 = scmp.eq.s32.totalorder %s31, 0
      %p182 = por %p180, %p181
      %s184 = sadd.s32 %s183, 1
      %p187 = scmp.eq.s32.totalorder %s25, 2
      %p188 = scmp.ne.s32.totalorder %s183, %s185
      %p189 = scmp.eq.s32.totalorder %s25, 0
      %p190 = por %p188, %p189
      %p191 = scmp.ne.s32.totalorder %s183, %s185
      %p192 = scmp.eq.s32.totalorder %s30, 2
      %p193 = por %p191, %p192
      %p194 = scmp.ne.s32.totalorder %s185, %s186
      %p195 = scmp.eq.s32.totalorder %s30, 0
      %p196 = por %p194, %p195
      %p197 = scmp.ne.s32.totalorder %s185, %s186
      %p198 = scmp.eq.s32.totalorder %s31, 2
      %p199 = por %p197, %p198
      %p201 = scmp.ne.s32.totalorder %s186, %s200
      %p202 = scmp.eq.s32.totalorder %s31, 0
      %p203 = por %p201, %p202
      %s205 = sadd.s32 %s204, 1
      %p208 = scmp.eq.s32.totalorder %s25, 2
      %p209 = scmp.ne.s32.totalorder %s204, %s206
      %p210 = scmp.eq.s32.totalorder %s25, 0
      %p211 = por %p209, %p210
      %p212 = scmp.ne.s32.totalorder %s204, %s206
      %p213 = scmp.eq.s32.totalorder %s30, 2
      %p214 = por %p212, %p213
      %p215 = scmp.ne.s32.totalorder %s206, %s207
      %p216 = scmp.eq.s32.totalorder %s30, 0
      %p217 = por %p215, %p216
      %p218 = scmp.ne.s32.totalorder %s206, %s207
      %p219 = scmp.eq.s32.totalorder %s31, 2
      %p220 = por %p218, %p219
      %p222 = scmp.ne.s32.totalorder %s207, %s221
      %p223 = scmp.eq.s32.totalorder %s31, 0
      %p224 = por %p222, %p223
      %s226 = sadd.s32 %s225, 1
      %p229 = scmp.eq.s32.totalorder %s25, 2
      %p230 = scmp.ne.s32.totalorder %s225, %s227
      %p231 = scmp.eq.s32.totalorder %s25, 0
      %p232 = por %p230, %p231
      %p233 = scmp.ne.s32.totalorder %s225, %s227
      %p234 = scmp.eq.s32.totalorder %s30, 2
      %p235 = por %p233, %p234
      %p236 = scmp.ne.s32.totalorder %s227, %s228
      %p237 = scmp.eq.s32.totalorder %s30, 0
      %p238 = por %p236, %p237
      %p239 = scmp.ne.s32.totalorder %s227, %s228
      %p240 = scmp.eq.s32.totalorder %s31, 2
      %p241 = por %p239, %p240
      %p243 = scmp.ne.s32.totalorder %s228, %s242
      %p244 = scmp.eq.s32.totalorder %s31, 0
      %p245 = por %p243, %p244
      %s246 = ssub.s32 %s32, %s44
      %p247 = scmp.eq.s32.totalorder %s246, 0
      %s249 = sadd.s32 %s248, 1
      %s250 = scalar_select %p247, %s248, %s249
      %p253 = pneg %p247
      %p254 = scmp.eq.s32.totalorder %s25, 2
      %p255 = por %p253, %p254
      %p256 = scmp.ne.s32.totalorder %s248, %s251
      %p257 = scmp.eq.s32.totalorder %s25, 0
      %p258 = por %p256, %p257
      %p259 = scmp.ne.s32.totalorder %s248, %s251
      %p260 = scmp.eq.s32.totalorder %s30, 2
      %p261 = por %p259, %p260
      %p262 = scmp.ne.s32.totalorder %s251, %s252
      %p263 = scmp.eq.s32.totalorder %s30, 0
      %p264 = por %p262, %p263
      %p265 = scmp.ne.s32.totalorder %s251, %s252
      %p266 = scmp.eq.s32.totalorder %s31, 2
      %p267 = por %p265, %p266
      %p269 = scmp.ne.s32.totalorder %s252, %s268
      %p270 = scmp.eq.s32.totalorder %s31, 0
      %p271 = por %p269, %p270
      %p272 = scmp.le.s32.totalorder 1, %s25
      %p273 = scmp.lt.s32.totalorder %s25, 4
      %p274 = pnand %p272, %p273
      %p275 = pneg %p274
      // Predicated region
      $region9: #{tpu_custom_call.1} parent=5 // pred_check
        _
      $region10: #{tpu_custom_call.1} parent=5 // pred_check_branch
        %277 = sbr.rel (%p274) target = $region12
      $region11: #{tpu_custom_call.1} parent=5 // pred_region
        %s278 = ssub.s32 %s25, 1
        // Predicated region
        $region13: #{tpu_custom_call.1} parent=11 // pred_check
          %p279 = pneg %p112
        $region14: #{tpu_custom_call.1} parent=11 // pred_check_branch
          %281 = sbr.rel (%p279) target = $region16
        $region15: #{tpu_custom_call.1} parent=11 // pred_region
          %283 = vsyncadd [#allocation7], 0
          %s285 = sshll.u32 %s2, 4
          %s286 = int_to_ptr.hbm [resolvable:$true] %s285
          %s287 = sshll.u32 [#allocation8], 4
          %s288 = int_to_ptr.vmem [resolvable:$true] %s287
          %290 = dma.hbm_to_vmem [thread:$0]  %s286, 64, %s288, [#allocation7]
        $region16: #{tpu_custom_call.1} parent=11 // pred_fallthru
          _
        // Predicated region
        $region17: #{tpu_custom_call.1} parent=11 // pred_check
          %p291 = pneg %p133
        $region18: #{tpu_custom_call.1} parent=11 // pred_check_branch
          %293 = sbr.rel (%p291) target = $region20
        $region19: #{tpu_custom_call.1} parent=11 // pred_region
          %295 = vsyncadd [#allocation10], 0
          %s296 = sshll.u32 %s3, 4
          %s297 = int_to_ptr.hbm [resolvable:$true] %s296
          %s298 = sshll.u32 [#allocation9], 4
          %s299 = int_to_ptr.vmem [resolvable:$true] %s298
          %304 = dma.hbm_to_vmem [thread:$0]  %s297, 8192, %s299, [#allocation10], 128, 128, 8
        $region20: #{tpu_custom_call.1} parent=11 // pred_fallthru
          _
        // Predicated region
        $region21: #{tpu_custom_call.1} parent=11 // pred_check
          %p305 = pneg %p154
        $region22: #{tpu_custom_call.1} parent=11 // pred_check_branch
          %307 = sbr.rel (%p305) target = $region24
        $region23: #{tpu_custom_call.1} parent=11 // pred_region
          %309 = vsyncadd [#allocation10], 0
          %s311 = sshll.u32 %s4, 4
          %s312 = int_to_ptr.hbm [resolvable:$true] %s311
          %s313 = sshll.u32 [#allocation11], 4
          %s314 = int_to_ptr.vmem [resolvable:$true] %s313
          %316 = dma.hbm_to_vmem [thread:$0]  %s312, 32, %s314, [#allocation10]
        $region24: #{tpu_custom_call.1} parent=11 // pred_fallthru
          _
        // Predicated region
        $region25: #{tpu_custom_call.1} parent=11 // pred_check
          %p317 = pneg %p175
        $region26: #{tpu_custom_call.1} parent=11 // pred_check_branch
          %319 = sbr.rel (%p317) target = $region28
        $region27: #{tpu_custom_call.1} parent=11 // pred_region
          %321 = vsyncadd [#allocation13], 0
          %s322 = sshll.u32 %s5, 4
          %s323 = int_to_ptr.hbm [resolvable:$true] %s322
          %s324 = sshll.u32 [#allocation12], 4
          %s325 = int_to_ptr.vmem [resolvable:$true] %s324
          %330 = dma.hbm_to_vmem [thread:$0]  %s323, 2048, %s325, [#allocation13], 64, 64, 4
        $region28: #{tpu_custom_call.1} parent=11 // pred_fallthru
          _
        // Predicated region
        $region29: #{tpu_custom_call.1} parent=11 // pred_check
          %p331 = pneg %p196
        $region30: #{tpu_custom_call.1} parent=11 // pred_check_branch
          %333 = sbr.rel (%p331) target = $region32
        $region31: #{tpu_custom_call.1} parent=11 // pred_region
          %335 = vsyncadd [#allocation13], 0
          %s337 = sshll.u32 %s6, 4
          %s338 = int_to_ptr.hbm [resolvable:$true] %s337
          %s339 = sshll.u32 [#allocation14], 4
          %s340 = int_to_ptr.vmem [resolvable:$true] %s339
          %342 = dma.hbm_to_vmem [thread:$0]  %s338, 16, %s340, [#allocation13]
        $region32: #{tpu_custom_call.1} parent=11 // pred_fallthru
          _
        // Predicated region
        $region33: #{tpu_custom_call.1} parent=11 // pred_check
          %p343 = pneg %p217
        $region34: #{tpu_custom_call.1} parent=11 // pred_check_branch
          %345 = sbr.rel (%p343) target = $region36
        $region35: #{tpu_custom_call.1} parent=11 // pred_region
          %347 = vsyncadd [#allocation16], 0
          %s348 = sshll.u32 %s7, 4
          %s349 = int_to_ptr.hbm [resolvable:$true] %s348
          %s350 = sshll.u32 [#allocation15], 4
          %s351 = int_to_ptr.vmem [resolvable:$true] %s350
          %356 = dma.hbm_to_vmem [thread:$0]  %s349, 1024, %s351, [#allocation16], 64, 64, 4
        $region36: #{tpu_custom_call.1} parent=11 // pred_fallthru
          _
        // Predicated region
        $region37: #{tpu_custom_call.1} parent=11 // pred_check
          %p357 = pneg %p238
        $region38: #{tpu_custom_call.1} parent=11 // pred_check_branch
          %359 = sbr.rel (%p357) target = $region40
        $region39: #{tpu_custom_call.1} parent=11 // pred_region
          %361 = vsyncadd [#allocation16], 0
          %s363 = sshll.u32 %s8, 4
          %s364 = int_to_ptr.hbm [resolvable:$true] %s363
          %s365 = sshll.u32 [#allocation17], 4
          %s366 = int_to_ptr.vmem [resolvable:$true] %s365
          %368 = dma.hbm_to_vmem [thread:$0]  %s364, 16, %s366, [#allocation16]
        $region40: #{tpu_custom_call.1} parent=11 // pred_fallthru
          _
      $region12: #{tpu_custom_call.1} parent=5 // pred_fallthru
        _
      %p369 = scmp.lt.s32.totalorder %s25, 3
      // Predicated region
      $region41: #{tpu_custom_call.1} parent=5 // pred_check
        %p370 = pneg %p369
      $region42: #{tpu_custom_call.1} parent=5 // pred_check_branch
        %372 = sbr.rel (%p370) target = $region44
      $region43: #{tpu_custom_call.1} parent=5 // pred_region
        // Predicated region
        $region45: #{tpu_custom_call.1} parent=43 // pred_check
          %p373 = pneg %p59
        $region46: #{tpu_custom_call.1} parent=43 // pred_check_branch
          %375 = sbr.rel (%p373) target = $region48
        $region47: #{tpu_custom_call.1} parent=43 // pred_region
          %s376 = sand.u32 %s49, 1
          %s377 = scalar_lea.sflag [#allocation4], %s376
          %s378 = sand.u32 %s49, 1
          %s379 = smul.addr %s378, 128
          %s380 = scalar_lea.vmem [#allocation3], %s379
          %s381 = smul.u32 2, %s32
          %s382 = smul.u32 8, %s33
          %384 = vsyncadd %s377, 0
          %s385 = smul.addr %s381, 24
          %s386 = sadd.s32 %s382, %s385
          %s387 = smul.addr %s386, 8
          %s388 = scalar_lea.hbm %s0, %s387
          %s389 = sshll.u32 %s388, 4
          %s390 = int_to_ptr.hbm [resolvable:$true] %s389
          %s391 = sshll.u32 %s380, 4
          %s392 = int_to_ptr.vmem [resolvable:$true] %s391
          %397 = dma.hbm_to_vmem [thread:$0]  %s390, 2048, %s392, %s377, 3072, 1024, 64
        $region48: #{tpu_custom_call.1} parent=43 // pred_fallthru
          _
        // Predicated region
        $region49: #{tpu_custom_call.1} parent=43 // pred_check
          %p398 = pneg %p85
        $region50: #{tpu_custom_call.1} parent=43 // pred_check_branch
          %400 = sbr.rel (%p398) target = $region52
        $region51: #{tpu_custom_call.1} parent=43 // pred_region
          %s401 = sand.u32 %s25, 1
          %s402 = scalar_lea.sflag [#allocation7], %s401
          %s403 = sand.u32 %s75, 1
          %s404 = smul.addr %s403, 2048
          %s405 = scalar_lea.vmem [#allocation6], %s404
          %s406 = smul.u32 128, %s33
          %408 = vsyncadd %s402, 0
          %s409 = smul.addr %s406, 4
          %s410 = smul.addr %s409, 4
          %s411 = scalar_lea.hbm %s1, %s410
          %s412 = sshll.u32 %s411, 4
          %s413 = int_to_ptr.hbm [resolvable:$true] %s412
          %s414 = sshll.u32 %s405, 4
          %s415 = int_to_ptr.vmem [resolvable:$true] %s414
          %420 = dma.hbm_to_vmem [thread:$0]  %s413, 32768, %s415, %s402, 256, 256, 16
        $region52: #{tpu_custom_call.1} parent=43 // pred_fallthru
          _
      $region44: #{tpu_custom_call.1} parent=5 // pred_fallthru
        _
      %p421 = scmp.le.s32.totalorder 1, %s25
      %p422 = scmp.lt.s32.totalorder %s25, 4
      %p423 = pnand %p421, %p422
      %p424 = pneg %p423
      // Predicated region
      $region53: #{tpu_custom_call.1} parent=5 // pred_check
        _
      $region54: #{tpu_custom_call.1} parent=5 // pred_check_branch
        %426 = sbr.rel (%p423) target = $region56
      $region55: #{tpu_custom_call.1} parent=5 // pred_region
        %s427 = ssub.s32 %s25, 1
        %s428 = sand.u32 %s52, 1
        %s429 = scalar_lea.sflag [#allocation4], %s428
        %s430 = sand.u32 %s52, 1
        %s431 = smul.addr %s430, 128
        %s432 = scalar_lea.vmem [#allocation3], %s431
        // Predicated region
        $region57: #{tpu_custom_call.1} parent=55 // pred_check
          %p433 = pneg %p65
        $region58: #{tpu_custom_call.1} parent=55 // pred_check_branch
          %435 = sbr.rel (%p433) target = $region60
        $region59: #{tpu_custom_call.1} parent=55 // pred_region
          %437 = dma.done %s429, 2048
        $region60: #{tpu_custom_call.1} parent=55 // pred_fallthru
          _
        %s438 = sand.u32 %s30, 1
        %s439 = scalar_lea.sflag [#allocation7], %s438
        %s440 = sand.u32 %s78, 1
        %s441 = smul.addr %s440, 2048
        %s442 = scalar_lea.vmem [#allocation6], %s441
        // Predicated region
        $region61: #{tpu_custom_call.1} parent=55 // pred_check
          %p443 = pneg %p91
        $region62: #{tpu_custom_call.1} parent=55 // pred_check_branch
          %445 = sbr.rel (%p443) target = $region64
        $region63: #{tpu_custom_call.1} parent=55 // pred_region
          %447 = dma.done %s439, 32768
        $region64: #{tpu_custom_call.1} parent=55 // pred_fallthru
          _
        // Predicated region
        $region65: #{tpu_custom_call.1} parent=55 // pred_check
          %p448 = pneg %p112
        $region66: #{tpu_custom_call.1} parent=55 // pred_check_branch
          %450 = sbr.rel (%p448) target = $region68
        $region67: #{tpu_custom_call.1} parent=55 // pred_region
          %452 = dma.done [#allocation7], 64
        $region68: #{tpu_custom_call.1} parent=55 // pred_fallthru
          _
        // Predicated region
        $region69: #{tpu_custom_call.1} parent=55 // pred_check
          %p453 = pneg %p133
        $region70: #{tpu_custom_call.1} parent=55 // pred_check_branch
          %455 = sbr.rel (%p453) target = $region72
        $region71: #{tpu_custom_call.1} parent=55 // pred_region
          %457 = dma.done [#allocation10], 8192
        $region72: #{tpu_custom_call.1} parent=55 // pred_fallthru
          _
        // Predicated region
        $region73: #{tpu_custom_call.1} parent=55 // pred_check
          %p458 = pneg %p154
        $region74: #{tpu_custom_call.1} parent=55 // pred_check_branch
          %460 = sbr.rel (%p458) target = $region76
        $region75: #{tpu_custom_call.1} parent=55 // pred_region
          %462 = dma.done [#allocation10], 32
        $region76: #{tpu_custom_call.1} parent=55 // pred_fallthru
          _
        // Predicated region
        $region77: #{tpu_custom_call.1} parent=55 // pred_check
          %p463 = pneg %p175
        $region78: #{tpu_custom_call.1} parent=55 // pred_check_branch
          %465 = sbr.rel (%p463) target = $region80
        $region79: #{tpu_custom_call.1} parent=55 // pred_region
          %467 = dma.done [#allocation13], 2048
        $region80: #{tpu_custom_call.1} parent=55 // pred_fallthru
          _
        // Predicated region
        $region81: #{tpu_custom_call.1} parent=55 // pred_check
          %p468 = pneg %p196
        $region82: #{tpu_custom_call.1} parent=55 // pred_check_branch
          %470 = sbr.rel (%p468) target = $region84
        $region83: #{tpu_custom_call.1} parent=55 // pred_region
          %472 = dma.done [#allocation13], 16
        $region84: #{tpu_custom_call.1} parent=55 // pred_fallthru
          _
        // Predicated region
        $region85: #{tpu_custom_call.1} parent=55 // pred_check
          %p473 = pneg %p217
        $region86: #{tpu_custom_call.1} parent=55 // pred_check_branch
          %475 = sbr.rel (%p473) target = $region88
        $region87: #{tpu_custom_call.1} parent=55 // pred_region
          %477 = dma.done [#allocation16], 1024
        $region88: #{tpu_custom_call.1} parent=55 // pred_fallthru
          _
        // Predicated region
        $region89: #{tpu_custom_call.1} parent=55 // pred_check
          %p478 = pneg %p238
        $region90: #{tpu_custom_call.1} parent=55 // pred_check_branch
          %480 = sbr.rel (%p478) target = $region92
        $region91: #{tpu_custom_call.1} parent=55 // pred_region
          %482 = dma.done [#allocation16], 16
        $region92: #{tpu_custom_call.1} parent=55 // pred_fallthru
          _
        %s483 = sand.u32 %s52, 1
        %s484 = scalar_lea.sflag [#allocation4], %s483
        %s485 = sand.u32 %s52, 1
        %s486 = smul.addr %s485, 128
        %s487 = scalar_lea.vmem [#allocation3], %s486
        %p488 = pneg %p65
        %p489 = pneg %p62
        %s490 = sand.u32 %s30, 1
        %s491 = scalar_lea.sflag [#allocation7], %s490
        %s492 = sand.u32 %s78, 1
        %s493 = smul.addr %s492, 2048
        %s494 = scalar_lea.vmem [#allocation6], %s493
        %p495 = pneg %p91
        %p496 = pneg %p88
        %p497 = pneg %p112
        %p498 = pneg %p109
        %p499 = pneg %p133
        %p500 = pneg %p130
        %p501 = pneg %p154
        %p502 = pneg %p151
        %p503 = pneg %p175
        %p504 = pneg %p172
        %p505 = pneg %p196
        %p506 = pneg %p193
        %p507 = pneg %p217
        %p508 = pneg %p214
        %p509 = pneg %p238
        %p510 = pneg %p235
        %p511 = pneg %p264
        %p512 = pneg %p261
        %s513 = smul.u32 2, %s34
        %s514 = smul.u32 8, %s35
        %s515 = smul.u32 128, %s35
        %s516 = smul.u32 2, %s34
        %p517 = scmp.eq.s32.totalorder %s35, 0
        // Predicated region
        $region93: #{tpu_custom_call.1} parent=55 // pred_check
          %p518 = pneg %p517
        $region94: #{tpu_custom_call.1} parent=55 // pred_check_branch
          %520 = sbr.rel (%p518) target = $region96
        $region95: #{tpu_custom_call.1} parent=55 // pred_region
          %521 = vst [vmem:[#allocation2] sm:$0xff] 0.0
          %522 = vst [vmem:[#allocation2 + $0x8] sm:$0xff] 0.0
          %523 = vst [vmem:[#allocation2 + $0x10] sm:$0xff] 0.0
          %524 = vst [vmem:[#allocation2 + $0x18] sm:$0xff] 0.0
          %525 = vst [vmem:[#allocation2 + $0x20] sm:$0xff] 0.0
          %526 = vst [vmem:[#allocation2 + $0x28] sm:$0xff] 0.0
          %527 = vst [vmem:[#allocation2 + $0x30] sm:$0xff] 0.0
          %528 = vst [vmem:[#allocation2 + $0x38] sm:$0xff] 0.0
        $region96: #{tpu_custom_call.1} parent=55 // pred_fallthru
          _
        %v529 = vld [vmem:[%s432] sm:$0xff]
        %v530 = vld [vmem:[%s432 + $0x8] sm:$0xff]
        %v531 = vld [vmem:[%s432 + $0x10] sm:$0xff]
        %v532 = vld [vmem:[%s432 + $0x18] sm:$0xff]
        %v533 = vld [vmem:[%s432 + $0x20] sm:$0xff]
        %v534 = vld [vmem:[%s432 + $0x28] sm:$0xff]
        %v535 = vld [vmem:[%s432 + $0x30] sm:$0xff]
        %v536 = vld [vmem:[%s432 + $0x38] sm:$0xff]
        %v537 = vld [vmem:[%s432 + $0x40] sm:$0xff]
        %v538 = vld [vmem:[%s432 + $0x48] sm:$0xff]
        %v539 = vld [vmem:[%s432 + $0x50] sm:$0xff]
        %v540 = vld [vmem:[%s432 + $0x58] sm:$0xff]
        %v541 = vld [vmem:[%s432 + $0x60] sm:$0xff]
        %v542 = vld [vmem:[%s432 + $0x68] sm:$0xff]
        %v543 = vld [vmem:[%s432 + $0x70] sm:$0xff]
        %v544 = vld [vmem:[%s432 + $0x78] sm:$0xff]
        %v545 = vpack.c.bf16 %v537, %v529
        %v546 = vpack.c.bf16 %v538, %v530
        %v547 = vpack.c.bf16 %v539, %v531
        %v548 = vpack.c.bf16 %v540, %v532
        %v549 = vpack.c.bf16 %v541, %v533
        %v550 = vpack.c.bf16 %v542, %v534
        %v551 = vpack.c.bf16 %v543, %v535
        %v552 = vpack.c.bf16 %v544, %v536
        %v553 = vld [vmem:[#allocation2] sm:$0xff]
        %v554 = vld [vmem:[#allocation2 + $0x8] sm:$0xff]
        %v555 = vld [vmem:[#allocation2 + $0x10] sm:$0xff]
        %v556 = vld [vmem:[#allocation2 + $0x18] sm:$0xff]
        %v557 = vld [vmem:[#allocation2 + $0x20] sm:$0xff]
        %v558 = vld [vmem:[#allocation2 + $0x28] sm:$0xff]
        %v559 = vld [vmem:[#allocation2 + $0x30] sm:$0xff]
        %v560 = vld [vmem:[#allocation2 + $0x38] sm:$0xff]
        %v561 = vld [vmem:[%s442] sm:$0xff]
        %v562 = vld [vmem:[%s442 + $0x8] sm:$0xff]
        %v563 = vld [vmem:[%s442 + $0x10] sm:$0xff]
        %v564 = vld [vmem:[%s442 + $0x18] sm:$0xff]
        %v565 = vld [vmem:[%s442 + $0x20] sm:$0xff]
        %v566 = vld [vmem:[%s442 + $0x28] sm:$0xff]
        %v567 = vld [vmem:[%s442 + $0x30] sm:$0xff]
        %v568 = vld [vmem:[%s442 + $0x38] sm:$0xff]
        %v569 = vld [vmem:[%s442 + $0x40] sm:$0xff]
        %v570 = vld [vmem:[%s442 + $0x48] sm:$0xff]
        %v571 = vld [vmem:[%s442 + $0x50] sm:$0xff]
        %v572 = vld [vmem:[%s442 + $0x58] sm:$0xff]
        %v573 = vld [vmem:[%s442 + $0x60] sm:$0xff]
        %v574 = vld [vmem:[%s442 + $0x68] sm:$0xff]
        %v575 = vld [vmem:[%s442 + $0x70] sm:$0xff]
        %v576 = vld [vmem:[%s442 + $0x78] sm:$0xff]
        %v577 = vld [vmem:[%s442 + $0x80] sm:$0xff]
        %v578 = vld [vmem:[%s442 + $0x88] sm:$0xff]
        %v579 = vld [vmem:[%s442 + $0x90] sm:$0xff]
        %v580 = vld [vmem:[%s442 + $0x98] sm:$0xff]
        %v581 = vld [vmem:[%s442 + $0xa0] sm:$0xff]
        %v582 = vld [vmem:[%s442 + $0xa8] sm:$0xff]
        %v583 = vld [vmem:[%s442 + $0xb0] sm:$0xff]
        %v584 = vld [vmem:[%s442 + $0xb8] sm:$0xff]
        %v585 = vld [vmem:[%s442 + $0xc0] sm:$0xff]
        %v586 = vld [vmem:[%s442 + $0xc8] sm:$0xff]
        %v587 = vld [vmem:[%s442 + $0xd0] sm:$0xff]
        %v588 = vld [vmem:[%s442 + $0xd8] sm:$0xff]
        %v589 = vld [vmem:[%s442 + $0xe0] sm:$0xff]
        %v590 = vld [vmem:[%s442 + $0xe8] sm:$0xff]
        %v591 = vld [vmem:[%s442 + $0xf0] sm:$0xff]
        %v592 = vld [vmem:[%s442 + $0xf8] sm:$0xff]
        %v593 = vld [vmem:[%s442 + $0x100] sm:$0xff]
        %v594 = vld [vmem:[%s442 + $0x108] sm:$0xff]
        %v595 = vld [vmem:[%s442 + $0x110] sm:$0xff]
        %v596 = vld [vmem:[%s442 + $0x118] sm:$0xff]
        %v597 = vld [vmem:[%s442 + $0x120] sm:$0xff]
        %v598 = vld [vmem:[%s442 + $0x128] sm:$0xff]
        %v599 = vld [vmem:[%s442 + $0x130] sm:$0xff]
        %v600 = vld [vmem:[%s442 + $0x138] sm:$0xff]
        %v601 = vld [vmem:[%s442 + $0x140] sm:$0xff]
        %v602 = vld [vmem:[%s442 + $0x148] sm:$0xff]
        %v603 = vld [vmem:[%s442 + $0x150] sm:$0xff]
        %v604 = vld [vmem:[%s442 + $0x158] sm:$0xff]
        %v605 = vld [vmem:[%s442 + $0x160] sm:$0xff]
        %v606 = vld [vmem:[%s442 + $0x168] sm:$0xff]
        %v607 = vld [vmem:[%s442 + $0x170] sm:$0xff]
        %v608 = vld [vmem:[%s442 + $0x178] sm:$0xff]
        %v609 = vld [vmem:[%s442 + $0x180] sm:$0xff]
        %v610 = vld [vmem:[%s442 + $0x188] sm:$0xff]
        %v611 = vld [vmem:[%s442 + $0x190] sm:$0xff]
        %v612 = vld [vmem:[%s442 + $0x198] sm:$0xff]
        %v613 = vld [vmem:[%s442 + $0x1a0] sm:$0xff]
        %v614 = vld [vmem:[%s442 + $0x1a8] sm:$0xff]
        %v615 = vld [vmem:[%s442 + $0x1b0] sm:$0xff]
        %v616 = vld [vmem:[%s442 + $0x1b8] sm:$0xff]
        %v617 = vld [vmem:[%s442 + $0x1c0] sm:$0xff]
        %v618 = vld [vmem:[%s442 + $0x1c8] sm:$0xff]
        %v619 = vld [vmem:[%s442 + $0x1d0] sm:$0xff]
        %v620 = vld [vmem:[%s442 + $0x1d8] sm:$0xff]
        %v621 = vld [vmem:[%s442 + $0x1e0] sm:$0xff]
        %v622 = vld [vmem:[%s442 + $0x1e8] sm:$0xff]
        %v623 = vld [vmem:[%s442 + $0x1f0] sm:$0xff]
        %v624 = vld [vmem:[%s442 + $0x1f8] sm:$0xff]
        %v625 = vld [vmem:[%s442 + $0x200] sm:$0xff]
        %v626 = vld [vmem:[%s442 + $0x208] sm:$0xff]
        %v627 = vld [vmem:[%s442 + $0x210] sm:$0xff]
        %v628 = vld [vmem:[%s442 + $0x218] sm:$0xff]
        %v629 = vld [vmem:[%s442 + $0x220] sm:$0xff]
        %v630 = vld [vmem:[%s442 + $0x228] sm:$0xff]
        %v631 = vld [vmem:[%s442 + $0x230] sm:$0xff]
        %v632 = vld [vmem:[%s442 + $0x238] sm:$0xff]
        %v633 = vld [vmem:[%s442 + $0x240] sm:$0xff]
        %v634 = vld [vmem:[%s442 + $0x248] sm:$0xff]
        %v635 = vld [vmem:[%s442 + $0x250] sm:$0xff]
        %v636 = vld [vmem:[%s442 + $0x258] sm:$0xff]
        %v637 = vld [vmem:[%s442 + $0x260] sm:$0xff]
        %v638 = vld [vmem:[%s442 + $0x268] sm:$0xff]
        %v639 = vld [vmem:[%s442 + $0x270] sm:$0xff]
        %v640 = vld [vmem:[%s442 + $0x278] sm:$0xff]
        %v641 = vld [vmem:[%s442 + $0x280] sm:$0xff]
        %v642 = vld [vmem:[%s442 + $0x288] sm:$0xff]
        %v643 = vld [vmem:[%s442 + $0x290] sm:$0xff]
        %v644 = vld [vmem:[%s442 + $0x298] sm:$0xff]
        %v645 = vld [vmem:[%s442 + $0x2a0] sm:$0xff]
        %v646 = vld [vmem:[%s442 + $0x2a8] sm:$0xff]
        %v647 = vld [vmem:[%s442 + $0x2b0] sm:$0xff]
        %v648 = vld [vmem:[%s442 + $0x2b8] sm:$0xff]
        %v649 = vld [vmem:[%s442 + $0x2c0] sm:$0xff]
        %v650 = vld [vmem:[%s442 + $0x2c8] sm:$0xff]
        %v651 = vld [vmem:[%s442 + $0x2d0] sm:$0xff]
        %v652 = vld [vmem:[%s442 + $0x2d8] sm:$0xff]
        %v653 = vld [vmem:[%s442 + $0x2e0] sm:$0xff]
        %v654 = vld [vmem:[%s442 + $0x2e8] sm:$0xff]
        %v655 = vld [vmem:[%s442 + $0x2f0] sm:$0xff]
        %v656 = vld [vmem:[%s442 + $0x2f8] sm:$0xff]
        %v657 = vld [vmem:[%s442 + $0x300] sm:$0xff]
        %v658 = vld [vmem:[%s442 + $0x308] sm:$0xff]
        %v659 = vld [vmem:[%s442 + $0x310] sm:$0xff]
        %v660 = vld [vmem:[%s442 + $0x318] sm:$0xff]
        %v661 = vld [vmem:[%s442 + $0x320] sm:$0xff]
        %v662 = vld [vmem:[%s442 + $0x328] sm:$0xff]
        %v663 = vld [vmem:[%s442 + $0x330] sm:$0xff]
        %v664 = vld [vmem:[%s442 + $0x338] sm:$0xff]
        %v665 = vld [vmem:[%s442 + $0x340] sm:$0xff]
        %v666 = vld [vmem:[%s442 + $0x348] sm:$0xff]
        %v667 = vld [vmem:[%s442 + $0x350] sm:$0xff]
        %v668 = vld [vmem:[%s442 + $0x358] sm:$0xff]
        %v669 = vld [vmem:[%s442 + $0x360] sm:$0xff]
        %v670 = vld [vmem:[%s442 + $0x368] sm:$0xff]
        %v671 = vld [vmem:[%s442 + $0x370] sm:$0xff]
        %v672 = vld [vmem:[%s442 + $0x378] sm:$0xff]
        %v673 = vld [vmem:[%s442 + $0x380] sm:$0xff]
        %v674 = vld [vmem:[%s442 + $0x388] sm:$0xff]
        %v675 = vld [vmem:[%s442 + $0x390] sm:$0xff]
        %v676 = vld [vmem:[%s442 + $0x398] sm:$0xff]
        %v677 = vld [vmem:[%s442 + $0x3a0] sm:$0xff]
        %v678 = vld [vmem:[%s442 + $0x3a8] sm:$0xff]
        %v679 = vld [vmem:[%s442 + $0x3b0] sm:$0xff]
        %v680 = vld [vmem:[%s442 + $0x3b8] sm:$0xff]
        %v681 = vld [vmem:[%s442 + $0x3c0] sm:$0xff]
        %v682 = vld [vmem:[%s442 + $0x3c8] sm:$0xff]
        %v683 = vld [vmem:[%s442 + $0x3d0] sm:$0xff]
        %v684 = vld [vmem:[%s442 + $0x3d8] sm:$0xff]
        %v685 = vld [vmem:[%s442 + $0x3e0] sm:$0xff]
        %v686 = vld [vmem:[%s442 + $0x3e8] sm:$0xff]
        %v687 = vld [vmem:[%s442 + $0x3f0] sm:$0xff]
        %v688 = vld [vmem:[%s442 + $0x3f8] sm:$0xff]
        %v689 = vld [vmem:[%s442 + $0x400] sm:$0xff]
        %v690 = vld [vmem:[%s442 + $0x408] sm:$0xff]
        %v691 = vld [vmem:[%s442 + $0x410] sm:$0xff]
        %v692 = vld [vmem:[%s442 + $0x418] sm:$0xff]
        %v693 = vld [vmem:[%s442 + $0x420] sm:$0xff]
        %v694 = vld [vmem:[%s442 + $0x428] sm:$0xff]
        %v695 = vld [vmem:[%s442 + $0x430] sm:$0xff]
        %v696 = vld [vmem:[%s442 + $0x438] sm:$0xff]
        %v697 = vld [vmem:[%s442 + $0x440] sm:$0xff]
        %v698 = vld [vmem:[%s442 + $0x448] sm:$0xff]
        %v699 = vld [vmem:[%s442 + $0x450] sm:$0xff]
        %v700 = vld [vmem:[%s442 + $0x458] sm:$0xff]
        %v701 = vld [vmem:[%s442 + $0x460] sm:$0xff]
        %v702 = vld [vmem:[%s442 + $0x468] sm:$0xff]
        %v703 = vld [vmem:[%s442 + $0x470] sm:$0xff]
        %v704 = vld [vmem:[%s442 + $0x478] sm:$0xff]
        %v705 = vld [vmem:[%s442 + $0x480] sm:$0xff]
        %v706 = vld [vmem:[%s442 + $0x488] sm:$0xff]
        %v707 = vld [vmem:[%s442 + $0x490] sm:$0xff]
        %v708 = vld [vmem:[%s442 + $0x498] sm:$0xff]
        %v709 = vld [vmem:[%s442 + $0x4a0] sm:$0xff]
        %v710 = vld [vmem:[%s442 + $0x4a8] sm:$0xff]
        %v711 = vld [vmem:[%s442 + $0x4b0] sm:$0xff]
        %v712 = vld [vmem:[%s442 + $0x4b8] sm:$0xff]
        %v713 = vld [vmem:[%s442 + $0x4c0] sm:$0xff]
        %v714 = vld [vmem:[%s442 + $0x4c8] sm:$0xff]
        %v715 = vld [vmem:[%s442 + $0x4d0] sm:$0xff]
        %v716 = vld [vmem:[%s442 + $0x4d8] sm:$0xff]
        %v717 = vld [vmem:[%s442 + $0x4e0] sm:$0xff]
        %v718 = vld [vmem:[%s442 + $0x4e8] sm:$0xff]
        %v719 = vld [vmem:[%s442 + $0x4f0] sm:$0xff]
        %v720 = vld [vmem:[%s442 + $0x4f8] sm:$0xff]
        %v721 = vld [vmem:[%s442 + $0x500] sm:$0xff]
        %v722 = vld [vmem:[%s442 + $0x508] sm:$0xff]
        %v723 = vld [vmem:[%s442 + $0x510] sm:$0xff]
        %v724 = vld [vmem:[%s442 + $0x518] sm:$0xff]
        %v725 = vld [vmem:[%s442 + $0x520] sm:$0xff]
        %v726 = vld [vmem:[%s442 + $0x528] sm:$0xff]
        %v727 = vld [vmem:[%s442 + $0x530] sm:$0xff]
        %v728 = vld [vmem:[%s442 + $0x538] sm:$0xff]
        %v729 = vld [vmem:[%s442 + $0x540] sm:$0xff]
        %v730 = vld [vmem:[%s442 + $0x548] sm:$0xff]
        %v731 = vld [vmem:[%s442 + $0x550] sm:$0xff]
        %v732 = vld [vmem:[%s442 + $0x558] sm:$0xff]
        %v733 = vld [vmem:[%s442 + $0x560] sm:$0xff]
        %v734 = vld [vmem:[%s442 + $0x568] sm:$0xff]
        %v735 = vld [vmem:[%s442 + $0x570] sm:$0xff]
        %v736 = vld [vmem:[%s442 + $0x578] sm:$0xff]
        %v737 = vld [vmem:[%s442 + $0x580] sm:$0xff]
        %v738 = vld [vmem:[%s442 + $0x588] sm:$0xff]
        %v739 = vld [vmem:[%s442 + $0x590] sm:$0xff]
        %v740 = vld [vmem:[%s442 + $0x598] sm:$0xff]
        %v741 = vld [vmem:[%s442 + $0x5a0] sm:$0xff]
        %v742 = vld [vmem:[%s442 + $0x5a8] sm:$0xff]
        %v743 = vld [vmem:[%s442 + $0x5b0] sm:$0xff]
        %v744 = vld [vmem:[%s442 + $0x5b8] sm:$0xff]
        %v745 = vld [vmem:[%s442 + $0x5c0] sm:$0xff]
        %v746 = vld [vmem:[%s442 + $0x5c8] sm:$0xff]
        %v747 = vld [vmem:[%s442 + $0x5d0] sm:$0xff]
        %v748 = vld [vmem:[%s442 + $0x5d8] sm:$0xff]
        %v749 = vld [vmem:[%s442 + $0x5e0] sm:$0xff]
        %v750 = vld [vmem:[%s442 + $0x5e8] sm:$0xff]
        %v751 = vld [vmem:[%s442 + $0x5f0] sm:$0xff]
        %v752 = vld [vmem:[%s442 + $0x5f8] sm:$0xff]
        %v753 = vld [vmem:[%s442 + $0x600] sm:$0xff]
        %v754 = vld [vmem:[%s442 + $0x608] sm:$0xff]
        %v755 = vld [vmem:[%s442 + $0x610] sm:$0xff]
        %v756 = vld [vmem:[%s442 + $0x618] sm:$0xff]
        %v757 = vld [vmem:[%s442 + $0x620] sm:$0xff]
        %v758 = vld [vmem:[%s442 + $0x628] sm:$0xff]
        %v759 = vld [vmem:[%s442 + $0x630] sm:$0xff]
        %v760 = vld [vmem:[%s442 + $0x638] sm:$0xff]
        %v761 = vld [vmem:[%s442 + $0x640] sm:$0xff]
        %v762 = vld [vmem:[%s442 + $0x648] sm:$0xff]
        %v763 = vld [vmem:[%s442 + $0x650] sm:$0xff]
        %v764 = vld [vmem:[%s442 + $0x658] sm:$0xff]
        %v765 = vld [vmem:[%s442 + $0x660] sm:$0xff]
        %v766 = vld [vmem:[%s442 + $0x668] sm:$0xff]
        %v767 = vld [vmem:[%s442 + $0x670] sm:$0xff]
        %v768 = vld [vmem:[%s442 + $0x678] sm:$0xff]
        %v769 = vld [vmem:[%s442 + $0x680] sm:$0xff]
        %v770 = vld [vmem:[%s442 + $0x688] sm:$0xff]
        %v771 = vld [vmem:[%s442 + $0x690] sm:$0xff]
        %v772 = vld [vmem:[%s442 + $0x698] sm:$0xff]
        %v773 = vld [vmem:[%s442 + $0x6a0] sm:$0xff]
        %v774 = vld [vmem:[%s442 + $0x6a8] sm:$0xff]
        %v775 = vld [vmem:[%s442 + $0x6b0] sm:$0xff]
        %v776 = vld [vmem:[%s442 + $0x6b8] sm:$0xff]
        %v777 = vld [vmem:[%s442 + $0x6c0] sm:$0xff]
        %v778 = vld [vmem:[%s442 + $0x6c8] sm:$0xff]
        %v779 = vld [vmem:[%s442 + $0x6d0] sm:$0xff]
        %v780 = vld [vmem:[%s442 + $0x6d8] sm:$0xff]
        %v781 = vld [vmem:[%s442 + $0x6e0] sm:$0xff]
        %v782 = vld [vmem:[%s442 + $0x6e8] sm:$0xff]
        %v783 = vld [vmem:[%s442 + $0x6f0] sm:$0xff]
        %v784 = vld [vmem:[%s442 + $0x6f8] sm:$0xff]
        %v785 = vld [vmem:[%s442 + $0x700] sm:$0xff]
        %v786 = vld [vmem:[%s442 + $0x708] sm:$0xff]
        %v787 = vld [vmem:[%s442 + $0x710] sm:$0xff]
        %v788 = vld [vmem:[%s442 + $0x718] sm:$0xff]
        %v789 = vld [vmem:[%s442 + $0x720] sm:$0xff]
        %v790 = vld [vmem:[%s442 + $0x728] sm:$0xff]
        %v791 = vld [vmem:[%s442 + $0x730] sm:$0xff]
        %v792 = vld [vmem:[%s442 + $0x738] sm:$0xff]
        %v793 = vld [vmem:[%s442 + $0x740] sm:$0xff]
        %v794 = vld [vmem:[%s442 + $0x748] sm:$0xff]
        %v795 = vld [vmem:[%s442 + $0x750] sm:$0xff]
        %v796 = vld [vmem:[%s442 + $0x758] sm:$0xff]
        %v797 = vld [vmem:[%s442 + $0x760] sm:$0xff]
        %v798 = vld [vmem:[%s442 + $0x768] sm:$0xff]
        %v799 = vld [vmem:[%s442 + $0x770] sm:$0xff]
        %v800 = vld [vmem:[%s442 + $0x778] sm:$0xff]
        %v801 = vld [vmem:[%s442 + $0x780] sm:$0xff]
        %v802 = vld [vmem:[%s442 + $0x788] sm:$0xff]
        %v803 = vld [vmem:[%s442 + $0x790] sm:$0xff]
        %v804 = vld [vmem:[%s442 + $0x798] sm:$0xff]
        %v805 = vld [vmem:[%s442 + $0x7a0] sm:$0xff]
        %v806 = vld [vmem:[%s442 + $0x7a8] sm:$0xff]
        %v807 = vld [vmem:[%s442 + $0x7b0] sm:$0xff]
        %v808 = vld [vmem:[%s442 + $0x7b8] sm:$0xff]
        %v809 = vld [vmem:[%s442 + $0x7c0] sm:$0xff]
        %v810 = vld [vmem:[%s442 + $0x7c8] sm:$0xff]
        %v811 = vld [vmem:[%s442 + $0x7d0] sm:$0xff]
        %v812 = vld [vmem:[%s442 + $0x7d8] sm:$0xff]
        %v813 = vld [vmem:[%s442 + $0x7e0] sm:$0xff]
        %v814 = vld [vmem:[%s442 + $0x7e8] sm:$0xff]
        %v815 = vld [vmem:[%s442 + $0x7f0] sm:$0xff]
        %v816 = vld [vmem:[%s442 + $0x7f8] sm:$0xff]
        %v1073 = vunpack.c.l.b16 %v561
        %v1074 = vunpack.c.h.b16 %v561
        %v1075 = vunpack.c.l.b16 %v562
        %v1076 = vunpack.c.h.b16 %v562
        %v1077 = vunpack.c.l.b16 %v563
        %v1078 = vunpack.c.h.b16 %v563
        %v1079 = vunpack.c.l.b16 %v564
        %v1080 = vunpack.c.h.b16 %v564
        %v1081 = vunpack.c.l.b16 %v565
        %v1082 = vunpack.c.h.b16 %v565
        %v1083 = vunpack.c.l.b16 %v566
        %v1084 = vunpack.c.h.b16 %v566
        %v1085 = vunpack.c.l.b16 %v567
        %v1086 = vunpack.c.h.b16 %v567
        %v1087 = vunpack.c.l.b16 %v568
        %v1088 = vunpack.c.h.b16 %v568
        %v1089 = vunpack.c.l.b16 %v569
        %v1090 = vunpack.c.h.b16 %v569
        %v1091 = vunpack.c.l.b16 %v570
        %v1092 = vunpack.c.h.b16 %v570
        %v1093 = vunpack.c.l.b16 %v571
        %v1094 = vunpack.c.h.b16 %v571
        %v1095 = vunpack.c.l.b16 %v572
        %v1096 = vunpack.c.h.b16 %v572
        %v1097 = vunpack.c.l.b16 %v573
        %v1098 = vunpack.c.h.b16 %v573
        %v1099 = vunpack.c.l.b16 %v574
        %v1100 = vunpack.c.h.b16 %v574
        %v1101 = vunpack.c.l.b16 %v575
        %v1102 = vunpack.c.h.b16 %v575
        %v1103 = vunpack.c.l.b16 %v576
        %v1104 = vunpack.c.h.b16 %v576
        %v1105 = vunpack.c.l.b16 %v577
        %v1106 = vunpack.c.h.b16 %v577
        %v1107 = vunpack.c.l.b16 %v578
        %v1108 = vunpack.c.h.b16 %v578
        %v1109 = vunpack.c.l.b16 %v579
        %v1110 = vunpack.c.h.b16 %v579
        %v1111 = vunpack.c.l.b16 %v580
        %v1112 = vunpack.c.h.b16 %v580
        %v1113 = vunpack.c.l.b16 %v581
        %v1114 = vunpack.c.h.b16 %v581
        %v1115 = vunpack.c.l.b16 %v582
        %v1116 = vunpack.c.h.b16 %v582
        %v1117 = vunpack.c.l.b16 %v583
        %v1118 = vunpack.c.h.b16 %v583
        %v1119 = vunpack.c.l.b16 %v584
        %v1120 = vunpack.c.h.b16 %v584
        %v1121 = vunpack.c.l.b16 %v585
        %v1122 = vunpack.c.h.b16 %v585
        %v1123 = vunpack.c.l.b16 %v586
        %v1124 = vunpack.c.h.b16 %v586
        %v1125 = vunpack.c.l.b16 %v587
        %v1126 = vunpack.c.h.b16 %v587
        %v1127 = vunpack.c.l.b16 %v588
        %v1128 = vunpack.c.h.b16 %v588
        %v1129 = vunpack.c.l.b16 %v589
        %v1130 = vunpack.c.h.b16 %v589
        %v1131 = vunpack.c.l.b16 %v590
        %v1132 = vunpack.c.h.b16 %v590
        %v1133 = vunpack.c.l.b16 %v591
        %v1134 = vunpack.c.h.b16 %v591
        %v1135 = vunpack.c.l.b16 %v592
        %v1136 = vunpack.c.h.b16 %v592
        %v1137 = vunpack.c.l.b16 %v593
        %v1138 = vunpack.c.h.b16 %v593
        %v1139 = vunpack.c.l.b16 %v594
        %v1140 = vunpack.c.h.b16 %v594
        %v1141 = vunpack.c.l.b16 %v595
        %v1142 = vunpack.c.h.b16 %v595
        %v1143 = vunpack.c.l.b16 %v596
        %v1144 = vunpack.c.h.b16 %v596
        %v1145 = vunpack.c.l.b16 %v597
        %v1146 = vunpack.c.h.b16 %v597
        %v1147 = vunpack.c.l.b16 %v598
        %v1148 = vunpack.c.h.b16 %v598
        %v1149 = vunpack.c.l.b16 %v599
        %v1150 = vunpack.c.h.b16 %v599
        %v1151 = vunpack.c.l.b16 %v600
        %v1152 = vunpack.c.h.b16 %v600
        %v1153 = vunpack.c.l.b16 %v601
        %v1154 = vunpack.c.h.b16 %v601
        %v1155 = vunpack.c.l.b16 %v602
        %v1156 = vunpack.c.h.b16 %v602
        %v1157 = vunpack.c.l.b16 %v603
        %v1158 = vunpack.c.h.b16 %v603
        %v1159 = vunpack.c.l.b16 %v604
        %v1160 = vunpack.c.h.b16 %v604
        %v1161 = vunpack.c.l.b16 %v605
        %v1162 = vunpack.c.h.b16 %v605
        %v1163 = vunpack.c.l.b16 %v606
        %v1164 = vunpack.c.h.b16 %v606
        %v1165 = vunpack.c.l.b16 %v607
        %v1166 = vunpack.c.h.b16 %v607
        %v1167 = vunpack.c.l.b16 %v608
        %v1168 = vunpack.c.h.b16 %v608
        %v1169 = vunpack.c.l.b16 %v609
        %v1170 = vunpack.c.h.b16 %v609
        %v1171 = vunpack.c.l.b16 %v610
        %v1172 = vunpack.c.h.b16 %v610
        %v1173 = vunpack.c.l.b16 %v611
        %v1174 = vunpack.c.h.b16 %v611
        %v1175 = vunpack.c.l.b16 %v612
        %v1176 = vunpack.c.h.b16 %v612
        %v1177 = vunpack.c.l.b16 %v613
        %v1178 = vunpack.c.h.b16 %v613
        %v1179 = vunpack.c.l.b16 %v614
        %v1180 = vunpack.c.h.b16 %v614
        %v1181 = vunpack.c.l.b16 %v615
        %v1182 = vunpack.c.h.b16 %v615
        %v1183 = vunpack.c.l.b16 %v616
        %v1184 = vunpack.c.h.b16 %v616
        %v1185 = vunpack.c.l.b16 %v617
        %v1186 = vunpack.c.h.b16 %v617
        %v1187 = vunpack.c.l.b16 %v618
        %v1188 = vunpack.c.h.b16 %v618
        %v1189 = vunpack.c.l.b16 %v619
        %v1190 = vunpack.c.h.b16 %v619
        %v1191 = vunpack.c.l.b16 %v620
        %v1192 = vunpack.c.h.b16 %v620
        %v1193 = vunpack.c.l.b16 %v621
        %v1194 = vunpack.c.h.b16 %v621
        %v1195 = vunpack.c.l.b16 %v622
        %v1196 = vunpack.c.h.b16 %v622
        %v1197 = vunpack.c.l.b16 %v623
        %v1198 = vunpack.c.h.b16 %v623
        %v1199 = vunpack.c.l.b16 %v624
        %v1200 = vunpack.c.h.b16 %v624
        %v1201 = vunpack.c.l.b16 %v625
        %v1202 = vunpack.c.h.b16 %v625
        %v1203 = vunpack.c.l.b16 %v626
        %v1204 = vunpack.c.h.b16 %v626
        %v1205 = vunpack.c.l.b16 %v627
        %v1206 = vunpack.c.h.b16 %v627
        %v1207 = vunpack.c.l.b16 %v628
        %v1208 = vunpack.c.h.b16 %v628
        %v1209 = vunpack.c.l.b16 %v629
        %v1210 = vunpack.c.h.b16 %v629
        %v1211 = vunpack.c.l.b16 %v630
        %v1212 = vunpack.c.h.b16 %v630
        %v1213 = vunpack.c.l.b16 %v631
        %v1214 = vunpack.c.h.b16 %v631
        %v1215 = vunpack.c.l.b16 %v632
        %v1216 = vunpack.c.h.b16 %v632
        %v1217 = vunpack.c.l.b16 %v633
        %v1218 = vunpack.c.h.b16 %v633
        %v1219 = vunpack.c.l.b16 %v634
        %v1220 = vunpack.c.h.b16 %v634
        %v1221 = vunpack.c.l.b16 %v635
        %v1222 = vunpack.c.h.b16 %v635
        %v1223 = vunpack.c.l.b16 %v636
        %v1224 = vunpack.c.h.b16 %v636
        %v1225 = vunpack.c.l.b16 %v637
        %v1226 = vunpack.c.h.b16 %v637
        %v1227 = vunpack.c.l.b16 %v638
        %v1228 = vunpack.c.h.b16 %v638
        %v1229 = vunpack.c.l.b16 %v639
        %v1230 = vunpack.c.h.b16 %v639
        %v1231 = vunpack.c.l.b16 %v640
        %v1232 = vunpack.c.h.b16 %v640
        %v1233 = vunpack.c.l.b16 %v641
        %v1234 = vunpack.c.h.b16 %v641
        %v1235 = vunpack.c.l.b16 %v642
        %v1236 = vunpack.c.h.b16 %v642
        %v1237 = vunpack.c.l.b16 %v643
        %v1238 = vunpack.c.h.b16 %v643
        %v1239 = vunpack.c.l.b16 %v644
        %v1240 = vunpack.c.h.b16 %v644
        %v1241 = vunpack.c.l.b16 %v645
        %v1242 = vunpack.c.h.b16 %v645
        %v1243 = vunpack.c.l.b16 %v646
        %v1244 = vunpack.c.h.b16 %v646
        %v1245 = vunpack.c.l.b16 %v647
        %v1246 = vunpack.c.h.b16 %v647
        %v1247 = vunpack.c.l.b16 %v648
        %v1248 = vunpack.c.h.b16 %v648
        %v1249 = vunpack.c.l.b16 %v649
        %v1250 = vunpack.c.h.b16 %v649
        %v1251 = vunpack.c.l.b16 %v650
        %v1252 = vunpack.c.h.b16 %v650
        %v1253 = vunpack.c.l.b16 %v651
        %v1254 = vunpack.c.h.b16 %v651
        %v1255 = vunpack.c.l.b16 %v652
        %v1256 = vunpack.c.h.b16 %v652
        %v1257 = vunpack.c.l.b16 %v653
        %v1258 = vunpack.c.h.b16 %v653
        %v1259 = vunpack.c.l.b16 %v654
        %v1260 = vunpack.c.h.b16 %v654
        %v1261 = vunpack.c.l.b16 %v655
        %v1262 = vunpack.c.h.b16 %v655
        %v1263 = vunpack.c.l.b16 %v656
        %v1264 = vunpack.c.h.b16 %v656
        %v1265 = vunpack.c.l.b16 %v657
        %v1266 = vunpack.c.h.b16 %v657
        %v1267 = vunpack.c.l.b16 %v658
        %v1268 = vunpack.c.h.b16 %v658
        %v1269 = vunpack.c.l.b16 %v659
        %v1270 = vunpack.c.h.b16 %v659
        %v1271 = vunpack.c.l.b16 %v660
        %v1272 = vunpack.c.h.b16 %v660
        %v1273 = vunpack.c.l.b16 %v661
        %v1274 = vunpack.c.h.b16 %v661
        %v1275 = vunpack.c.l.b16 %v662
        %v1276 = vunpack.c.h.b16 %v662
        %v1277 = vunpack.c.l.b16 %v663
        %v1278 = vunpack.c.h.b16 %v663
        %v1279 = vunpack.c.l.b16 %v664
        %v1280 = vunpack.c.h.b16 %v664
        %v1281 = vunpack.c.l.b16 %v665
        %v1282 = vunpack.c.h.b16 %v665
        %v1283 = vunpack.c.l.b16 %v666
        %v1284 = vunpack.c.h.b16 %v666
        %v1285 = vunpack.c.l.b16 %v667
        %v1286 = vunpack.c.h.b16 %v667
        %v1287 = vunpack.c.l.b16 %v668
        %v1288 = vunpack.c.h.b16 %v668
        %v1289 = vunpack.c.l.b16 %v669
        %v1290 = vunpack.c.h.b16 %v669
        %v1291 = vunpack.c.l.b16 %v670
        %v1292 = vunpack.c.h.b16 %v670
        %v1293 = vunpack.c.l.b16 %v671
        %v1294 = vunpack.c.h.b16 %v671
        %v1295 = vunpack.c.l.b16 %v672
        %v1296 = vunpack.c.h.b16 %v672
        %v1297 = vunpack.c.l.b16 %v673
        %v1298 = vunpack.c.h.b16 %v673
        %v1299 = vunpack.c.l.b16 %v674
        %v1300 = vunpack.c.h.b16 %v674
        %v1301 = vunpack.c.l.b16 %v675
        %v1302 = vunpack.c.h.b16 %v675
        %v1303 = vunpack.c.l.b16 %v676
        %v1304 = vunpack.c.h.b16 %v676
        %v1305 = vunpack.c.l.b16 %v677
        %v1306 = vunpack.c.h.b16 %v677
        %v1307 = vunpack.c.l.b16 %v678
        %v1308 = vunpack.c.h.b16 %v678
        %v1309 = vunpack.c.l.b16 %v679
        %v1310 = vunpack.c.h.b16 %v679
        %v1311 = vunpack.c.l.b16 %v680
        %v1312 = vunpack.c.h.b16 %v680
        %v1313 = vunpack.c.l.b16 %v681
        %v1314 = vunpack.c.h.b16 %v681
        %v1315 = vunpack.c.l.b16 %v682
        %v1316 = vunpack.c.h.b16 %v682
        %v1317 = vunpack.c.l.b16 %v683
        %v1318 = vunpack.c.h.b16 %v683
        %v1319 = vunpack.c.l.b16 %v684
        %v1320 = vunpack.c.h.b16 %v684
        %v1321 = vunpack.c.l.b16 %v685
        %v1322 = vunpack.c.h.b16 %v685
        %v1323 = vunpack.c.l.b16 %v686
        %v1324 = vunpack.c.h.b16 %v686
        %v1325 = vunpack.c.l.b16 %v687
        %v1326 = vunpack.c.h.b16 %v687
        %v1327 = vunpack.c.l.b16 %v688
        %v1328 = vunpack.c.h.b16 %v688
        %v1329 = vunpack.c.l.b16 %v689
        %v1330 = vunpack.c.h.b16 %v689
        %v1331 = vunpack.c.l.b16 %v690
        %v1332 = vunpack.c.h.b16 %v690
        %v1333 = vunpack.c.l.b16 %v691
        %v1334 = vunpack.c.h.b16 %v691
        %v1335 = vunpack.c.l.b16 %v692
        %v1336 = vunpack.c.h.b16 %v692
        %v1337 = vunpack.c.l.b16 %v693
        %v1338 = vunpack.c.h.b16 %v693
        %v1339 = vunpack.c.l.b16 %v694
        %v1340 = vunpack.c.h.b16 %v694
        %v1341 = vunpack.c.l.b16 %v695
        %v1342 = vunpack.c.h.b16 %v695
        %v1343 = vunpack.c.l.b16 %v696
        %v1344 = vunpack.c.h.b16 %v696
        %v1345 = vunpack.c.l.b16 %v697
        %v1346 = vunpack.c.h.b16 %v697
        %v1347 = vunpack.c.l.b16 %v698
        %v1348 = vunpack.c.h.b16 %v698
        %v1349 = vunpack.c.l.b16 %v699
        %v1350 = vunpack.c.h.b16 %v699
        %v1351 = vunpack.c.l.b16 %v700
        %v1352 = vunpack.c.h.b16 %v700
        %v1353 = vunpack.c.l.b16 %v701
        %v1354 = vunpack.c.h.b16 %v701
        %v1355 = vunpack.c.l.b16 %v702
        %v1356 = vunpack.c.h.b16 %v702
        %v1357 = vunpack.c.l.b16 %v703
        %v1358 = vunpack.c.h.b16 %v703
        %v1359 = vunpack.c.l.b16 %v704
        %v1360 = vunpack.c.h.b16 %v704
        %v1361 = vunpack.c.l.b16 %v705
        %v1362 = vunpack.c.h.b16 %v705
        %v1363 = vunpack.c.l.b16 %v706
        %v1364 = vunpack.c.h.b16 %v706
        %v1365 = vunpack.c.l.b16 %v707
        %v1366 = vunpack.c.h.b16 %v707
        %v1367 = vunpack.c.l.b16 %v708
        %v1368 = vunpack.c.h.b16 %v708
        %v1369 = vunpack.c.l.b16 %v709
        %v1370 = vunpack.c.h.b16 %v709
        %v1371 = vunpack.c.l.b16 %v710
        %v1372 = vunpack.c.h.b16 %v710
        %v1373 = vunpack.c.l.b16 %v711
        %v1374 = vunpack.c.h.b16 %v711
        %v1375 = vunpack.c.l.b16 %v712
        %v1376 = vunpack.c.h.b16 %v712
        %v1377 = vunpack.c.l.b16 %v713
        %v1378 = vunpack.c.h.b16 %v713
        %v1379 = vunpack.c.l.b16 %v714
        %v1380 = vunpack.c.h.b16 %v714
        %v1381 = vunpack.c.l.b16 %v715
        %v1382 = vunpack.c.h.b16 %v715
        %v1383 = vunpack.c.l.b16 %v716
        %v1384 = vunpack.c.h.b16 %v716
        %v1385 = vunpack.c.l.b16 %v717
        %v1386 = vunpack.c.h.b16 %v717
        %v1387 = vunpack.c.l.b16 %v718
        %v1388 = vunpack.c.h.b16 %v718
        %v1389 = vunpack.c.l.b16 %v719
        %v1390 = vunpack.c.h.b16 %v719
        %v1391 = vunpack.c.l.b16 %v720
        %v1392 = vunpack.c.h.b16 %v720
        %v1393 = vunpack.c.l.b16 %v721
        %v1394 = vunpack.c.h.b16 %v721
        %v1395 = vunpack.c.l.b16 %v722
        %v1396 = vunpack.c.h.b16 %v722
        %v1397 = vunpack.c.l.b16 %v723
        %v1398 = vunpack.c.h.b16 %v723
        %v1399 = vunpack.c.l.b16 %v724
        %v1400 = vunpack.c.h.b16 %v724
        %v1401 = vunpack.c.l.b16 %v725
        %v1402 = vunpack.c.h.b16 %v725
        %v1403 = vunpack.c.l.b16 %v726
        %v1404 = vunpack.c.h.b16 %v726
        %v1405 = vunpack.c.l.b16 %v727
        %v1406 = vunpack.c.h.b16 %v727
        %v1407 = vunpack.c.l.b16 %v728
        %v1408 = vunpack.c.h.b16 %v728
        %v1409 = vunpack.c.l.b16 %v729
        %v1410 = vunpack.c.h.b16 %v729
        %v1411 = vunpack.c.l.b16 %v730
        %v1412 = vunpack.c.h.b16 %v730
        %v1413 = vunpack.c.l.b16 %v731
        %v1414 = vunpack.c.h.b16 %v731
        %v1415 = vunpack.c.l.b16 %v732
        %v1416 = vunpack.c.h.b16 %v732
        %v1417 = vunpack.c.l.b16 %v733
        %v1418 = vunpack.c.h.b16 %v733
        %v1419 = vunpack.c.l.b16 %v734
        %v1420 = vunpack.c.h.b16 %v734
        %v1421 = vunpack.c.l.b16 %v735
        %v1422 = vunpack.c.h.b16 %v735
        %v1423 = vunpack.c.l.b16 %v736
        %v1424 = vunpack.c.h.b16 %v736
        %v1425 = vunpack.c.l.b16 %v737
        %v1426 = vunpack.c.h.b16 %v737
        %v1427 = vunpack.c.l.b16 %v738
        %v1428 = vunpack.c.h.b16 %v738
        %v1429 = vunpack.c.l.b16 %v739
        %v1430 = vunpack.c.h.b16 %v739
        %v1431 = vunpack.c.l.b16 %v740
        %v1432 = vunpack.c.h.b16 %v740
        %v1433 = vunpack.c.l.b16 %v741
        %v1434 = vunpack.c.h.b16 %v741
        %v1435 = vunpack.c.l.b16 %v742
        %v1436 = vunpack.c.h.b16 %v742
        %v1437 = vunpack.c.l.b16 %v743
        %v1438 = vunpack.c.h.b16 %v743
        %v1439 = vunpack.c.l.b16 %v744
        %v1440 = vunpack.c.h.b16 %v744
        %v1441 = vunpack.c.l.b16 %v745
        %v1442 = vunpack.c.h.b16 %v745
        %v1443 = vunpack.c.l.b16 %v746
        %v1444 = vunpack.c.h.b16 %v746
        %v1445 = vunpack.c.l.b16 %v747
        %v1446 = vunpack.c.h.b16 %v747
        %v1447 = vunpack.c.l.b16 %v748
        %v1448 = vunpack.c.h.b16 %v748
        %v1449 = vunpack.c.l.b16 %v749
        %v1450 = vunpack.c.h.b16 %v749
        %v1451 = vunpack.c.l.b16 %v750
        %v1452 = vunpack.c.h.b16 %v750
        %v1453 = vunpack.c.l.b16 %v751
        %v1454 = vunpack.c.h.b16 %v751
        %v1455 = vunpack.c.l.b16 %v752
        %v1456 = vunpack.c.h.b16 %v752
        %v1457 = vunpack.c.l.b16 %v753
        %v1458 = vunpack.c.h.b16 %v753
        %v1459 = vunpack.c.l.b16 %v754
        %v1460 = vunpack.c.h.b16 %v754
        %v1461 = vunpack.c.l.b16 %v755
        %v1462 = vunpack.c.h.b16 %v755
        %v1463 = vunpack.c.l.b16 %v756
        %v1464 = vunpack.c.h.b16 %v756
        %v1465 = vunpack.c.l.b16 %v757
        %v1466 = vunpack.c.h.b16 %v757
        %v1467 = vunpack.c.l.b16 %v758
        %v1468 = vunpack.c.h.b16 %v758
        %v1469 = vunpack.c.l.b16 %v759
        %v1470 = vunpack.c.h.b16 %v759
        %v1471 = vunpack.c.l.b16 %v760
        %v1472 = vunpack.c.h.b16 %v760
        %v1473 = vunpack.c.l.b16 %v761
        %v1474 = vunpack.c.h.b16 %v761
        %v1475 = vunpack.c.l.b16 %v762
        %v1476 = vunpack.c.h.b16 %v762
        %v1477 = vunpack.c.l.b16 %v763
        %v1478 = vunpack.c.h.b16 %v763
        %v1479 = vunpack.c.l.b16 %v764
        %v1480 = vunpack.c.h.b16 %v764
        %v1481 = vunpack.c.l.b16 %v765
        %v1482 = vunpack.c.h.b16 %v765
        %v1483 = vunpack.c.l.b16 %v766
        %v1484 = vunpack.c.h.b16 %v766
        %v1485 = vunpack.c.l.b16 %v767
        %v1486 = vunpack.c.h.b16 %v767
        %v1487 = vunpack.c.l.b16 %v768
        %v1488 = vunpack.c.h.b16 %v768
        %v1489 = vunpack.c.l.b16 %v769
        %v1490 = vunpack.c.h.b16 %v769
        %v1491 = vunpack.c.l.b16 %v770
        %v1492 = vunpack.c.h.b16 %v770
        %v1493 = vunpack.c.l.b16 %v771
        %v1494 = vunpack.c.h.b16 %v771
        %v1495 = vunpack.c.l.b16 %v772
        %v1496 = vunpack.c.h.b16 %v772
        %v1497 = vunpack.c.l.b16 %v773
        %v1498 = vunpack.c.h.b16 %v773
        %v1499 = vunpack.c.l.b16 %v774
        %v1500 = vunpack.c.h.b16 %v774
        %v1501 = vunpack.c.l.b16 %v775
        %v1502 = vunpack.c.h.b16 %v775
        %v1503 = vunpack.c.l.b16 %v776
        %v1504 = vunpack.c.h.b16 %v776
        %v1505 = vunpack.c.l.b16 %v777
        %v1506 = vunpack.c.h.b16 %v777
        %v1507 = vunpack.c.l.b16 %v778
        %v1508 = vunpack.c.h.b16 %v778
        %v1509 = vunpack.c.l.b16 %v779
        %v1510 = vunpack.c.h.b16 %v779
        %v1511 = vunpack.c.l.b16 %v780
        %v1512 = vunpack.c.h.b16 %v780
        %v1513 = vunpack.c.l.b16 %v781
        %v1514 = vunpack.c.h.b16 %v781
        %v1515 = vunpack.c.l.b16 %v782
        %v1516 = vunpack.c.h.b16 %v782
        %v1517 = vunpack.c.l.b16 %v783
        %v1518 = vunpack.c.h.b16 %v783
        %v1519 = vunpack.c.l.b16 %v784
        %v1520 = vunpack.c.h.b16 %v784
        %v1521 = vunpack.c.l.b16 %v785
        %v1522 = vunpack.c.h.b16 %v785
        %v1523 = vunpack.c.l.b16 %v786
        %v1524 = vunpack.c.h.b16 %v786
        %v1525 = vunpack.c.l.b16 %v787
        %v1526 = vunpack.c.h.b16 %v787
        %v1527 = vunpack.c.l.b16 %v788
        %v1528 = vunpack.c.h.b16 %v788
        %v1529 = vunpack.c.l.b16 %v789
        %v1530 = vunpack.c.h.b16 %v789
        %v1531 = vunpack.c.l.b16 %v790
        %v1532 = vunpack.c.h.b16 %v790
        %v1533 = vunpack.c.l.b16 %v791
        %v1534 = vunpack.c.h.b16 %v791
        %v1535 = vunpack.c.l.b16 %v792
        %v1536 = vunpack.c.h.b16 %v792
        %v1537 = vunpack.c.l.b16 %v793
        %v1538 = vunpack.c.h.b16 %v793
        %v1539 = vunpack.c.l.b16 %v794
        %v1540 = vunpack.c.h.b16 %v794
        %v1541 = vunpack.c.l.b16 %v795
        %v1542 = vunpack.c.h.b16 %v795
        %v1543 = vunpack.c.l.b16 %v796
        %v1544 = vunpack.c.h.b16 %v796
        %v1545 = vunpack.c.l.b16 %v797
        %v1546 = vunpack.c.h.b16 %v797
        %v1547 = vunpack.c.l.b16 %v798
        %v1548 = vunpack.c.h.b16 %v798
        %v1549 = vunpack.c.l.b16 %v799
        %v1550 = vunpack.c.h.b16 %v799
        %v1551 = vunpack.c.l.b16 %v800
        %v1552 = vunpack.c.h.b16 %v800
        %v1553 = vunpack.c.l.b16 %v801
        %v1554 = vunpack.c.h.b16 %v801
        %v1555 = vunpack.c.l.b16 %v802
        %v1556 = vunpack.c.h.b16 %v802
        %v1557 = vunpack.c.l.b16 %v803
        %v1558 = vunpack.c.h.b16 %v803
        %v1559 = vunpack.c.l.b16 %v804
        %v1560 = vunpack.c.h.b16 %v804
        %v1561 = vunpack.c.l.b16 %v805
        %v1562 = vunpack.c.h.b16 %v805
        %v1563 = vunpack.c.l.b16 %v806
        %v1564 = vunpack.c.h.b16 %v806
        %v1565 = vunpack.c.l.b16 %v807
        %v1566 = vunpack.c.h.b16 %v807
        %v1567 = vunpack.c.l.b16 %v808
        %v1568 = vunpack.c.h.b16 %v808
        %v1569 = vunpack.c.l.b16 %v809
        %v1570 = vunpack.c.h.b16 %v809
        %v1571 = vunpack.c.l.b16 %v810
        %v1572 = vunpack.c.h.b16 %v810
        %v1573 = vunpack.c.l.b16 %v811
        %v1574 = vunpack.c.h.b16 %v811
        %v1575 = vunpack.c.l.b16 %v812
        %v1576 = vunpack.c.h.b16 %v812
        %v1577 = vunpack.c.l.b16 %v813
        %v1578 = vunpack.c.h.b16 %v813
        %v1579 = vunpack.c.l.b16 %v814
        %v1580 = vunpack.c.h.b16 %v814
        %v1581 = vunpack.c.l.b16 %v815
        %v1582 = vunpack.c.h.b16 %v815
        %v1583 = vunpack.c.l.b16 %v816
        %v1584 = vunpack.c.h.b16 %v816
        %v1585 = vpack.c.b16 %v1077, %v1073
        %v1586 = vpack.c.b16 %v1078, %v1074
        %v1587 = vpack.c.b16 %v1079, %v1075
        %v1588 = vpack.c.b16 %v1080, %v1076
        %v1589 = vpack.c.b16 %v1085, %v1081
        %v1590 = vpack.c.b16 %v1086, %v1082
        %v1591 = vpack.c.b16 %v1087, %v1083
        %v1592 = vpack.c.b16 %v1088, %v1084
        %v1593 = vpack.c.b16 %v1093, %v1089
        %v1594 = vpack.c.b16 %v1094, %v1090
        %v1595 = vpack.c.b16 %v1095, %v1091
        %v1596 = vpack.c.b16 %v1096, %v1092
        %v1597 = vpack.c.b16 %v1101, %v1097
        %v1598 = vpack.c.b16 %v1102, %v1098
        %v1599 = vpack.c.b16 %v1103, %v1099
        %v1600 = vpack.c.b16 %v1104, %v1100
        %v1601 = vpack.c.b16 %v1109, %v1105
        %v1602 = vpack.c.b16 %v1110, %v1106
        %v1603 = vpack.c.b16 %v1111, %v1107
        %v1604 = vpack.c.b16 %v1112, %v1108
        %v1605 = vpack.c.b16 %v1117, %v1113
        %v1606 = vpack.c.b16 %v1118, %v1114
        %v1607 = vpack.c.b16 %v1119, %v1115
        %v1608 = vpack.c.b16 %v1120, %v1116
        %v1609 = vpack.c.b16 %v1125, %v1121
        %v1610 = vpack.c.b16 %v1126, %v1122
        %v1611 = vpack.c.b16 %v1127, %v1123
        %v1612 = vpack.c.b16 %v1128, %v1124
        %v1613 = vpack.c.b16 %v1133, %v1129
        %v1614 = vpack.c.b16 %v1134, %v1130
        %v1615 = vpack.c.b16 %v1135, %v1131
        %v1616 = vpack.c.b16 %v1136, %v1132
        %v1617 = vpack.c.b16 %v1141, %v1137
        %v1618 = vpack.c.b16 %v1142, %v1138
        %v1619 = vpack.c.b16 %v1143, %v1139
        %v1620 = vpack.c.b16 %v1144, %v1140
        %v1621 = vpack.c.b16 %v1149, %v1145
        %v1622 = vpack.c.b16 %v1150, %v1146
        %v1623 = vpack.c.b16 %v1151, %v1147
        %v1624 = vpack.c.b16 %v1152, %v1148
        %v1625 = vpack.c.b16 %v1157, %v1153
        %v1626 = vpack.c.b16 %v1158, %v1154
        %v1627 = vpack.c.b16 %v1159, %v1155
        %v1628 = vpack.c.b16 %v1160, %v1156
        %v1629 = vpack.c.b16 %v1165, %v1161
        %v1630 = vpack.c.b16 %v1166, %v1162
        %v1631 = vpack.c.b16 %v1167, %v1163
        %v1632 = vpack.c.b16 %v1168, %v1164
        %v1633 = vpack.c.b16 %v1173, %v1169
        %v1634 = vpack.c.b16 %v1174, %v1170
        %v1635 = vpack.c.b16 %v1175, %v1171
        %v1636 = vpack.c.b16 %v1176, %v1172
        %v1637 = vpack.c.b16 %v1181, %v1177
        %v1638 = vpack.c.b16 %v1182, %v1178
        %v1639 = vpack.c.b16 %v1183, %v1179
        %v1640 = vpack.c.b16 %v1184, %v1180
        %v1641 = vpack.c.b16 %v1189, %v1185
        %v1642 = vpack.c.b16 %v1190, %v1186
        %v1643 = vpack.c.b16 %v1191, %v1187
        %v1644 = vpack.c.b16 %v1192, %v1188
        %v1645 = vpack.c.b16 %v1197, %v1193
        %v1646 = vpack.c.b16 %v1198, %v1194
        %v1647 = vpack.c.b16 %v1199, %v1195
        %v1648 = vpack.c.b16 %v1200, %v1196
        %v1649 = vpack.c.b16 %v1205, %v1201
        %v1650 = vpack.c.b16 %v1206, %v1202
        %v1651 = vpack.c.b16 %v1207, %v1203
        %v1652 = vpack.c.b16 %v1208, %v1204
        %v1653 = vpack.c.b16 %v1213, %v1209
        %v1654 = vpack.c.b16 %v1214, %v1210
        %v1655 = vpack.c.b16 %v1215, %v1211
        %v1656 = vpack.c.b16 %v1216, %v1212
        %v1657 = vpack.c.b16 %v1221, %v1217
        %v1658 = vpack.c.b16 %v1222, %v1218
        %v1659 = vpack.c.b16 %v1223, %v1219
        %v1660 = vpack.c.b16 %v1224, %v1220
        %v1661 = vpack.c.b16 %v1229, %v1225
        %v1662 = vpack.c.b16 %v1230, %v1226
        %v1663 = vpack.c.b16 %v1231, %v1227
        %v1664 = vpack.c.b16 %v1232, %v1228
        %v1665 = vpack.c.b16 %v1237, %v1233
        %v1666 = vpack.c.b16 %v1238, %v1234
        %v1667 = vpack.c.b16 %v1239, %v1235
        %v1668 = vpack.c.b16 %v1240, %v1236
        %v1669 = vpack.c.b16 %v1245, %v1241
        %v1670 = vpack.c.b16 %v1246, %v1242
        %v1671 = vpack.c.b16 %v1247, %v1243
        %v1672 = vpack.c.b16 %v1248, %v1244
        %v1673 = vpack.c.b16 %v1253, %v1249
        %v1674 = vpack.c.b16 %v1254, %v1250
        %v1675 = vpack.c.b16 %v1255, %v1251
        %v1676 = vpack.c.b16 %v1256, %v1252
        %v1677 = vpack.c.b16 %v1261, %v1257
        %v1678 = vpack.c.b16 %v1262, %v1258
        %v1679 = vpack.c.b16 %v1263, %v1259
        %v1680 = vpack.c.b16 %v1264, %v1260
        %v1681 = vpack.c.b16 %v1269, %v1265
        %v1682 = vpack.c.b16 %v1270, %v1266
        %v1683 = vpack.c.b16 %v1271, %v1267
        %v1684 = vpack.c.b16 %v1272, %v1268
        %v1685 = vpack.c.b16 %v1277, %v1273
        %v1686 = vpack.c.b16 %v1278, %v1274
        %v1687 = vpack.c.b16 %v1279, %v1275
        %v1688 = vpack.c.b16 %v1280, %v1276
        %v1689 = vpack.c.b16 %v1285, %v1281
        %v1690 = vpack.c.b16 %v1286, %v1282
        %v1691 = vpack.c.b16 %v1287, %v1283
        %v1692 = vpack.c.b16 %v1288, %v1284
        %v1693 = vpack.c.b16 %v1293, %v1289
        %v1694 = vpack.c.b16 %v1294, %v1290
        %v1695 = vpack.c.b16 %v1295, %v1291
        %v1696 = vpack.c.b16 %v1296, %v1292
        %v1697 = vpack.c.b16 %v1301, %v1297
        %v1698 = vpack.c.b16 %v1302, %v1298
        %v1699 = vpack.c.b16 %v1303, %v1299
        %v1700 = vpack.c.b16 %v1304, %v1300
        %v1701 = vpack.c.b16 %v1309, %v1305
        %v1702 = vpack.c.b16 %v1310, %v1306
        %v1703 = vpack.c.b16 %v1311, %v1307
        %v1704 = vpack.c.b16 %v1312, %v1308
        %v1705 = vpack.c.b16 %v1317, %v1313
        %v1706 = vpack.c.b16 %v1318, %v1314
        %v1707 = vpack.c.b16 %v1319, %v1315
        %v1708 = vpack.c.b16 %v1320, %v1316
        %v1709 = vpack.c.b16 %v1325, %v1321
        %v1710 = vpack.c.b16 %v1326, %v1322
        %v1711 = vpack.c.b16 %v1327, %v1323
        %v1712 = vpack.c.b16 %v1328, %v1324
        %v1713 = vpack.c.b16 %v1333, %v1329
        %v1714 = vpack.c.b16 %v1334, %v1330
        %v1715 = vpack.c.b16 %v1335, %v1331
        %v1716 = vpack.c.b16 %v1336, %v1332
        %v1717 = vpack.c.b16 %v1341, %v1337
        %v1718 = vpack.c.b16 %v1342, %v1338
        %v1719 = vpack.c.b16 %v1343, %v1339
        %v1720 = vpack.c.b16 %v1344, %v1340
        %v1721 = vpack.c.b16 %v1349, %v1345
        %v1722 = vpack.c.b16 %v1350, %v1346
        %v1723 = vpack.c.b16 %v1351, %v1347
        %v1724 = vpack.c.b16 %v1352, %v1348
        %v1725 = vpack.c.b16 %v1357, %v1353
        %v1726 = vpack.c.b16 %v1358, %v1354
        %v1727 = vpack.c.b16 %v1359, %v1355
        %v1728 = vpack.c.b16 %v1360, %v1356
        %v1729 = vpack.c.b16 %v1365, %v1361
        %v1730 = vpack.c.b16 %v1366, %v1362
        %v1731 = vpack.c.b16 %v1367, %v1363
        %v1732 = vpack.c.b16 %v1368, %v1364
        %v1733 = vpack.c.b16 %v1373, %v1369
        %v1734 = vpack.c.b16 %v1374, %v1370
        %v1735 = vpack.c.b16 %v1375, %v1371
        %v1736 = vpack.c.b16 %v1376, %v1372
        %v1737 = vpack.c.b16 %v1381, %v1377
        %v1738 = vpack.c.b16 %v1382, %v1378
        %v1739 = vpack.c.b16 %v1383, %v1379
        %v1740 = vpack.c.b16 %v1384, %v1380
        %v1741 = vpack.c.b16 %v1389, %v1385
        %v1742 = vpack.c.b16 %v1390, %v1386
        %v1743 = vpack.c.b16 %v1391, %v1387
        %v1744 = vpack.c.b16 %v1392, %v1388
        %v1745 = vpack.c.b16 %v1397, %v1393
        %v1746 = vpack.c.b16 %v1398, %v1394
        %v1747 = vpack.c.b16 %v1399, %v1395
        %v1748 = vpack.c.b16 %v1400, %v1396
        %v1749 = vpack.c.b16 %v1405, %v1401
        %v1750 = vpack.c.b16 %v1406, %v1402
        %v1751 = vpack.c.b16 %v1407, %v1403
        %v1752 = vpack.c.b16 %v1408, %v1404
        %v1753 = vpack.c.b16 %v1413, %v1409
        %v1754 = vpack.c.b16 %v1414, %v1410
        %v1755 = vpack.c.b16 %v1415, %v1411
        %v1756 = vpack.c.b16 %v1416, %v1412
        %v1757 = vpack.c.b16 %v1421, %v1417
        %v1758 = vpack.c.b16 %v1422, %v1418
        %v1759 = vpack.c.b16 %v1423, %v1419
        %v1760 = vpack.c.b16 %v1424, %v1420
        %v1761 = vpack.c.b16 %v1429, %v1425
        %v1762 = vpack.c.b16 %v1430, %v1426
        %v1763 = vpack.c.b16 %v1431, %v1427
        %v1764 = vpack.c.b16 %v1432, %v1428
        %v1765 = vpack.c.b16 %v1437, %v1433
        %v1766 = vpack.c.b16 %v1438, %v1434
        %v1767 = vpack.c.b16 %v1439, %v1435
        %v1768 = vpack.c.b16 %v1440, %v1436
        %v1769 = vpack.c.b16 %v1445, %v1441
        %v1770 = vpack.c.b16 %v1446, %v1442
        %v1771 = vpack.c.b16 %v1447, %v1443
        %v1772 = vpack.c.b16 %v1448, %v1444
        %v1773 = vpack.c.b16 %v1453, %v1449
        %v1774 = vpack.c.b16 %v1454, %v1450
        %v1775 = vpack.c.b16 %v1455, %v1451
        %v1776 = vpack.c.b16 %v1456, %v1452
        %v1777 = vpack.c.b16 %v1461, %v1457
        %v1778 = vpack.c.b16 %v1462, %v1458
        %v1779 = vpack.c.b16 %v1463, %v1459
        %v1780 = vpack.c.b16 %v1464, %v1460
        %v1781 = vpack.c.b16 %v1469, %v1465
        %v1782 = vpack.c.b16 %v1470, %v1466
        %v1783 = vpack.c.b16 %v1471, %v1467
        %v1784 = vpack.c.b16 %v1472, %v1468
        %v1785 = vpack.c.b16 %v1477, %v1473
        %v1786 = vpack.c.b16 %v1478, %v1474
        %v1787 = vpack.c.b16 %v1479, %v1475
        %v1788 = vpack.c.b16 %v1480, %v1476
        %v1789 = vpack.c.b16 %v1485, %v1481
        %v1790 = vpack.c.b16 %v1486, %v1482
        %v1791 = vpack.c.b16 %v1487, %v1483
        %v1792 = vpack.c.b16 %v1488, %v1484
        %v1793 = vpack.c.b16 %v1493, %v1489
        %v1794 = vpack.c.b16 %v1494, %v1490
        %v1795 = vpack.c.b16 %v1495, %v1491
        %v1796 = vpack.c.b16 %v1496, %v1492
        %v1797 = vpack.c.b16 %v1501, %v1497
        %v1798 = vpack.c.b16 %v1502, %v1498
        %v1799 = vpack.c.b16 %v1503, %v1499
        %v1800 = vpack.c.b16 %v1504, %v1500
        %v1801 = vpack.c.b16 %v1509, %v1505
        %v1802 = vpack.c.b16 %v1510, %v1506
        %v1803 = vpack.c.b16 %v1511, %v1507
        %v1804 = vpack.c.b16 %v1512, %v1508
        %v1805 = vpack.c.b16 %v1517, %v1513
        %v1806 = vpack.c.b16 %v1518, %v1514
        %v1807 = vpack.c.b16 %v1519, %v1515
        %v1808 = vpack.c.b16 %v1520, %v1516
        %v1809 = vpack.c.b16 %v1525, %v1521
        %v1810 = vpack.c.b16 %v1526, %v1522
        %v1811 = vpack.c.b16 %v1527, %v1523
        %v1812 = vpack.c.b16 %v1528, %v1524
        %v1813 = vpack.c.b16 %v1533, %v1529
        %v1814 = vpack.c.b16 %v1534, %v1530
        %v1815 = vpack.c.b16 %v1535, %v1531
        %v1816 = vpack.c.b16 %v1536, %v1532
        %v1817 = vpack.c.b16 %v1541, %v1537
        %v1818 = vpack.c.b16 %v1542, %v1538
        %v1819 = vpack.c.b16 %v1543, %v1539
        %v1820 = vpack.c.b16 %v1544, %v1540
        %v1821 = vpack.c.b16 %v1549, %v1545
        %v1822 = vpack.c.b16 %v1550, %v1546
        %v1823 = vpack.c.b16 %v1551, %v1547
        %v1824 = vpack.c.b16 %v1552, %v1548
        %v1825 = vpack.c.b16 %v1557, %v1553
        %v1826 = vpack.c.b16 %v1558, %v1554
        %v1827 = vpack.c.b16 %v1559, %v1555
        %v1828 = vpack.c.b16 %v1560, %v1556
        %v1829 = vpack.c.b16 %v1565, %v1561
        %v1830 = vpack.c.b16 %v1566, %v1562
        %v1831 = vpack.c.b16 %v1567, %v1563
        %v1832 = vpack.c.b16 %v1568, %v1564
        %v1833 = vpack.c.b16 %v1573, %v1569
        %v1834 = vpack.c.b16 %v1574, %v1570
        %v1835 = vpack.c.b16 %v1575, %v1571
        %v1836 = vpack.c.b16 %v1576, %v1572
        %v1837 = vpack.c.b16 %v1581, %v1577
        %v1838 = vpack.c.b16 %v1582, %v1578
        %v1839 = vpack.c.b16 %v1583, %v1579
        %v1840 = vpack.c.b16 %v1584, %v1580
        %2097 = vmatpush.bf16.msra.mxu0 %v1613
        %2098 = vmatpush.bf16.msra.mxu0 %v1609
        %2099 = vmatpush.bf16.msra.mxu0 %v1605
        %2100 = vmatpush.bf16.msra.mxu0 %v1601
        %2101 = vmatpush.bf16.msra.mxu0 %v1597
        %2102 = vmatpush.bf16.msra.mxu0 %v1593
        %2103 = vmatpush.bf16.msra.mxu0 %v1589
        %2104 = vmatpush.bf16.msra.mxu0 %v1585
        %2105 = vmatmul.bf16.gmra.mxu0 %v545
        %v2106 = vpop.f32.mrf.mxu0
        %v2107 = vadd.f32 0.0, %v2106
        %v2108 = vpop.f32.mrf.mxu0
        %v2109 = vadd.f32 0.0, %v2108
        %2110 = vdwg.mxu0
        %2111 = vmatpush.bf16.msra.mxu0 %v1645
        %2112 = vmatpush.bf16.msra.mxu0 %v1641
        %2113 = vmatpush.bf16.msra.mxu0 %v1637
        %2114 = vmatpush.bf16.msra.mxu0 %v1633
        %2115 = vmatpush.bf16.msra.mxu0 %v1629
        %2116 = vmatpush.bf16.msra.mxu0 %v1625
        %2117 = vmatpush.bf16.msra.mxu0 %v1621
        %2118 = vmatpush.bf16.msra.mxu0 %v1617
        %2119 = vmatmul.bf16.gmra.mxu0 %v546
        %v2120 = vpop.f32.mrf.mxu0
        %v2121 = vadd.f32 %v2107, %v2120
        %v2122 = vpop.f32.mrf.mxu0
        %v2123 = vadd.f32 %v2109, %v2122
        %2124 = vdwg.mxu0
        %2125 = vmatpush.bf16.msra.mxu0 %v1677
        %2126 = vmatpush.bf16.msra.mxu0 %v1673
        %2127 = vmatpush.bf16.msra.mxu0 %v1669
        %2128 = vmatpush.bf16.msra.mxu0 %v1665
        %2129 = vmatpush.bf16.msra.mxu0 %v1661
        %2130 = vmatpush.bf16.msra.mxu0 %v1657
        %2131 = vmatpush.bf16.msra.mxu0 %v1653
        %2132 = vmatpush.bf16.msra.mxu0 %v1649
        %2133 = vmatmul.bf16.gmra.mxu0 %v547
        %v2134 = vpop.f32.mrf.mxu0
        %v2135 = vadd.f32 %v2121, %v2134
        %v2136 = vpop.f32.mrf.mxu0
        %v2137 = vadd.f32 %v2123, %v2136
        %2138 = vdwg.mxu0
        %2139 = vmatpush.bf16.msra.mxu0 %v1709
        %2140 = vmatpush.bf16.msra.mxu0 %v1705
        %2141 = vmatpush.bf16.msra.mxu0 %v1701
        %2142 = vmatpush.bf16.msra.mxu0 %v1697
        %2143 = vmatpush.bf16.msra.mxu0 %v1693
        %2144 = vmatpush.bf16.msra.mxu0 %v1689
        %2145 = vmatpush.bf16.msra.mxu0 %v1685
        %2146 = vmatpush.bf16.msra.mxu0 %v1681
        %2147 = vmatmul.bf16.gmra.mxu0 %v548
        %v2148 = vpop.f32.mrf.mxu0
        %v2149 = vadd.f32 %v2135, %v2148
        %v2150 = vpop.f32.mrf.mxu0
        %v2151 = vadd.f32 %v2137, %v2150
        %2152 = vdwg.mxu0
        %2153 = vmatpush.bf16.msra.mxu0 %v1741
        %2154 = vmatpush.bf16.msra.mxu0 %v1737
        %2155 = vmatpush.bf16.msra.mxu0 %v1733
        %2156 = vmatpush.bf16.msra.mxu0 %v1729
        %2157 = vmatpush.bf16.msra.mxu0 %v1725
        %2158 = vmatpush.bf16.msra.mxu0 %v1721
        %2159 = vmatpush.bf16.msra.mxu0 %v1717
        %2160 = vmatpush.bf16.msra.mxu0 %v1713
        %2161 = vmatmul.bf16.gmra.mxu0 %v549
        %v2162 = vpop.f32.mrf.mxu0
        %v2163 = vadd.f32 %v2149, %v2162
        %v2164 = vpop.f32.mrf.mxu0
        %v2165 = vadd.f32 %v2151, %v2164
        %2166 = vdwg.mxu0
        %2167 = vmatpush.bf16.msra.mxu0 %v1773
        %2168 = vmatpush.bf16.msra.mxu0 %v1769
        %2169 = vmatpush.bf16.msra.mxu0 %v1765
        %2170 = vmatpush.bf16.msra.mxu0 %v1761
        %2171 = vmatpush.bf16.msra.mxu0 %v1757
        %2172 = vmatpush.bf16.msra.mxu0 %v1753
        %2173 = vmatpush.bf16.msra.mxu0 %v1749
        %2174 = vmatpush.bf16.msra.mxu0 %v1745
        %2175 = vmatmul.bf16.gmra.mxu0 %v550
        %v2176 = vpop.f32.mrf.mxu0
        %v2177 = vadd.f32 %v2163, %v2176
        %v2178 = vpop.f32.mrf.mxu0
        %v2179 = vadd.f32 %v2165, %v2178
        %2180 = vdwg.mxu0
        %2181 = vmatpush.bf16.msra.mxu0 %v1805
        %2182 = vmatpush.bf16.msra.mxu0 %v1801
        %2183 = vmatpush.bf16.msra.mxu0 %v1797
        %2184 = vmatpush.bf16.msra.mxu0 %v1793
        %2185 = vmatpush.bf16.msra.mxu0 %v1789
        %2186 = vmatpush.bf16.msra.mxu0 %v1785
        %2187 = vmatpush.bf16.msra.mxu0 %v1781
        %2188 = vmatpush.bf16.msra.mxu0 %v1777
        %2189 = vmatmul.bf16.gmra.mxu0 %v551
        %v2190 = vpop.f32.mrf.mxu0
        %v2191 = vadd.f32 %v2177, %v2190
        %v2192 = vpop.f32.mrf.mxu0
        %v2193 = vadd.f32 %v2179, %v2192
        %2194 = vdwg.mxu0
        %2195 = vmatpush.bf16.msra.mxu0 %v1837
        %2196 = vmatpush.bf16.msra.mxu0 %v1833
        %2197 = vmatpush.bf16.msra.mxu0 %v1829
        %2198 = vmatpush.bf16.msra.mxu0 %v1825
        %2199 = vmatpush.bf16.msra.mxu0 %v1821
        %2200 = vmatpush.bf16.msra.mxu0 %v1817
        %2201 = vmatpush.bf16.msra.mxu0 %v1813
        %2202 = vmatpush.bf16.msra.mxu0 %v1809
        %2203 = vmatmul.bf16.gmra.mxu0 %v552
        %v2204 = vpop.f32.mrf.mxu0
        %v2205 = vadd.f32 %v2191, %v2204
        %v2206 = vpop.f32.mrf.mxu0
        %v2207 = vadd.f32 %v2193, %v2206
        %2208 = vdwg.mxu0
        %2209 = vmatpush.bf16.msra.mxu0 %v1614
        %2210 = vmatpush.bf16.msra.mxu0 %v1610
        %2211 = vmatpush.bf16.msra.mxu0 %v1606
        %2212 = vmatpush.bf16.msra.mxu0 %v1602
        %2213 = vmatpush.bf16.msra.mxu0 %v1598
        %2214 = vmatpush.bf16.msra.mxu0 %v1594
        %2215 = vmatpush.bf16.msra.mxu0 %v1590
        %2216 = vmatpush.bf16.msra.mxu0 %v1586
        %2217 = vmatmul.bf16.gmra.mxu0 %v545
        %v2218 = vpop.f32.mrf.mxu0
        %v2219 = vadd.f32 0.0, %v2218
        %v2220 = vpop.f32.mrf.mxu0
        %v2221 = vadd.f32 0.0, %v2220
        %2222 = vdwg.mxu0
        %2223 = vmatpush.bf16.msra.mxu0 %v1646
        %2224 = vmatpush.bf16.msra.mxu0 %v1642
        %2225 = vmatpush.bf16.msra.mxu0 %v1638
        %2226 = vmatpush.bf16.msra.mxu0 %v1634
        %2227 = vmatpush.bf16.msra.mxu0 %v1630
        %2228 = vmatpush.bf16.msra.mxu0 %v1626
        %2229 = vmatpush.bf16.msra.mxu0 %v1622
        %2230 = vmatpush.bf16.msra.mxu0 %v1618
        %2231 = vmatmul.bf16.gmra.mxu0 %v546
        %v2232 = vpop.f32.mrf.mxu0
        %v2233 = vadd.f32 %v2219, %v2232
        %v2234 = vpop.f32.mrf.mxu0
        %v2235 = vadd.f32 %v2221, %v2234
        %2236 = vdwg.mxu0
        %2237 = vmatpush.bf16.msra.mxu0 %v1678
        %2238 = vmatpush.bf16.msra.mxu0 %v1674
        %2239 = vmatpush.bf16.msra.mxu0 %v1670
        %2240 = vmatpush.bf16.msra.mxu0 %v1666
        %2241 = vmatpush.bf16.msra.mxu0 %v1662
        %2242 = vmatpush.bf16.msra.mxu0 %v1658
        %2243 = vmatpush.bf16.msra.mxu0 %v1654
        %2244 = vmatpush.bf16.msra.mxu0 %v1650
        %2245 = vmatmul.bf16.gmra.mxu0 %v547
        %v2246 = vpop.f32.mrf.mxu0
        %v2247 = vadd.f32 %v2233, %v2246
        %v2248 = vpop.f32.mrf.mxu0
        %v2249 = vadd.f32 %v2235, %v2248
        %2250 = vdwg.mxu0
        %2251 = vmatpush.bf16.msra.mxu0 %v1710
        %2252 = vmatpush.bf16.msra.mxu0 %v1706
        %2253 = vmatpush.bf16.msra.mxu0 %v1702
        %2254 = vmatpush.bf16.msra.mxu0 %v1698
        %2255 = vmatpush.bf16.msra.mxu0 %v1694
        %2256 = vmatpush.bf16.msra.mxu0 %v1690
        %2257 = vmatpush.bf16.msra.mxu0 %v1686
        %2258 = vmatpush.bf16.msra.mxu0 %v1682
        %2259 = vmatmul.bf16.gmra.mxu0 %v548
        %v2260 = vpop.f32.mrf.mxu0
        %v2261 = vadd.f32 %v2247, %v2260
        %v2262 = vpop.f32.mrf.mxu0
        %v2263 = vadd.f32 %v2249, %v2262
        %2264 = vdwg.mxu0
        %2265 = vmatpush.bf16.msra.mxu0 %v1742
        %2266 = vmatpush.bf16.msra.mxu0 %v1738
        %2267 = vmatpush.bf16.msra.mxu0 %v1734
        %2268 = vmatpush.bf16.msra.mxu0 %v1730
        %2269 = vmatpush.bf16.msra.mxu0 %v1726
        %2270 = vmatpush.bf16.msra.mxu0 %v1722
        %2271 = vmatpush.bf16.msra.mxu0 %v1718
        %2272 = vmatpush.bf16.msra.mxu0 %v1714
        %2273 = vmatmul.bf16.gmra.mxu0 %v549
        %v2274 = vpop.f32.mrf.mxu0
        %v2275 = vadd.f32 %v2261, %v2274
        %v2276 = vpop.f32.mrf.mxu0
        %v2277 = vadd.f32 %v2263, %v2276
        %2278 = vdwg.mxu0
        %2279 = vmatpush.bf16.msra.mxu0 %v1774
        %2280 = vmatpush.bf16.msra.mxu0 %v1770
        %2281 = vmatpush.bf16.msra.mxu0 %v1766
        %2282 = vmatpush.bf16.msra.mxu0 %v1762
        %2283 = vmatpush.bf16.msra.mxu0 %v1758
        %2284 = vmatpush.bf16.msra.mxu0 %v1754
        %2285 = vmatpush.bf16.msra.mxu0 %v1750
        %2286 = vmatpush.bf16.msra.mxu0 %v1746
        %2287 = vmatmul.bf16.gmra.mxu0 %v550
        %v2288 = vpop.f32.mrf.mxu0
        %v2289 = vadd.f32 %v2275, %v2288
        %v2290 = vpop.f32.mrf.mxu0
        %v2291 = vadd.f32 %v2277, %v2290
        %2292 = vdwg.mxu0
        %2293 = vmatpush.bf16.msra.mxu0 %v1806
        %2294 = vmatpush.bf16.msra.mxu0 %v1802
        %2295 = vmatpush.bf16.msra.mxu0 %v1798
        %2296 = vmatpush.bf16.msra.mxu0 %v1794
        %2297 = vmatpush.bf16.msra.mxu0 %v1790
        %2298 = vmatpush.bf16.msra.mxu0 %v1786
        %2299 = vmatpush.bf16.msra.mxu0 %v1782
        %2300 = vmatpush.bf16.msra.mxu0 %v1778
        %2301 = vmatmul.bf16.gmra.mxu0 %v551
        %v2302 = vpop.f32.mrf.mxu0
        %v2303 = vadd.f32 %v2289, %v2302
        %v2304 = vpop.f32.mrf.mxu0
        %v2305 = vadd.f32 %v2291, %v2304
        %2306 = vdwg.mxu0
        %2307 = vmatpush.bf16.msra.mxu0 %v1838
        %2308 = vmatpush.bf16.msra.mxu0 %v1834
        %2309 = vmatpush.bf16.msra.mxu0 %v1830
        %2310 = vmatpush.bf16.msra.mxu0 %v1826
        %2311 = vmatpush.bf16.msra.mxu0 %v1822
        %2312 = vmatpush.bf16.msra.mxu0 %v1818
        %2313 = vmatpush.bf16.msra.mxu0 %v1814
        %2314 = vmatpush.bf16.msra.mxu0 %v1810
        %2315 = vmatmul.bf16.gmra.mxu0 %v552
        %v2316 = vpop.f32.mrf.mxu0
        %v2317 = vadd.f32 %v2303, %v2316
        %v2318 = vpop.f32.mrf.mxu0
        %v2319 = vadd.f32 %v2305, %v2318
        %2320 = vdwg.mxu0
        %2321 = vmatpush.bf16.msra.mxu0 %v1615
        %2322 = vmatpush.bf16.msra.mxu0 %v1611
        %2323 = vmatpush.bf16.msra.mxu0 %v1607
        %2324 = vmatpush.bf16.msra.mxu0 %v1603
        %2325 = vmatpush.bf16.msra.mxu0 %v1599
        %2326 = vmatpush.bf16.msra.mxu0 %v1595
        %2327 = vmatpush.bf16.msra.mxu0 %v1591
        %2328 = vmatpush.bf16.msra.mxu0 %v1587
        %2329 = vmatmul.bf16.gmra.mxu0 %v545
        %v2330 = vpop.f32.mrf.mxu0
        %v2331 = vadd.f32 0.0, %v2330
        %v2332 = vpop.f32.mrf.mxu0
        %v2333 = vadd.f32 0.0, %v2332
        %2334 = vdwg.mxu0
        %2335 = vmatpush.bf16.msra.mxu0 %v1647
        %2336 = vmatpush.bf16.msra.mxu0 %v1643
        %2337 = vmatpush.bf16.msra.mxu0 %v1639
        %2338 = vmatpush.bf16.msra.mxu0 %v1635
        %2339 = vmatpush.bf16.msra.mxu0 %v1631
        %2340 = vmatpush.bf16.msra.mxu0 %v1627
        %2341 = vmatpush.bf16.msra.mxu0 %v1623
        %2342 = vmatpush.bf16.msra.mxu0 %v1619
        %2343 = vmatmul.bf16.gmra.mxu0 %v546
        %v2344 = vpop.f32.mrf.mxu0
        %v2345 = vadd.f32 %v2331, %v2344
        %v2346 = vpop.f32.mrf.mxu0
        %v2347 = vadd.f32 %v2333, %v2346
        %2348 = vdwg.mxu0
        %2349 = vmatpush.bf16.msra.mxu0 %v1679
        %2350 = vmatpush.bf16.msra.mxu0 %v1675
        %2351 = vmatpush.bf16.msra.mxu0 %v1671
        %2352 = vmatpush.bf16.msra.mxu0 %v1667
        %2353 = vmatpush.bf16.msra.mxu0 %v1663
        %2354 = vmatpush.bf16.msra.mxu0 %v1659
        %2355 = vmatpush.bf16.msra.mxu0 %v1655
        %2356 = vmatpush.bf16.msra.mxu0 %v1651
        %2357 = vmatmul.bf16.gmra.mxu0 %v547
        %v2358 = vpop.f32.mrf.mxu0
        %v2359 = vadd.f32 %v2345, %v2358
        %v2360 = vpop.f32.mrf.mxu0
        %v2361 = vadd.f32 %v2347, %v2360
        %2362 = vdwg.mxu0
        %2363 = vmatpush.bf16.msra.mxu0 %v1711
        %2364 = vmatpush.bf16.msra.mxu0 %v1707
        %2365 = vmatpush.bf16.msra.mxu0 %v1703
        %2366 = vmatpush.bf16.msra.mxu0 %v1699
        %2367 = vmatpush.bf16.msra.mxu0 %v1695
        %2368 = vmatpush.bf16.msra.mxu0 %v1691
        %2369 = vmatpush.bf16.msra.mxu0 %v1687
        %2370 = vmatpush.bf16.msra.mxu0 %v1683
        %2371 = vmatmul.bf16.gmra.mxu0 %v548
        %v2372 = vpop.f32.mrf.mxu0
        %v2373 = vadd.f32 %v2359, %v2372
        %v2374 = vpop.f32.mrf.mxu0
        %v2375 = vadd.f32 %v2361, %v2374
        %2376 = vdwg.mxu0
        %2377 = vmatpush.bf16.msra.mxu0 %v1743
        %2378 = vmatpush.bf16.msra.mxu0 %v1739
        %2379 = vmatpush.bf16.msra.mxu0 %v1735
        %2380 = vmatpush.bf16.msra.mxu0 %v1731
        %2381 = vmatpush.bf16.msra.mxu0 %v1727
        %2382 = vmatpush.bf16.msra.mxu0 %v1723
        %2383 = vmatpush.bf16.msra.mxu0 %v1719
        %2384 = vmatpush.bf16.msra.mxu0 %v1715
        %2385 = vmatmul.bf16.gmra.mxu0 %v549
        %v2386 = vpop.f32.mrf.mxu0
        %v2387 = vadd.f32 %v2373, %v2386
        %v2388 = vpop.f32.mrf.mxu0
        %v2389 = vadd.f32 %v2375, %v2388
        %2390 = vdwg.mxu0
        %2391 = vmatpush.bf16.msra.mxu0 %v1775
        %2392 = vmatpush.bf16.msra.mxu0 %v1771
        %2393 = vmatpush.bf16.msra.mxu0 %v1767
        %2394 = vmatpush.bf16.msra.mxu0 %v1763
        %2395 = vmatpush.bf16.msra.mxu0 %v1759
        %2396 = vmatpush.bf16.msra.mxu0 %v1755
        %2397 = vmatpush.bf16.msra.mxu0 %v1751
        %2398 = vmatpush.bf16.msra.mxu0 %v1747
        %2399 = vmatmul.bf16.gmra.mxu0 %v550
        %v2400 = vpop.f32.mrf.mxu0
        %v2401 = vadd.f32 %v2387, %v2400
        %v2402 = vpop.f32.mrf.mxu0
        %v2403 = vadd.f32 %v2389, %v2402
        %2404 = vdwg.mxu0
        %2405 = vmatpush.bf16.msra.mxu0 %v1807
        %2406 = vmatpush.bf16.msra.mxu0 %v1803
        %2407 = vmatpush.bf16.msra.mxu0 %v1799
        %2408 = vmatpush.bf16.msra.mxu0 %v1795
        %2409 = vmatpush.bf16.msra.mxu0 %v1791
        %2410 = vmatpush.bf16.msra.mxu0 %v1787
        %2411 = vmatpush.bf16.msra.mxu0 %v1783
        %2412 = vmatpush.bf16.msra.mxu0 %v1779
        %2413 = vmatmul.bf16.gmra.mxu0 %v551
        %v2414 = vpop.f32.mrf.mxu0
        %v2415 = vadd.f32 %v2401, %v2414
        %v2416 = vpop.f32.mrf.mxu0
        %v2417 = vadd.f32 %v2403, %v2416
        %2418 = vdwg.mxu0
        %2419 = vmatpush.bf16.msra.mxu0 %v1839
        %2420 = vmatpush.bf16.msra.mxu0 %v1835
        %2421 = vmatpush.bf16.msra.mxu0 %v1831
        %2422 = vmatpush.bf16.msra.mxu0 %v1827
        %2423 = vmatpush.bf16.msra.mxu0 %v1823
        %2424 = vmatpush.bf16.msra.mxu0 %v1819
        %2425 = vmatpush.bf16.msra.mxu0 %v1815
        %2426 = vmatpush.bf16.msra.mxu0 %v1811
        %2427 = vmatmul.bf16.gmra.mxu0 %v552
        %v2428 = vpop.f32.mrf.mxu0
        %v2429 = vadd.f32 %v2415, %v2428
        %v2430 = vpop.f32.mrf.mxu0
        %v2431 = vadd.f32 %v2417, %v2430
        %2432 = vdwg.mxu0
        %2433 = vmatpush.bf16.msra.mxu0 %v1616
        %2434 = vmatpush.bf16.msra.mxu0 %v1612
        %2435 = vmatpush.bf16.msra.mxu0 %v1608
        %2436 = vmatpush.bf16.msra.mxu0 %v1604
        %2437 = vmatpush.bf16.msra.mxu0 %v1600
        %2438 = vmatpush.bf16.msra.mxu0 %v1596
        %2439 = vmatpush.bf16.msra.mxu0 %v1592
        %2440 = vmatpush.bf16.msra.mxu0 %v1588
        %2441 = vmatmul.bf16.gmra.mxu0 %v545
        %v2442 = vpop.f32.mrf.mxu0
        %v2443 = vadd.f32 0.0, %v2442
        %v2444 = vpop.f32.mrf.mxu0
        %v2445 = vadd.f32 0.0, %v2444
        %2446 = vdwg.mxu0
        %2447 = vmatpush.bf16.msra.mxu0 %v1648
        %2448 = vmatpush.bf16.msra.mxu0 %v1644
        %2449 = vmatpush.bf16.msra.mxu0 %v1640
        %2450 = vmatpush.bf16.msra.mxu0 %v1636
        %2451 = vmatpush.bf16.msra.mxu0 %v1632
        %2452 = vmatpush.bf16.msra.mxu0 %v1628
        %2453 = vmatpush.bf16.msra.mxu0 %v1624
        %2454 = vmatpush.bf16.msra.mxu0 %v1620
        %2455 = vmatmul.bf16.gmra.mxu0 %v546
        %v2456 = vpop.f32.mrf.mxu0
        %v2457 = vadd.f32 %v2443, %v2456
        %v2458 = vpop.f32.mrf.mxu0
        %v2459 = vadd.f32 %v2445, %v2458
        %2460 = vdwg.mxu0
        %2461 = vmatpush.bf16.msra.mxu0 %v1680
        %2462 = vmatpush.bf16.msra.mxu0 %v1676
        %2463 = vmatpush.bf16.msra.mxu0 %v1672
        %2464 = vmatpush.bf16.msra.mxu0 %v1668
        %2465 = vmatpush.bf16.msra.mxu0 %v1664
        %2466 = vmatpush.bf16.msra.mxu0 %v1660
        %2467 = vmatpush.bf16.msra.mxu0 %v1656
        %2468 = vmatpush.bf16.msra.mxu0 %v1652
        %2469 = vmatmul.bf16.gmra.mxu0 %v547
        %v2470 = vpop.f32.mrf.mxu0
        %v2471 = vadd.f32 %v2457, %v2470
        %v2472 = vpop.f32.mrf.mxu0
        %v2473 = vadd.f32 %v2459, %v2472
        %2474 = vdwg.mxu0
        %2475 = vmatpush.bf16.msra.mxu0 %v1712
        %2476 = vmatpush.bf16.msra.mxu0 %v1708
        %2477 = vmatpush.bf16.msra.mxu0 %v1704
        %2478 = vmatpush.bf16.msra.mxu0 %v1700
        %2479 = vmatpush.bf16.msra.mxu0 %v1696
        %2480 = vmatpush.bf16.msra.mxu0 %v1692
        %2481 = vmatpush.bf16.msra.mxu0 %v1688
        %2482 = vmatpush.bf16.msra.mxu0 %v1684
        %2483 = vmatmul.bf16.gmra.mxu0 %v548
        %v2484 = vpop.f32.mrf.mxu0
        %v2485 = vadd.f32 %v2471, %v2484
        %v2486 = vpop.f32.mrf.mxu0
        %v2487 = vadd.f32 %v2473, %v2486
        %2488 = vdwg.mxu0
        %2489 = vmatpush.bf16.msra.mxu0 %v1744
        %2490 = vmatpush.bf16.msra.mxu0 %v1740
        %2491 = vmatpush.bf16.msra.mxu0 %v1736
        %2492 = vmatpush.bf16.msra.mxu0 %v1732
        %2493 = vmatpush.bf16.msra.mxu0 %v1728
        %2494 = vmatpush.bf16.msra.mxu0 %v1724
        %2495 = vmatpush.bf16.msra.mxu0 %v1720
        %2496 = vmatpush.bf16.msra.mxu0 %v1716
        %2497 = vmatmul.bf16.gmra.mxu0 %v549
        %v2498 = vpop.f32.mrf.mxu0
        %v2499 = vadd.f32 %v2485, %v2498
        %v2500 = vpop.f32.mrf.mxu0
        %v2501 = vadd.f32 %v2487, %v2500
        %2502 = vdwg.mxu0
        %2503 = vmatpush.bf16.msra.mxu0 %v1776
        %2504 = vmatpush.bf16.msra.mxu0 %v1772
        %2505 = vmatpush.bf16.msra.mxu0 %v1768
        %2506 = vmatpush.bf16.msra.mxu0 %v1764
        %2507 = vmatpush.bf16.msra.mxu0 %v1760
        %2508 = vmatpush.bf16.msra.mxu0 %v1756
        %2509 = vmatpush.bf16.msra.mxu0 %v1752
        %2510 = vmatpush.bf16.msra.mxu0 %v1748
        %2511 = vmatmul.bf16.gmra.mxu0 %v550
        %v2512 = vpop.f32.mrf.mxu0
        %v2513 = vadd.f32 %v2499, %v2512
        %v2514 = vpop.f32.mrf.mxu0
        %v2515 = vadd.f32 %v2501, %v2514
        %2516 = vdwg.mxu0
        %2517 = vmatpush.bf16.msra.mxu0 %v1808
        %2518 = vmatpush.bf16.msra.mxu0 %v1804
        %2519 = vmatpush.bf16.msra.mxu0 %v1800
        %2520 = vmatpush.bf16.msra.mxu0 %v1796
        %2521 = vmatpush.bf16.msra.mxu0 %v1792
        %2522 = vmatpush.bf16.msra.mxu0 %v1788
        %2523 = vmatpush.bf16.msra.mxu0 %v1784
        %2524 = vmatpush.bf16.msra.mxu0 %v1780
        %2525 = vmatmul.bf16.gmra.mxu0 %v551
        %v2526 = vpop.f32.mrf.mxu0
        %v2527 = vadd.f32 %v2513, %v2526
        %v2528 = vpop.f32.mrf.mxu0
        %v2529 = vadd.f32 %v2515, %v2528
        %2530 = vdwg.mxu0
        %2531 = vmatpush.bf16.msra.mxu0 %v1840
        %2532 = vmatpush.bf16.msra.mxu0 %v1836
        %2533 = vmatpush.bf16.msra.mxu0 %v1832
        %2534 = vmatpush.bf16.msra.mxu0 %v1828
        %2535 = vmatpush.bf16.msra.mxu0 %v1824
        %2536 = vmatpush.bf16.msra.mxu0 %v1820
        %2537 = vmatpush.bf16.msra.mxu0 %v1816
        %2538 = vmatpush.bf16.msra.mxu0 %v1812
        %2539 = vmatmul.bf16.gmra.mxu0 %v552
        %v2540 = vpop.f32.mrf.mxu0
        %v2541 = vadd.f32 %v2527, %v2540
        %v2542 = vpop.f32.mrf.mxu0
        %v2543 = vadd.f32 %v2529, %v2542
        %2544 = vdwg.mxu0
        %v2545 = vadd.f32 %v553, %v2205
        %v2546 = vadd.f32 %v554, %v2317
        %v2547 = vadd.f32 %v555, %v2429
        %v2548 = vadd.f32 %v556, %v2541
        %v2549 = vadd.f32 %v557, %v2207
        %v2550 = vadd.f32 %v558, %v2319
        %v2551 = vadd.f32 %v559, %v2431
        %v2552 = vadd.f32 %v560, %v2543
        %2553 = vst [vmem:[#allocation2] sm:$0xff] %v2545
        %2554 = vst [vmem:[#allocation2 + $0x8] sm:$0xff] %v2546
        %2555 = vst [vmem:[#allocation2 + $0x10] sm:$0xff] %v2547
        %2556 = vst [vmem:[#allocation2 + $0x18] sm:$0xff] %v2548
        %2557 = vst [vmem:[#allocation2 + $0x20] sm:$0xff] %v2549
        %2558 = vst [vmem:[#allocation2 + $0x28] sm:$0xff] %v2550
        %2559 = vst [vmem:[#allocation2 + $0x30] sm:$0xff] %v2551
        %2560 = vst [vmem:[#allocation2 + $0x38] sm:$0xff] %v2552
        %p2561 = scmp.eq.s32.totalorder %s35, 2
        // Predicated region
        $region97: #{tpu_custom_call.1} parent=55 // pred_check
          %p2562 = pneg %p2561
        $region98: #{tpu_custom_call.1} parent=55 // pred_check_branch
          %2564 = sbr.rel (%p2562) target = $region100
        $region99: #{tpu_custom_call.1} parent=55 // pred_region
          %v2565 = vld [vmem:[#allocation2] sm:$0xff]
          %v2566 = vld [vmem:[#allocation2 + $0x8] sm:$0xff]
          %v2567 = vld [vmem:[#allocation2 + $0x10] sm:$0xff]
          %v2568 = vld [vmem:[#allocation2 + $0x18] sm:$0xff]
          %v2569 = vld [vmem:[#allocation2 + $0x20] sm:$0xff]
          %v2570 = vld [vmem:[#allocation2 + $0x28] sm:$0xff]
          %v2571 = vld [vmem:[#allocation2 + $0x30] sm:$0xff]
          %v2572 = vld [vmem:[#allocation2 + $0x38] sm:$0xff]
          %v2573 = vld [vmem:[#allocation8] sm:$0xf]
          %v2575 = vperm.slane %v2573, 0
          %v2576 = vperm.slane %v2573, 1
          %v2577 = vperm.slane %v2573, 2
          %v2578 = vperm.slane %v2573, 3
          %v2583 = vadd.f32 %v2565, %v2575
          %v2584 = vadd.f32 %v2566, %v2576
          %v2585 = vadd.f32 %v2567, %v2577
          %v2586 = vadd.f32 %v2568, %v2578
          %v2587 = vadd.f32 %v2569, %v2575
          %v2588 = vadd.f32 %v2570, %v2576
          %v2589 = vadd.f32 %v2571, %v2577
          %v2590 = vadd.f32 %v2572, %v2578
          %v2591 = vmax.f32 %v2583, 0.0
          %v2592 = vmax.f32 %v2584, 0.0
          %v2593 = vmax.f32 %v2585, 0.0
          %v2594 = vmax.f32 %v2586, 0.0
          %v2595 = vmax.f32 %v2587, 0.0
          %v2596 = vmax.f32 %v2588, 0.0
          %v2597 = vmax.f32 %v2589, 0.0
          %v2598 = vmax.f32 %v2590, 0.0
          %v2599 = vpack.c.bf16 %v2595, %v2591
          %v2600 = vpack.c.bf16 %v2596, %v2592
          %v2601 = vpack.c.bf16 %v2597, %v2593
          %v2602 = vpack.c.bf16 %v2598, %v2594
          %v2603 = vld [vmem:[#allocation9] sm:$0xff]
          %v2604 = vld [vmem:[#allocation9 + $0x8] sm:$0xff]
          %v2605 = vld [vmem:[#allocation9 + $0x10] sm:$0xff]
          %v2606 = vld [vmem:[#allocation9 + $0x18] sm:$0xff]
          %v2607 = vld [vmem:[#allocation9 + $0x20] sm:$0xff]
          %v2608 = vld [vmem:[#allocation9 + $0x28] sm:$0xff]
          %v2609 = vld [vmem:[#allocation9 + $0x30] sm:$0xff]
          %v2610 = vld [vmem:[#allocation9 + $0x38] sm:$0xff]
          %v2611 = vld [vmem:[#allocation9 + $0x40] sm:$0xff]
          %v2612 = vld [vmem:[#allocation9 + $0x48] sm:$0xff]
          %v2613 = vld [vmem:[#allocation9 + $0x50] sm:$0xff]
          %v2614 = vld [vmem:[#allocation9 + $0x58] sm:$0xff]
          %v2615 = vld [vmem:[#allocation9 + $0x60] sm:$0xff]
          %v2616 = vld [vmem:[#allocation9 + $0x68] sm:$0xff]
          %v2617 = vld [vmem:[#allocation9 + $0x70] sm:$0xff]
          %v2618 = vld [vmem:[#allocation9 + $0x78] sm:$0xff]
          %v2619 = vld [vmem:[#allocation9 + $0x80] sm:$0xff]
          %v2620 = vld [vmem:[#allocation9 + $0x88] sm:$0xff]
          %v2621 = vld [vmem:[#allocation9 + $0x90] sm:$0xff]
          %v2622 = vld [vmem:[#allocation9 + $0x98] sm:$0xff]
          %v2623 = vld [vmem:[#allocation9 + $0xa0] sm:$0xff]
          %v2624 = vld [vmem:[#allocation9 + $0xa8] sm:$0xff]
          %v2625 = vld [vmem:[#allocation9 + $0xb0] sm:$0xff]
          %v2626 = vld [vmem:[#allocation9 + $0xb8] sm:$0xff]
          %v2627 = vld [vmem:[#allocation9 + $0xc0] sm:$0xff]
          %v2628 = vld [vmem:[#allocation9 + $0xc8] sm:$0xff]
          %v2629 = vld [vmem:[#allocation9 + $0xd0] sm:$0xff]
          %v2630 = vld [vmem:[#allocation9 + $0xd8] sm:$0xff]
          %v2631 = vld [vmem:[#allocation9 + $0xe0] sm:$0xff]
          %v2632 = vld [vmem:[#allocation9 + $0xe8] sm:$0xff]
          %v2633 = vld [vmem:[#allocation9 + $0xf0] sm:$0xff]
          %v2634 = vld [vmem:[#allocation9 + $0xf8] sm:$0xff]
          %v2635 = vld [vmem:[#allocation9 + $0x100] sm:$0xff]
          %v2636 = vld [vmem:[#allocation9 + $0x108] sm:$0xff]
          %v2637 = vld [vmem:[#allocation9 + $0x110] sm:$0xff]
          %v2638 = vld [vmem:[#allocation9 + $0x118] sm:$0xff]
          %v2639 = vld [vmem:[#allocation9 + $0x120] sm:$0xff]
          %v2640 = vld [vmem:[#allocation9 + $0x128] sm:$0xff]
          %v2641 = vld [vmem:[#allocation9 + $0x130] sm:$0xff]
          %v2642 = vld [vmem:[#allocation9 + $0x138] sm:$0xff]
          %v2643 = vld [vmem:[#allocation9 + $0x140] sm:$0xff]
          %v2644 = vld [vmem:[#allocation9 + $0x148] sm:$0xff]
          %v2645 = vld [vmem:[#allocation9 + $0x150] sm:$0xff]
          %v2646 = vld [vmem:[#allocation9 + $0x158] sm:$0xff]
          %v2647 = vld [vmem:[#allocation9 + $0x160] sm:$0xff]
          %v2648 = vld [vmem:[#allocation9 + $0x168] sm:$0xff]
          %v2649 = vld [vmem:[#allocation9 + $0x170] sm:$0xff]
          %v2650 = vld [vmem:[#allocation9 + $0x178] sm:$0xff]
          %v2651 = vld [vmem:[#allocation9 + $0x180] sm:$0xff]
          %v2652 = vld [vmem:[#allocation9 + $0x188] sm:$0xff]
          %v2653 = vld [vmem:[#allocation9 + $0x190] sm:$0xff]
          %v2654 = vld [vmem:[#allocation9 + $0x198] sm:$0xff]
          %v2655 = vld [vmem:[#allocation9 + $0x1a0] sm:$0xff]
          %v2656 = vld [vmem:[#allocation9 + $0x1a8] sm:$0xff]
          %v2657 = vld [vmem:[#allocation9 + $0x1b0] sm:$0xff]
          %v2658 = vld [vmem:[#allocation9 + $0x1b8] sm:$0xff]
          %v2659 = vld [vmem:[#allocation9 + $0x1c0] sm:$0xff]
          %v2660 = vld [vmem:[#allocation9 + $0x1c8] sm:$0xff]
          %v2661 = vld [vmem:[#allocation9 + $0x1d0] sm:$0xff]
          %v2662 = vld [vmem:[#allocation9 + $0x1d8] sm:$0xff]
          %v2663 = vld [vmem:[#allocation9 + $0x1e0] sm:$0xff]
          %v2664 = vld [vmem:[#allocation9 + $0x1e8] sm:$0xff]
          %v2665 = vld [vmem:[#allocation9 + $0x1f0] sm:$0xff]
          %v2666 = vld [vmem:[#allocation9 + $0x1f8] sm:$0xff]
          %v2667 = vld [vmem:[#allocation11] sm:$0x3]
          %v2669 = vperm.slane %v2667, 0
          %v2670 = vperm.slane %v2667, 1
          %v2737 = vunpack.c.l.b16 %v2603
          %v2738 = vunpack.c.h.b16 %v2603
          %v2739 = vunpack.c.l.b16 %v2604
          %v2740 = vunpack.c.h.b16 %v2604
          %v2741 = vunpack.c.l.b16 %v2605
          %v2742 = vunpack.c.h.b16 %v2605
          %v2743 = vunpack.c.l.b16 %v2606
          %v2744 = vunpack.c.h.b16 %v2606
          %v2745 = vunpack.c.l.b16 %v2607
          %v2746 = vunpack.c.h.b16 %v2607
          %v2747 = vunpack.c.l.b16 %v2608
          %v2748 = vunpack.c.h.b16 %v2608
          %v2749 = vunpack.c.l.b16 %v2609
          %v2750 = vunpack.c.h.b16 %v2609
          %v2751 = vunpack.c.l.b16 %v2610
          %v2752 = vunpack.c.h.b16 %v2610
          %v2753 = vunpack.c.l.b16 %v2611
          %v2754 = vunpack.c.h.b16 %v2611
          %v2755 = vunpack.c.l.b16 %v2612
          %v2756 = vunpack.c.h.b16 %v2612
          %v2757 = vunpack.c.l.b16 %v2613
          %v2758 = vunpack.c.h.b16 %v2613
          %v2759 = vunpack.c.l.b16 %v2614
          %v2760 = vunpack.c.h.b16 %v2614
          %v2761 = vunpack.c.l.b16 %v2615
          %v2762 = vunpack.c.h.b16 %v2615
          %v2763 = vunpack.c.l.b16 %v2616
          %v2764 = vunpack.c.h.b16 %v2616
          %v2765 = vunpack.c.l.b16 %v2617
          %v2766 = vunpack.c.h.b16 %v2617
          %v2767 = vunpack.c.l.b16 %v2618
          %v2768 = vunpack.c.h.b16 %v2618
          %v2769 = vunpack.c.l.b16 %v2619
          %v2770 = vunpack.c.h.b16 %v2619
          %v2771 = vunpack.c.l.b16 %v2620
          %v2772 = vunpack.c.h.b16 %v2620
          %v2773 = vunpack.c.l.b16 %v2621
          %v2774 = vunpack.c.h.b16 %v2621
          %v2775 = vunpack.c.l.b16 %v2622
          %v2776 = vunpack.c.h.b16 %v2622
          %v2777 = vunpack.c.l.b16 %v2623
          %v2778 = vunpack.c.h.b16 %v2623
          %v2779 = vunpack.c.l.b16 %v2624
          %v2780 = vunpack.c.h.b16 %v2624
          %v2781 = vunpack.c.l.b16 %v2625
          %v2782 = vunpack.c.h.b16 %v2625
          %v2783 = vunpack.c.l.b16 %v2626
          %v2784 = vunpack.c.h.b16 %v2626
          %v2785 = vunpack.c.l.b16 %v2627
          %v2786 = vunpack.c.h.b16 %v2627
          %v2787 = vunpack.c.l.b16 %v2628
          %v2788 = vunpack.c.h.b16 %v2628
          %v2789 = vunpack.c.l.b16 %v2629
          %v2790 = vunpack.c.h.b16 %v2629
          %v2791 = vunpack.c.l.b16 %v2630
          %v2792 = vunpack.c.h.b16 %v2630
          %v2793 = vunpack.c.l.b16 %v2631
          %v2794 = vunpack.c.h.b16 %v2631
          %v2795 = vunpack.c.l.b16 %v2632
          %v2796 = vunpack.c.h.b16 %v2632
          %v2797 = vunpack.c.l.b16 %v2633
          %v2798 = vunpack.c.h.b16 %v2633
          %v2799 = vunpack.c.l.b16 %v2634
          %v2800 = vunpack.c.h.b16 %v2634
          %v2801 = vunpack.c.l.b16 %v2635
          %v2802 = vunpack.c.h.b16 %v2635
          %v2803 = vunpack.c.l.b16 %v2636
          %v2804 = vunpack.c.h.b16 %v2636
          %v2805 = vunpack.c.l.b16 %v2637
          %v2806 = vunpack.c.h.b16 %v2637
          %v2807 = vunpack.c.l.b16 %v2638
          %v2808 = vunpack.c.h.b16 %v2638
          %v2809 = vunpack.c.l.b16 %v2639
          %v2810 = vunpack.c.h.b16 %v2639
          %v2811 = vunpack.c.l.b16 %v2640
          %v2812 = vunpack.c.h.b16 %v2640
          %v2813 = vunpack.c.l.b16 %v2641
          %v2814 = vunpack.c.h.b16 %v2641
          %v2815 = vunpack.c.l.b16 %v2642
          %v2816 = vunpack.c.h.b16 %v2642
          %v2817 = vunpack.c.l.b16 %v2643
          %v2818 = vunpack.c.h.b16 %v2643
          %v2819 = vunpack.c.l.b16 %v2644
          %v2820 = vunpack.c.h.b16 %v2644
          %v2821 = vunpack.c.l.b16 %v2645
          %v2822 = vunpack.c.h.b16 %v2645
          %v2823 = vunpack.c.l.b16 %v2646
          %v2824 = vunpack.c.h.b16 %v2646
          %v2825 = vunpack.c.l.b16 %v2647
          %v2826 = vunpack.c.h.b16 %v2647
          %v2827 = vunpack.c.l.b16 %v2648
          %v2828 = vunpack.c.h.b16 %v2648
          %v2829 = vunpack.c.l.b16 %v2649
          %v2830 = vunpack.c.h.b16 %v2649
          %v2831 = vunpack.c.l.b16 %v2650
          %v2832 = vunpack.c.h.b16 %v2650
          %v2833 = vunpack.c.l.b16 %v2651
          %v2834 = vunpack.c.h.b16 %v2651
          %v2835 = vunpack.c.l.b16 %v2652
          %v2836 = vunpack.c.h.b16 %v2652
          %v2837 = vunpack.c.l.b16 %v2653
          %v2838 = vunpack.c.h.b16 %v2653
          %v2839 = vunpack.c.l.b16 %v2654
          %v2840 = vunpack.c.h.b16 %v2654
          %v2841 = vunpack.c.l.b16 %v2655
          %v2842 = vunpack.c.h.b16 %v2655
          %v2843 = vunpack.c.l.b16 %v2656
          %v2844 = vunpack.c.h.b16 %v2656
          %v2845 = vunpack.c.l.b16 %v2657
          %v2846 = vunpack.c.h.b16 %v2657
          %v2847 = vunpack.c.l.b16 %v2658
          %v2848 = vunpack.c.h.b16 %v2658
          %v2849 = vunpack.c.l.b16 %v2659
          %v2850 = vunpack.c.h.b16 %v2659
          %v2851 = vunpack.c.l.b16 %v2660
          %v2852 = vunpack.c.h.b16 %v2660
          %v2853 = vunpack.c.l.b16 %v2661
          %v2854 = vunpack.c.h.b16 %v2661
          %v2855 = vunpack.c.l.b16 %v2662
          %v2856 = vunpack.c.h.b16 %v2662
          %v2857 = vunpack.c.l.b16 %v2663
          %v2858 = vunpack.c.h.b16 %v2663
          %v2859 = vunpack.c.l.b16 %v2664
          %v2860 = vunpack.c.h.b16 %v2664
          %v2861 = vunpack.c.l.b16 %v2665
          %v2862 = vunpack.c.h.b16 %v2665
          %v2863 = vunpack.c.l.b16 %v2666
          %v2864 = vunpack.c.h.b16 %v2666
          %v2865 = vpack.c.b16 %v2739, %v2737
          %v2866 = vpack.c.b16 %v2740, %v2738
          %v2867 = vpack.c.b16 %v2743, %v2741
          %v2868 = vpack.c.b16 %v2744, %v2742
          %v2869 = vpack.c.b16 %v2747, %v2745
          %v2870 = vpack.c.b16 %v2748, %v2746
          %v2871 = vpack.c.b16 %v2751, %v2749
          %v2872 = vpack.c.b16 %v2752, %v2750
          %v2873 = vpack.c.b16 %v2755, %v2753
          %v2874 = vpack.c.b16 %v2756, %v2754
          %v2875 = vpack.c.b16 %v2759, %v2757
          %v2876 = vpack.c.b16 %v2760, %v2758
          %v2877 = vpack.c.b16 %v2763, %v2761
          %v2878 = vpack.c.b16 %v2764, %v2762
          %v2879 = vpack.c.b16 %v2767, %v2765
          %v2880 = vpack.c.b16 %v2768, %v2766
          %v2881 = vpack.c.b16 %v2771, %v2769
          %v2882 = vpack.c.b16 %v2772, %v2770
          %v2883 = vpack.c.b16 %v2775, %v2773
          %v2884 = vpack.c.b16 %v2776, %v2774
          %v2885 = vpack.c.b16 %v2779, %v2777
          %v2886 = vpack.c.b16 %v2780, %v2778
          %v2887 = vpack.c.b16 %v2783, %v2781
          %v2888 = vpack.c.b16 %v2784, %v2782
          %v2889 = vpack.c.b16 %v2787, %v2785
          %v2890 = vpack.c.b16 %v2788, %v2786
          %v2891 = vpack.c.b16 %v2791, %v2789
          %v2892 = vpack.c.b16 %v2792, %v2790
          %v2893 = vpack.c.b16 %v2795, %v2793
          %v2894 = vpack.c.b16 %v2796, %v2794
          %v2895 = vpack.c.b16 %v2799, %v2797
          %v2896 = vpack.c.b16 %v2800, %v2798
          %v2897 = vpack.c.b16 %v2803, %v2801
          %v2898 = vpack.c.b16 %v2804, %v2802
          %v2899 = vpack.c.b16 %v2807, %v2805
          %v2900 = vpack.c.b16 %v2808, %v2806
          %v2901 = vpack.c.b16 %v2811, %v2809
          %v2902 = vpack.c.b16 %v2812, %v2810
          %v2903 = vpack.c.b16 %v2815, %v2813
          %v2904 = vpack.c.b16 %v2816, %v2814
          %v2905 = vpack.c.b16 %v2819, %v2817
          %v2906 = vpack.c.b16 %v2820, %v2818
          %v2907 = vpack.c.b16 %v2823, %v2821
          %v2908 = vpack.c.b16 %v2824, %v2822
          %v2909 = vpack.c.b16 %v2827, %v2825
          %v2910 = vpack.c.b16 %v2828, %v2826
          %v2911 = vpack.c.b16 %v2831, %v2829
          %v2912 = vpack.c.b16 %v2832, %v2830
          %v2913 = vpack.c.b16 %v2835, %v2833
          %v2914 = vpack.c.b16 %v2836, %v2834
          %v2915 = vpack.c.b16 %v2839, %v2837
          %v2916 = vpack.c.b16 %v2840, %v2838
          %v2917 = vpack.c.b16 %v2843, %v2841
          %v2918 = vpack.c.b16 %v2844, %v2842
          %v2919 = vpack.c.b16 %v2847, %v2845
          %v2920 = vpack.c.b16 %v2848, %v2846
          %v2921 = vpack.c.b16 %v2851, %v2849
          %v2922 = vpack.c.b16 %v2852, %v2850
          %v2923 = vpack.c.b16 %v2855, %v2853
          %v2924 = vpack.c.b16 %v2856, %v2854
          %v2925 = vpack.c.b16 %v2859, %v2857
          %v2926 = vpack.c.b16 %v2860, %v2858
          %v2927 = vpack.c.b16 %v2863, %v2861
          %v2928 = vpack.c.b16 %v2864, %v2862
          %2993 = vmatpush.bf16.msra.mxu0 %v2879
          %2994 = vmatpush.bf16.msra.mxu0 %v2877
          %2995 = vmatpush.bf16.msra.mxu0 %v2875
          %2996 = vmatpush.bf16.msra.mxu0 %v2873
          %2997 = vmatpush.bf16.msra.mxu0 %v2871
          %2998 = vmatpush.bf16.msra.mxu0 %v2869
          %2999 = vmatpush.bf16.msra.mxu0 %v2867
          %3000 = vmatpush.bf16.msra.mxu0 %v2865
          %3001 = vmatmul.bf16.gmra.mxu0 %v2599
          %v3002 = vpop.f32.mrf.mxu0
          %v3003 = vadd.f32 %v2669, %v3002
          %v3004 = vpop.f32.mrf.mxu0
          %v3005 = vadd.f32 %v2669, %v3004
          %3006 = vdwg.mxu0
          %3007 = vmatpush.bf16.msra.mxu0 %v2895
          %3008 = vmatpush.bf16.msra.mxu0 %v2893
          %3009 = vmatpush.bf16.msra.mxu0 %v2891
          %3010 = vmatpush.bf16.msra.mxu0 %v2889
          %3011 = vmatpush.bf16.msra.mxu0 %v2887
          %3012 = vmatpush.bf16.msra.mxu0 %v2885
          %3013 = vmatpush.bf16.msra.mxu0 %v2883
          %3014 = vmatpush.bf16.msra.mxu0 %v2881
          %3015 = vmatmul.bf16.gmra.mxu0 %v2600
          %v3016 = vpop.f32.mrf.mxu0
          %v3017 = vadd.f32 %v3003, %v3016
          %v3018 = vpop.f32.mrf.mxu0
          %v3019 = vadd.f32 %v3005, %v3018
          %3020 = vdwg.mxu0
          %3021 = vmatpush.bf16.msra.mxu0 %v2911
          %3022 = vmatpush.bf16.msra.mxu0 %v2909
          %3023 = vmatpush.bf16.msra.mxu0 %v2907
          %3024 = vmatpush.bf16.msra.mxu0 %v2905
          %3025 = vmatpush.bf16.msra.mxu0 %v2903
          %3026 = vmatpush.bf16.msra.mxu0 %v2901
          %3027 = vmatpush.bf16.msra.mxu0 %v2899
          %3028 = vmatpush.bf16.msra.mxu0 %v2897
          %3029 = vmatmul.bf16.gmra.mxu0 %v2601
          %v3030 = vpop.f32.mrf.mxu0
          %v3031 = vadd.f32 %v3017, %v3030
          %v3032 = vpop.f32.mrf.mxu0
          %v3033 = vadd.f32 %v3019, %v3032
          %3034 = vdwg.mxu0
          %3035 = vmatpush.bf16.msra.mxu0 %v2927
          %3036 = vmatpush.bf16.msra.mxu0 %v2925
          %3037 = vmatpush.bf16.msra.mxu0 %v2923
          %3038 = vmatpush.bf16.msra.mxu0 %v2921
          %3039 = vmatpush.bf16.msra.mxu0 %v2919
          %3040 = vmatpush.bf16.msra.mxu0 %v2917
          %3041 = vmatpush.bf16.msra.mxu0 %v2915
          %3042 = vmatpush.bf16.msra.mxu0 %v2913
          %3043 = vmatmul.bf16.gmra.mxu0 %v2602
          %v3044 = vpop.f32.mrf.mxu0
          %v3045 = vadd.f32 %v3031, %v3044
          %v3046 = vpop.f32.mrf.mxu0
          %v3047 = vadd.f32 %v3033, %v3046
          %3048 = vdwg.mxu0
          %3049 = vmatpush.bf16.msra.mxu0 %v2880
          %3050 = vmatpush.bf16.msra.mxu0 %v2878
          %3051 = vmatpush.bf16.msra.mxu0 %v2876
          %3052 = vmatpush.bf16.msra.mxu0 %v2874
          %3053 = vmatpush.bf16.msra.mxu0 %v2872
          %3054 = vmatpush.bf16.msra.mxu0 %v2870
          %3055 = vmatpush.bf16.msra.mxu0 %v2868
          %3056 = vmatpush.bf16.msra.mxu0 %v2866
          %3057 = vmatmul.bf16.gmra.mxu0 %v2599
          %v3058 = vpop.f32.mrf.mxu0
          %v3059 = vadd.f32 %v2670, %v3058
          %v3060 = vpop.f32.mrf.mxu0
          %v3061 = vadd.f32 %v2670, %v3060
          %3062 = vdwg.mxu0
          %3063 = vmatpush.bf16.msra.mxu0 %v2896
          %3064 = vmatpush.bf16.msra.mxu0 %v2894
          %3065 = vmatpush.bf16.msra.mxu0 %v2892
          %3066 = vmatpush.bf16.msra.mxu0 %v2890
          %3067 = vmatpush.bf16.msra.mxu0 %v2888
          %3068 = vmatpush.bf16.msra.mxu0 %v2886
          %3069 = vmatpush.bf16.msra.mxu0 %v2884
          %3070 = vmatpush.bf16.msra.mxu0 %v2882
          %3071 = vmatmul.bf16.gmra.mxu0 %v2600
          %v3072 = vpop.f32.mrf.mxu0
          %v3073 = vadd.f32 %v3059, %v3072
          %v3074 = vpop.f32.mrf.mxu0
          %v3075 = vadd.f32 %v3061, %v3074
          %3076 = vdwg.mxu0
          %3077 = vmatpush.bf16.msra.mxu0 %v2912
          %3078 = vmatpush.bf16.msra.mxu0 %v2910
          %3079 = vmatpush.bf16.msra.mxu0 %v2908
          %3080 = vmatpush.bf16.msra.mxu0 %v2906
          %3081 = vmatpush.bf16.msra.mxu0 %v2904
          %3082 = vmatpush.bf16.msra.mxu0 %v2902
          %3083 = vmatpush.bf16.msra.mxu0 %v2900
          %3084 = vmatpush.bf16.msra.mxu0 %v2898
          %3085 = vmatmul.bf16.gmra.mxu0 %v2601
          %v3086 = vpop.f32.mrf.mxu0
          %v3087 = vadd.f32 %v3073, %v3086
          %v3088 = vpop.f32.mrf.mxu0
          %v3089 = vadd.f32 %v3075, %v3088
          %3090 = vdwg.mxu0
          %3091 = vmatpush.bf16.msra.mxu0 %v2928
          %3092 = vmatpush.bf16.msra.mxu0 %v2926
          %3093 = vmatpush.bf16.msra.mxu0 %v2924
          %3094 = vmatpush.bf16.msra.mxu0 %v2922
          %3095 = vmatpush.bf16.msra.mxu0 %v2920
          %3096 = vmatpush.bf16.msra.mxu0 %v2918
          %3097 = vmatpush.bf16.msra.mxu0 %v2916
          %3098 = vmatpush.bf16.msra.mxu0 %v2914
          %3099 = vmatmul.bf16.gmra.mxu0 %v2602
          %v3100 = vpop.f32.mrf.mxu0
          %v3101 = vadd.f32 %v3087, %v3100
          %v3102 = vpop.f32.mrf.mxu0
          %v3103 = vadd.f32 %v3089, %v3102
          %3104 = vdwg.mxu0
          %v3105 = vmax.f32 %v3045, 0.0
          %v3106 = vmax.f32 %v3101, 0.0
          %v3107 = vmax.f32 %v3047, 0.0
          %v3108 = vmax.f32 %v3103, 0.0
          %v3109 = vpack.c.bf16 %v3107, %v3105
          %v3110 = vpack.c.bf16 %v3108, %v3106
          %v3111 = vld [vmem:[#allocation12] sm:$0xf]
          %v3112 = vld [vmem:[#allocation12 + $0x4] sm:$0xf]
          %v3113 = vld [vmem:[#allocation12 + $0x8] sm:$0xf]
          %v3114 = vld [vmem:[#allocation12 + $0xc] sm:$0xf]
          %v3115 = vld [vmem:[#allocation12 + $0x10] sm:$0xf]
          %v3116 = vld [vmem:[#allocation12 + $0x14] sm:$0xf]
          %v3117 = vld [vmem:[#allocation12 + $0x18] sm:$0xf]
          %v3118 = vld [vmem:[#allocation12 + $0x1c] sm:$0xf]
          %v3119 = vld [vmem:[#allocation12 + $0x20] sm:$0xf]
          %v3120 = vld [vmem:[#allocation12 + $0x24] sm:$0xf]
          %v3121 = vld [vmem:[#allocation12 + $0x28] sm:$0xf]
          %v3122 = vld [vmem:[#allocation12 + $0x2c] sm:$0xf]
          %v3123 = vld [vmem:[#allocation12 + $0x30] sm:$0xf]
          %v3124 = vld [vmem:[#allocation12 + $0x34] sm:$0xf]
          %v3125 = vld [vmem:[#allocation12 + $0x38] sm:$0xf]
          %v3126 = vld [vmem:[#allocation12 + $0x3c] sm:$0xf]
          %v3127 = vld [vmem:[#allocation12 + $0x40] sm:$0xf]
          %v3128 = vld [vmem:[#allocation12 + $0x44] sm:$0xf]
          %v3129 = vld [vmem:[#allocation12 + $0x48] sm:$0xf]
          %v3130 = vld [vmem:[#allocation12 + $0x4c] sm:$0xf]
          %v3131 = vld [vmem:[#allocation12 + $0x50] sm:$0xf]
          %v3132 = vld [vmem:[#allocation12 + $0x54] sm:$0xf]
          %v3133 = vld [vmem:[#allocation12 + $0x58] sm:$0xf]
          %v3134 = vld [vmem:[#allocation12 + $0x5c] sm:$0xf]
          %v3135 = vld [vmem:[#allocation12 + $0x60] sm:$0xf]
          %v3136 = vld [vmem:[#allocation12 + $0x64] sm:$0xf]
          %v3137 = vld [vmem:[#allocation12 + $0x68] sm:$0xf]
          %v3138 = vld [vmem:[#allocation12 + $0x6c] sm:$0xf]
          %v3139 = vld [vmem:[#allocation12 + $0x70] sm:$0xf]
          %v3140 = vld [vmem:[#allocation12 + $0x74] sm:$0xf]
          %v3141 = vld [vmem:[#allocation12 + $0x78] sm:$0xf]
          %v3142 = vld [vmem:[#allocation12 + $0x7c] sm:$0xf]
          %v3143 = vld [vmem:[#allocation14] sm:$0x1]
          %v3145 = vperm.slane %v3143, 0
          %v3179 = vunpack.c.l.b16 %v3111
          %v3180 = vunpack.c.l.b16 %v3112
          %v3181 = vunpack.c.l.b16 %v3113
          %v3182 = vunpack.c.l.b16 %v3114
          %v3183 = vunpack.c.l.b16 %v3115
          %v3184 = vunpack.c.l.b16 %v3116
          %v3185 = vunpack.c.l.b16 %v3117
          %v3186 = vunpack.c.l.b16 %v3118
          %v3187 = vunpack.c.l.b16 %v3119
          %v3188 = vunpack.c.l.b16 %v3120
          %v3189 = vunpack.c.l.b16 %v3121
          %v3190 = vunpack.c.l.b16 %v3122
          %v3191 = vunpack.c.l.b16 %v3123
          %v3192 = vunpack.c.l.b16 %v3124
          %v3193 = vunpack.c.l.b16 %v3125
          %v3194 = vunpack.c.l.b16 %v3126
          %v3195 = vunpack.c.l.b16 %v3127
          %v3196 = vunpack.c.l.b16 %v3128
          %v3197 = vunpack.c.l.b16 %v3129
          %v3198 = vunpack.c.l.b16 %v3130
          %v3199 = vunpack.c.l.b16 %v3131
          %v3200 = vunpack.c.l.b16 %v3132
          %v3201 = vunpack.c.l.b16 %v3133
          %v3202 = vunpack.c.l.b16 %v3134
          %v3203 = vunpack.c.l.b16 %v3135
          %v3204 = vunpack.c.l.b16 %v3136
          %v3205 = vunpack.c.l.b16 %v3137
          %v3206 = vunpack.c.l.b16 %v3138
          %v3207 = vunpack.c.l.b16 %v3139
          %v3208 = vunpack.c.l.b16 %v3140
          %v3209 = vunpack.c.l.b16 %v3141
          %v3210 = vunpack.c.l.b16 %v3142
          %v3211 = vpack.c.b16 %v3180, %v3179
          %v3212 = vpack.c.b16 %v3182, %v3181
          %v3213 = vpack.c.b16 %v3184, %v3183
          %v3214 = vpack.c.b16 %v3186, %v3185
          %v3215 = vpack.c.b16 %v3188, %v3187
          %v3216 = vpack.c.b16 %v3190, %v3189
          %v3217 = vpack.c.b16 %v3192, %v3191
          %v3218 = vpack.c.b16 %v3194, %v3193
          %v3219 = vpack.c.b16 %v3196, %v3195
          %v3220 = vpack.c.b16 %v3198, %v3197
          %v3221 = vpack.c.b16 %v3200, %v3199
          %v3222 = vpack.c.b16 %v3202, %v3201
          %v3223 = vpack.c.b16 %v3204, %v3203
          %v3224 = vpack.c.b16 %v3206, %v3205
          %v3225 = vpack.c.b16 %v3208, %v3207
          %v3226 = vpack.c.b16 %v3210, %v3209
          %3243 = vmatpush.bf16.msra.mxu0 %v3218
          %3244 = vmatpush.bf16.msra.mxu0 %v3217
          %3245 = vmatpush.bf16.msra.mxu0 %v3216
          %3246 = vmatpush.bf16.msra.mxu0 %v3215
          %3247 = vmatpush.bf16.msra.mxu0 %v3214
          %3248 = vmatpush.bf16.msra.mxu0 %v3213
          %3249 = vmatpush.bf16.msra.mxu0 %v3212
          %3250 = vmatpush.bf16.msra.mxu0 %v3211
          %3251 = vmatmul.bf16.gmra.mxu0 %v3109
          %v3252 = vpop.f32.mrf.mxu0
          %v3253 = vadd.f32 %v3145, %v3252
          %v3254 = vpop.f32.mrf.mxu0
          %v3255 = vadd.f32 %v3145, %v3254
          %3256 = vdwg.mxu0
          %3257 = vmatpush.bf16.msra.mxu0 %v3226
          %3258 = vmatpush.bf16.msra.mxu0 %v3225
          %3259 = vmatpush.bf16.msra.mxu0 %v3224
          %3260 = vmatpush.bf16.msra.mxu0 %v3223
          %3261 = vmatpush.bf16.msra.mxu0 %v3222
          %3262 = vmatpush.bf16.msra.mxu0 %v3221
          %3263 = vmatpush.bf16.msra.mxu0 %v3220
          %3264 = vmatpush.bf16.msra.mxu0 %v3219
          %3265 = vmatmul.bf16.gmra.mxu0 %v3110
          %v3266 = vpop.f32.mrf.mxu0
          %v3267 = vadd.f32 %v3253, %v3266
          %v3268 = vpop.f32.mrf.mxu0
          %v3269 = vadd.f32 %v3255, %v3268
          %3270 = vdwg.mxu0
          %v3271 = vmax.f32 %v3267, 0.0
          %v3272 = vmax.f32 %v3269, 0.0
          %v3273 = vpack.c.bf16 %v3272, %v3271
          %v3274 = vld [vmem:[#allocation15] sm:$0xf]
          %v3275 = vld [vmem:[#allocation15 + $0x4] sm:$0xf]
          %v3276 = vld [vmem:[#allocation15 + $0x8] sm:$0xf]
          %v3277 = vld [vmem:[#allocation15 + $0xc] sm:$0xf]
          %v3278 = vld [vmem:[#allocation15 + $0x10] sm:$0xf]
          %v3279 = vld [vmem:[#allocation15 + $0x14] sm:$0xf]
          %v3280 = vld [vmem:[#allocation15 + $0x18] sm:$0xf]
          %v3281 = vld [vmem:[#allocation15 + $0x1c] sm:$0xf]
          %v3282 = vld [vmem:[#allocation15 + $0x20] sm:$0xf]
          %v3283 = vld [vmem:[#allocation15 + $0x24] sm:$0xf]
          %v3284 = vld [vmem:[#allocation15 + $0x28] sm:$0xf]
          %v3285 = vld [vmem:[#allocation15 + $0x2c] sm:$0xf]
          %v3286 = vld [vmem:[#allocation15 + $0x30] sm:$0xf]
          %v3287 = vld [vmem:[#allocation15 + $0x34] sm:$0xf]
          %v3288 = vld [vmem:[#allocation15 + $0x38] sm:$0xf]
          %v3289 = vld [vmem:[#allocation15 + $0x3c] sm:$0xf]
          %v3290 = vld [vmem:[#allocation17] sm:$0x1]
          %v3292 = vperm.slane %v3290, 0
          %v3310 = vunpack.c.l.b16 %v3274
          %v3311 = vunpack.c.l.b16 %v3275
          %v3312 = vunpack.c.l.b16 %v3276
          %v3313 = vunpack.c.l.b16 %v3277
          %v3314 = vunpack.c.l.b16 %v3278
          %v3315 = vunpack.c.l.b16 %v3279
          %v3316 = vunpack.c.l.b16 %v3280
          %v3317 = vunpack.c.l.b16 %v3281
          %v3318 = vunpack.c.l.b16 %v3282
          %v3319 = vunpack.c.l.b16 %v3283
          %v3320 = vunpack.c.l.b16 %v3284
          %v3321 = vunpack.c.l.b16 %v3285
          %v3322 = vunpack.c.l.b16 %v3286
          %v3323 = vunpack.c.l.b16 %v3287
          %v3324 = vunpack.c.l.b16 %v3288
          %v3325 = vunpack.c.l.b16 %v3289
          %v3326 = vpack.c.b16 %v3311, %v3310
          %v3327 = vpack.c.b16 %v3313, %v3312
          %v3328 = vpack.c.b16 %v3315, %v3314
          %v3329 = vpack.c.b16 %v3317, %v3316
          %v3330 = vpack.c.b16 %v3319, %v3318
          %v3331 = vpack.c.b16 %v3321, %v3320
          %v3332 = vpack.c.b16 %v3323, %v3322
          %v3333 = vpack.c.b16 %v3325, %v3324
          %3342 = vmatpush.bf16.msra.mxu0 %v3333
          %3343 = vmatpush.bf16.msra.mxu0 %v3332
          %3344 = vmatpush.bf16.msra.mxu0 %v3331
          %3345 = vmatpush.bf16.msra.mxu0 %v3330
          %3346 = vmatpush.bf16.msra.mxu0 %v3329
          %3347 = vmatpush.bf16.msra.mxu0 %v3328
          %3348 = vmatpush.bf16.msra.mxu0 %v3327
          %3349 = vmatpush.bf16.msra.mxu0 %v3326
          %3350 = vmatmul.bf16.gmra.mxu0 %v3273
          %v3351 = vpop.f32.mrf.mxu0
          %v3352 = vadd.f32 %v3292, %v3351
          %v3353 = vpop.f32.mrf.mxu0
          %v3354 = vadd.f32 %v3292, %v3353
          %3355 = vdwg.mxu0
          %3356 = vst [vmem:[#allocation18] sm:$0xff] %v3352
          %3357 = vst [vmem:[#allocation18 + $0x8] sm:$0xff] %v3354
        $region100: #{tpu_custom_call.1} parent=55 // pred_fallthru
          _
        // Predicated region
        $region101: #{tpu_custom_call.1} parent=55 // pred_check
          %p3358 = pneg %p261
        $region102: #{tpu_custom_call.1} parent=55 // pred_check_branch
          %3360 = sbr.rel (%p3358) target = $region104
        $region103: #{tpu_custom_call.1} parent=55 // pred_region
          %s3361 = smul.u32 2, %s34
          %3363 = vsyncadd [#allocation5], 0
          %s3364 = smul.addr %s3361, 8
          %s3365 = scalar_lea.hbm %s9, %s3364
          %s3366 = sshll.u32 [#allocation18], 4
          %s3367 = int_to_ptr.vmem [resolvable:$true] %s3366
          %s3368 = sshll.u32 %s3365, 4
          %s3369 = int_to_ptr.hbm [resolvable:$true] %s3368
          %3374 = dma.vmem_to_hbm [thread:$0]  %s3367, 256, %s3369, [#allocation5], 128, 128, 8
        $region104: #{tpu_custom_call.1} parent=55 // pred_fallthru
          _
        // Predicated region
        $region105: #{tpu_custom_call.1} parent=55 // pred_check
          %p3375 = pneg %p261
        $region106: #{tpu_custom_call.1} parent=55 // pred_check_branch
          %3377 = sbr.rel (%p3375) target = $region108
        $region107: #{tpu_custom_call.1} parent=55 // pred_region
          %3379 = dma.done [#allocation5], 256
        $region108: #{tpu_custom_call.1} parent=55 // pred_fallthru
          _
      $region56: #{tpu_custom_call.1} parent=5 // pred_fallthru
        _
      %p3380 = scmp.le.s32.totalorder 2, %s25
      // Predicated region
      $region109: #{tpu_custom_call.1} parent=5 // pred_check
        %p3381 = pneg %p3380
      $region110: #{tpu_custom_call.1} parent=5 // pred_check_branch
        %3383 = sbr.rel (%p3381) target = $region112
      $region111: #{tpu_custom_call.1} parent=5 // pred_region
        %s3384 = ssub.s32 %s25, 2
      $region112: #{tpu_custom_call.1} parent=5 // pred_fallthru
        _
    $region6: #{tpu_custom_call.1} parent=1 // loop_footer
      %s29 = sadd.s32 1, %s25
    $region7: #{tpu_custom_call.1} parent=1 // loop_footer_branch
      %24 = sbr.rel target = $region3
    $region8: #{tpu_custom_call.1} parent=1 // loop_exit
      _
    %3385 = vsyncpa [#allocation4], 1
    %s3386 = scalar_lea.sflag [#allocation4], 1
    %3387 = vsyncpa %s3386, 1
    %3388 = vsyncpa [#allocation7], 1
    %s3389 = scalar_lea.sflag [#allocation7], 1
    %3390 = vsyncpa %s3389, 1
    %3391 = vsyncpa [#allocation10], 1
    %3392 = vsyncpa [#allocation13], 1
    %3393 = vsyncpa [#allocation16], 1
    %3394 = vsyncpa [#allocation5], 1
    %s3395 = scalar_lea.sflag [#allocation5], 1
    %3396 = vsyncpa %s3395, 1

// kernel: tpu_custom_call.1
$region0: #{tpu_custom_call.1}
  #allocation0 [shape = 'u32[]', space=smem, size = 0x4, offset = 0x4, fixed_abs, tag = 'smem constant byte address 0x4 - core index']
  #allocation1 [shape = 'u32[72,128]{1,0:T(1,128)}', space=vmem, size = 0x9000, scoped, tag = 'internal scratch']
  #allocation2 [shape = 'f32[16,512]{1,0:T(8,128)}', space=vmem, size = 0x8000, scoped, tag = 'scratch operand']
  %s0 = inlined_call_operand.hbm [shape: f32[16,3072], index: 0, kind: input, shape index: {}]
  %s1 = inlined_call_operand.hbm [shape: bf16[3072,512], index: 1, kind: input, shape index: {}]
  %s2 = inlined_call_operand.hbm [shape: f32[1,512], index: 2, kind: input, shape index: {}]
  %s3 = inlined_call_operand.hbm [shape: bf16[512,256], index: 3, kind: input, shape index: {}]
  %s4 = inlined_call_operand.hbm [shape: f32[1,256], index: 4, kind: input, shape index: {}]
  %s5 = inlined_call_operand.hbm [shape: bf16[256,128], index: 5, kind: input, shape index: {}]
  %s6 = inlined_call_operand.hbm [shape: f32[1,128], index: 6, kind: input, shape index: {}]
  %s7 = inlined_call_operand.hbm [shape: bf16[128,128], index: 7, kind: input, shape index: {}]
  %s8 = inlined_call_operand.hbm [shape: f32[1,128], index: 8, kind: input, shape index: {}]
  %s9 = inlined_call_operand.hbm [shape: f32[16,128], index: 9, kind: output, shape index: {}]
  %s10 = sld [smem:[#allocation0]]
  $region113: #{tpu_custom_call.1} parent=0
    _
  %s12 = ssub.s32 1, %s10
  %s13 = scalar_select 0, %s12, %s10
  $region1: #{tpu_custom_call.1} parent=0
    #allocation3 [shape = 'u8[131072]{0}', space=vmem, size = 0x20000, scoped, tag = 'input window, operand 0']
    #allocation4 [shape = 's32[2]{0}', space=sflag, size = 0x8, scoped, tag = 'scoped memory for tpu_custom_call.1']
    #allocation5 [shape = 's32[2]{0}', space=sflag, size = 0x8, scoped, tag = 'scoped memory for tpu_custom_call.1']
    #allocation6 [shape = 'u8[2097152]{0}', space=vmem, size = 0x200000, scoped, tag = 'input window, operand 1']
    #allocation7 [shape = 's32[2]{0}', space=sflag, size = 0x8, scoped, tag = 'scoped memory for tpu_custom_call.1']
    #allocation8 [shape = 'u8[2048]{0}', space=vmem, size = 0x800, scoped, tag = 'input window, operand 2, single buffered']
    #allocation9 [shape = 'u8[262144]{0}', space=vmem, size = 0x40000, scoped, tag = 'input window, operand 3, single buffered']
    #allocation10 [shape = 's32[1]{0}', space=sflag, size = 0x4, scoped, tag = 'scoped memory for tpu_custom_call.1']
    #allocation11 [shape = 'u8[1024]{0}', space=vmem, size = 0x400, scoped, tag = 'input window, operand 4, single buffered']
    #allocation12 [shape = 'u8[65536]{0}', space=vmem, size = 0x10000, scoped, tag = 'input window, operand 5, single buffered']
    #allocation13 [shape = 's32[1]{0}', space=sflag, size = 0x4, scoped, tag = 'scoped memory for tpu_custom_call.1']
    #allocation14 [shape = 'u8[512]{0}', space=vmem, size = 0x400, scoped, tag = 'input window, operand 6, single buffered']
    #allocation15 [shape = 'u8[32768]{0}', space=vmem, size = 0x8000, scoped, tag = 'input window, operand 7, single buffered']
    #allocation16 [shape = 's32[1]{0}', space=sflag, size = 0x4, scoped, tag = 'scoped memory for tpu_custom_call.1']
    #allocation17 [shape = 'u8[512]{0}', space=vmem, size = 0x400, scoped, tag = 'input window, operand 8, single buffered']
    #allocation18 [shape = 'u8[8192]{0}', space=vmem, size = 0x2000, scoped, tag = 'output window, operand 0, single buffered']
    %14 = vsyncpa [#allocation4], 0
    %s15 = scalar_lea.sflag [#allocation4], 1
    %16 = vsyncpa %s15, 0
    %17 = vsyncpa [#allocation7], 0
    %s18 = scalar_lea.sflag [#allocation7], 1
    %19 = vsyncpa %s18, 0
    %20 = vsyncpa [#allocation10], 0
    %21 = vsyncpa [#allocation13], 0
    %22 = vsyncpa [#allocation16], 0
    %23 = vsyncpa [#allocation5], 0
    loop: start=0, step=1, limit=5
    $region2: #{tpu_custom_call.1} parent=1 // loop_pre_header
      _
    $region3: #{tpu_custom_call.1} parent=1 // loop_header
      %s25 = sphi 0, %s29
      %p26 = scmp.ge.s32.totalorder %s25, 5
      %s32 = sphi 0, %s44
      %s33 = sphi 0, %s40
      %s34 = sphi 0, %s32
      %s35 = sphi 0, %s33
      %s36 = sphi 0, %s34
      %s37 = sphi 0, %s35
      %s49 = sphi 0, %s51
      %s52 = sphi 0, %s49
      %s53 = sphi 0, %s52
      %s69 = sphi 0, %s53
      %s75 = sphi 0, %s77
      %s78 = sphi 0, %s75
      %s79 = sphi 0, %s78
      %s95 = sphi 0, %s79
      %s99 = sphi 0, %s99
      %s101 = sphi 0, %s99
      %s102 = sphi 0, %s101
      %s116 = sphi 0, %s102
      %s120 = sphi 0, %s120
      %s122 = sphi 0, %s120
      %s123 = sphi 0, %s122
      %s137 = sphi 0, %s123
      %s141 = sphi 0, %s141
      %s143 = sphi 0, %s141
      %s144 = sphi 0, %s143
      %s158 = sphi 0, %s144
      %s162 = sphi 0, %s162
      %s164 = sphi 0, %s162
      %s165 = sphi 0, %s164
      %s179 = sphi 0, %s165
      %s183 = sphi 0, %s183
      %s185 = sphi 0, %s183
      %s186 = sphi 0, %s185
      %s200 = sphi 0, %s186
      %s204 = sphi 0, %s204
      %s206 = sphi 0, %s204
      %s207 = sphi 0, %s206
      %s221 = sphi 0, %s207
      %s225 = sphi 0, %s225
      %s227 = sphi 0, %s225
      %s228 = sphi 0, %s227
      %s242 = sphi 0, %s228
      %s248 = sphi 0, %s250
      %s251 = sphi 0, %s248
      %s252 = sphi 0, %s251
      %s268 = sphi 0, %s252
    $region4: #{tpu_custom_call.1} parent=1 // loop_header_branch
      %28 = sbr.rel (%p26) target = $region8
    $region5: #{tpu_custom_call.1} parent=1 // loop_body
      %s30 = ssub.s32 %s25, 1
      %s31 = ssub.s32 %s25, 2
      %s38 = sadd.s32 1, %s33
      %p39 = scmp.ge.s32.totalorder %s38, 3
      %s40 = scalar_select %p39, 0, %s38
      %s41 = sadd.s32 1, %s32
      %s42 = scalar_select %p39, %s41, %s32
      %p43 = scmp.ge.s32.totalorder %s42, 1
      %s44 = scalar_select %p43, 0, %s42
      %s45 = ssub.s32 %s32, %s44
      %s46 = ssub.s32 %s33, %s40
      %s47 = sor.u32 %s45, %s46
      %p48 = scmp.eq.s32.totalorder %s47, 0
      %s50 = sadd.s32 %s49, 1
      %s51 = scalar_select %p48, %s49, %s50
      %p54 = pneg %p48
      %p55 = scmp.eq.s32.totalorder %s25, 2
      %p56 = por %p54, %p55
      %p57 = scmp.ne.s32.totalorder %s49, %s52
      %p58 = scmp.eq.s32.totalorder %s25, 0
      %p59 = por %p57, %p58
      %p60 = scmp.ne.s32.totalorder %s49, %s52
      %p61 = scmp.eq.s32.totalorder %s30, 2
      %p62 = por %p60, %p61
      %p63 = scmp.ne.s32.totalorder %s52, %s53
      %p64 = scmp.eq.s32.totalorder %s30, 0
      %p65 = por %p63, %p64
      %p66 = scmp.ne.s32.totalorder %s52, %s53
      %p67 = scmp.eq.s32.totalorder %s31, 2
      %p68 = por %p66, %p67
      %p70 = scmp.ne.s32.totalorder %s53, %s69
      %p71 = scmp.eq.s32.totalorder %s31, 0
      %p72 = por %p70, %p71
      %s73 = ssub.s32 %s33, %s40
      %p74 = scmp.eq.s32.totalorder %s73, 0
      %s76 = sadd.s32 %s75, 1
      %s77 = scalar_select %p74, %s75, %s76
      %p80 = pneg %p74
      %p81 = scmp.eq.s32.totalorder %s25, 2
      %p82 = por %p80, %p81
      %p83 = scmp.ne.s32.totalorder %s75, %s78
      %p84 = scmp.eq.s32.totalorder %s25, 0
      %p85 = por %p83, %p84
      %p86 = scmp.ne.s32.totalorder %s75, %s78
      %p87 = scmp.eq.s32.totalorder %s30, 2
      %p88 = por %p86, %p87
      %p89 = scmp.ne.s32.totalorder %s78, %s79
      %p90 = scmp.eq.s32.totalorder %s30, 0
      %p91 = por %p89, %p90
      %p92 = scmp.ne.s32.totalorder %s78, %s79
      %p93 = scmp.eq.s32.totalorder %s31, 2
      %p94 = por %p92, %p93
      %p96 = scmp.ne.s32.totalorder %s79, %s95
      %p97 = scmp.eq.s32.totalorder %s31, 0
      %p98 = por %p96, %p97
      %s100 = sadd.s32 %s99, 1
      %p103 = scmp.eq.s32.totalorder %s25, 2
      %p104 = scmp.ne.s32.totalorder %s99, %s101
      %p105 = scmp.eq.s32.totalorder %s25, 0
      %p106 = por %p104, %p105
      %p107 = scmp.ne.s32.totalorder %s99, %s101
      %p108 = scmp.eq.s32.totalorder %s30, 2
      %p109 = por %p107, %p108
      %p110 = scmp.ne.s32.totalorder %s101, %s102
      %p111 = scmp.eq.s32.totalorder %s30, 0
      %p112 = por %p110, %p111
      %p113 = scmp.ne.s32.totalorder %s101, %s102
      %p114 = scmp.eq.s32.totalorder %s31, 2
      %p115 = por %p113, %p114
      %p117 = scmp.ne.s32.totalorder %s102, %s116
      %p118 = scmp.eq.s32.totalorder %s31, 0
      %p119 = por %p117, %p118
      %s121 = sadd.s32 %s120, 1
      %p124 = scmp.eq.s32.totalorder %s25, 2
      %p125 = scmp.ne.s32.totalorder %s120, %s122
      %p126 = scmp.eq.s32.totalorder %s25, 0
      %p127 = por %p125, %p126
      %p128 = scmp.ne.s32.totalorder %s120, %s122
      %p129 = scmp.eq.s32.totalorder %s30, 2
      %p130 = por %p128, %p129
      %p131 = scmp.ne.s32.totalorder %s122, %s123
      %p132 = scmp.eq.s32.totalorder %s30, 0
      %p133 = por %p131, %p132
      %p134 = scmp.ne.s32.totalorder %s122, %s123
      %p135 = scmp.eq.s32.totalorder %s31, 2
      %p136 = por %p134, %p135
      %p138 = scmp.ne.s32.totalorder %s123, %s137
      %p139 = scmp.eq.s32.totalorder %s31, 0
      %p140 = por %p138, %p139
      %s142 = sadd.s32 %s141, 1
      %p145 = scmp.eq.s32.totalorder %s25, 2
      %p146 = scmp.ne.s32.totalorder %s141, %s143
      %p147 = scmp.eq.s32.totalorder %s25, 0
      %p148 = por %p146, %p147
      %p149 = scmp.ne.s32.totalorder %s141, %s143
      %p150 = scmp.eq.s32.totalorder %s30, 2
      %p151 = por %p149, %p150
      %p152 = scmp.ne.s32.totalorder %s143, %s144
      %p153 = scmp.eq.s32.totalorder %s30, 0
      %p154 = por %p152, %p153
      %p155 = scmp.ne.s32.totalorder %s143, %s144
      %p156 = scmp.eq.s32.totalorder %s31, 2
      %p157 = por %p155, %p156
      %p159 = scmp.ne.s32.totalorder %s144, %s158
      %p160 = scmp.eq.s32.totalorder %s31, 0
      %p161 = por %p159, %p160
      %s163 = sadd.s32 %s162, 1
      %p166 = scmp.eq.s32.totalorder %s25, 2
      %p167 = scmp.ne.s32.totalorder %s162, %s164
      %p168 = scmp.eq.s32.totalorder %s25, 0
      %p169 = por %p167, %p168
      %p170 = scmp.ne.s32.totalorder %s162, %s164
      %p171 = scmp.eq.s32.totalorder %s30, 2
      %p172 = por %p170, %p171
      %p173 = scmp.ne.s32.totalorder %s164, %s165
      %p174 = scmp.eq.s32.totalorder %s30, 0
      %p175 = por %p173, %p174
      %p176 = scmp.ne.s32.totalorder %s164, %s165
      %p177 = scmp.eq.s32.totalorder %s31, 2
      %p178 = por %p176, %p177
      %p180 = scmp.ne.s32.totalorder %s165, %s179
      %p181 = scmp.eq.s32.totalorder %s31, 0
      %p182 = por %p180, %p181
      %s184 = sadd.s32 %s183, 1
      %p187 = scmp.eq.s32.totalorder %s25, 2
      %p188 = scmp.ne.s32.totalorder %s183, %s185
      %p189 = scmp.eq.s32.totalorder %s25, 0
      %p190 = por %p188, %p189
      %p191 = scmp.ne.s32.totalorder %s183, %s185
      %p192 = scmp.eq.s32.totalorder %s30, 2
      %p193 = por %p191, %p192
      %p194 = scmp.ne.s32.totalorder %s185, %s186
      %p195 = scmp.eq.s32.totalorder %s30, 0
      %p196 = por %p194, %p195
      %p197 = scmp.ne.s32.totalorder %s185, %s186
      %p198 = scmp.eq.s32.totalorder %s31, 2
      %p199 = por %p197, %p198
      %p201 = scmp.ne.s32.totalorder %s186, %s200
      %p202 = scmp.eq.s32.totalorder %s31, 0
      %p203 = por %p201, %p202
      %s205 = sadd.s32 %s204, 1
      %p208 = scmp.eq.s32.totalorder %s25, 2
      %p209 = scmp.ne.s32.totalorder %s204, %s206
      %p210 = scmp.eq.s32.totalorder %s25, 0
      %p211 = por %p209, %p210
      %p212 = scmp.ne.s32.totalorder %s204, %s206
      %p213 = scmp.eq.s32.totalorder %s30, 2
      %p214 = por %p212, %p213
      %p215 = scmp.ne.s32.totalorder %s206, %s207
      %p216 = scmp.eq.s32.totalorder %s30, 0
      %p217 = por %p215, %p216
      %p218 = scmp.ne.s32.totalorder %s206, %s207
      %p219 = scmp.eq.s32.totalorder %s31, 2
      %p220 = por %p218, %p219
      %p222 = scmp.ne.s32.totalorder %s207, %s221
      %p223 = scmp.eq.s32.totalorder %s31, 0
      %p224 = por %p222, %p223
      %s226 = sadd.s32 %s225, 1
      %p229 = scmp.eq.s32.totalorder %s25, 2
      %p230 = scmp.ne.s32.totalorder %s225, %s227
      %p231 = scmp.eq.s32.totalorder %s25, 0
      %p232 = por %p230, %p231
      %p233 = scmp.ne.s32.totalorder %s225, %s227
      %p234 = scmp.eq.s32.totalorder %s30, 2
      %p235 = por %p233, %p234
      %p236 = scmp.ne.s32.totalorder %s227, %s228
      %p237 = scmp.eq.s32.totalorder %s30, 0
      %p238 = por %p236, %p237
      %p239 = scmp.ne.s32.totalorder %s227, %s228
      %p240 = scmp.eq.s32.totalorder %s31, 2
      %p241 = por %p239, %p240
      %p243 = scmp.ne.s32.totalorder %s228, %s242
      %p244 = scmp.eq.s32.totalorder %s31, 0
      %p245 = por %p243, %p244
      %s246 = ssub.s32 %s32, %s44
      %p247 = scmp.eq.s32.totalorder %s246, 0
      %s249 = sadd.s32 %s248, 1
      %s250 = scalar_select %p247, %s248, %s249
      %p253 = pneg %p247
      %p254 = scmp.eq.s32.totalorder %s25, 2
      %p255 = por %p253, %p254
      %p256 = scmp.ne.s32.totalorder %s248, %s251
      %p257 = scmp.eq.s32.totalorder %s25, 0
      %p258 = por %p256, %p257
      %p259 = scmp.ne.s32.totalorder %s248, %s251
      %p260 = scmp.eq.s32.totalorder %s30, 2
      %p261 = por %p259, %p260
      %p262 = scmp.ne.s32.totalorder %s251, %s252
      %p263 = scmp.eq.s32.totalorder %s30, 0
      %p264 = por %p262, %p263
      %p265 = scmp.ne.s32.totalorder %s251, %s252
      %p266 = scmp.eq.s32.totalorder %s31, 2
      %p267 = por %p265, %p266
      %p269 = scmp.ne.s32.totalorder %s252, %s268
      %p270 = scmp.eq.s32.totalorder %s31, 0
      %p271 = por %p269, %p270
      %p272 = scmp.le.s32.totalorder 1, %s25
      %p273 = scmp.lt.s32.totalorder %s25, 4
      %p274 = pnand %p272, %p273
      %p275 = pneg %p274
      // Predicated region
      $region9: #{tpu_custom_call.1} parent=5 // pred_check
        _
      $region10: #{tpu_custom_call.1} parent=5 // pred_check_branch
        %277 = sbr.rel (%p274) target = $region12
      $region11: #{tpu_custom_call.1} parent=5 // pred_region
        %s278 = ssub.s32 %s25, 1
        // Predicated region
        $region13: #{tpu_custom_call.1} parent=11 // pred_check
          %p279 = pneg %p112
        $region14: #{tpu_custom_call.1} parent=11 // pred_check_branch
          %281 = sbr.rel (%p279) target = $region16
        $region15: #{tpu_custom_call.1} parent=11 // pred_region
          %283 = vsyncadd [#allocation7], 0
          %s285 = sshll.u32 %s2, 4
          %s286 = int_to_ptr.hbm [resolvable:$true] %s285
          %s287 = sshll.u32 [#allocation8], 4
          %s288 = int_to_ptr.vmem [resolvable:$true] %s287
          %290 = dma.hbm_to_vmem [thread:$0]  %s286, 64, %s288, [#allocation7]
        $region16: #{tpu_custom_call.1} parent=11 // pred_fallthru
          _
        // Predicated region
        $region17: #{tpu_custom_call.1} parent=11 // pred_check
          %p291 = pneg %p133
        $region18: #{tpu_custom_call.1} parent=11 // pred_check_branch
          %293 = sbr.rel (%p291) target = $region20
        $region19: #{tpu_custom_call.1} parent=11 // pred_region
          %295 = vsyncadd [#allocation10], 0
          %s296 = sshll.u32 %s3, 4
          %s297 = int_to_ptr.hbm [resolvable:$true] %s296
          %s298 = sshll.u32 [#allocation9], 4
          %s299 = int_to_ptr.vmem [resolvable:$true] %s298
          %304 = dma.hbm_to_vmem [thread:$0]  %s297, 8192, %s299, [#allocation10], 128, 128, 8
        $region20: #{tpu_custom_call.1} parent=11 // pred_fallthru
          _
        // Predicated region
        $region21: #{tpu_custom_call.1} parent=11 // pred_check
          %p305 = pneg %p154
        $region22: #{tpu_custom_call.1} parent=11 // pred_check_branch
          %307 = sbr.rel (%p305) target = $region24
        $region23: #{tpu_custom_call.1} parent=11 // pred_region
          %309 = vsyncadd [#allocation10], 0
          %s311 = sshll.u32 %s4, 4
          %s312 = int_to_ptr.hbm [resolvable:$true] %s311
          %s313 = sshll.u32 [#allocation11], 4
          %s314 = int_to_ptr.vmem [resolvable:$true] %s313
          %316 = dma.hbm_to_vmem [thread:$0]  %s312, 32, %s314, [#allocation10]
        $region24: #{tpu_custom_call.1} parent=11 // pred_fallthru
          _
        // Predicated region
        $region25: #{tpu_custom_call.1} parent=11 // pred_check
          %p317 = pneg %p175
        $region26: #{tpu_custom_call.1} parent=11 // pred_check_branch
          %319 = sbr.rel (%p317) target = $region28
        $region27: #{tpu_custom_call.1} parent=11 // pred_region
          %321 = vsyncadd [#allocation13], 0
          %s322 = sshll.u32 %s5, 4
          %s323 = int_to_ptr.hbm [resolvable:$true] %s322
          %s324 = sshll.u32 [#allocation12], 4
          %s325 = int_to_ptr.vmem [resolvable:$true] %s324
          %330 = dma.hbm_to_vmem [thread:$0]  %s323, 2048, %s325, [#allocation13], 64, 64, 4
        $region28: #{tpu_custom_call.1} parent=11 // pred_fallthru
          _
        // Predicated region
        $region29: #{tpu_custom_call.1} parent=11 // pred_check
          %p331 = pneg %p196
        $region30: #{tpu_custom_call.1} parent=11 // pred_check_branch
          %333 = sbr.rel (%p331) target = $region32
        $region31: #{tpu_custom_call.1} parent=11 // pred_region
          %335 = vsyncadd [#allocation13], 0
          %s337 = sshll.u32 %s6, 4
          %s338 = int_to_ptr.hbm [resolvable:$true] %s337
          %s339 = sshll.u32 [#allocation14], 4
          %s340 = int_to_ptr.vmem [resolvable:$true] %s339
          %342 = dma.hbm_to_vmem [thread:$0]  %s338, 16, %s340, [#allocation13]
        $region32: #{tpu_custom_call.1} parent=11 // pred_fallthru
          _
        // Predicated region
        $region33: #{tpu_custom_call.1} parent=11 // pred_check
          %p343 = pneg %p217
        $region34: #{tpu_custom_call.1} parent=11 // pred_check_branch
          %345 = sbr.rel (%p343) target = $region36
        $region35: #{tpu_custom_call.1} parent=11 // pred_region
          %347 = vsyncadd [#allocation16], 0
          %s348 = sshll.u32 %s7, 4
          %s349 = int_to_ptr.hbm [resolvable:$true] %s348
          %s350 = sshll.u32 [#allocation15], 4
          %s351 = int_to_ptr.vmem [resolvable:$true] %s350
          %356 = dma.hbm_to_vmem [thread:$0]  %s349, 1024, %s351, [#allocation16], 64, 64, 4
        $region36: #{tpu_custom_call.1} parent=11 // pred_fallthru
          _
        // Predicated region
        $region37: #{tpu_custom_call.1} parent=11 // pred_check
          %p357 = pneg %p238
        $region38: #{tpu_custom_call.1} parent=11 // pred_check_branch
          %359 = sbr.rel (%p357) target = $region40
        $region39: #{tpu_custom_call.1} parent=11 // pred_region
          %361 = vsyncadd [#allocation16], 0
          %s363 = sshll.u32 %s8, 4
          %s364 = int_to_ptr.hbm [resolvable:$true] %s363
          %s365 = sshll.u32 [#allocation17], 4
          %s366 = int_to_ptr.vmem [resolvable:$true] %s365
          %368 = dma.hbm_to_vmem [thread:$0]  %s364, 16, %s366, [#allocation16]
        $region40: #{tpu_custom_call.1} parent=11 // pred_fallthru
          _
      $region12: #{tpu_custom_call.1} parent=5 // pred_fallthru
        _
      %p369 = scmp.lt.s32.totalorder %s25, 3
      // Predicated region
      $region41: #{tpu_custom_call.1} parent=5 // pred_check
        %p370 = pneg %p369
      $region42: #{tpu_custom_call.1} parent=5 // pred_check_branch
        %372 = sbr.rel (%p370) target = $region44
      $region43: #{tpu_custom_call.1} parent=5 // pred_region
        // Predicated region
        $region45: #{tpu_custom_call.1} parent=43 // pred_check
          %p373 = pneg %p59
        $region46: #{tpu_custom_call.1} parent=43 // pred_check_branch
          %375 = sbr.rel (%p373) target = $region48
        $region47: #{tpu_custom_call.1} parent=43 // pred_region
          %s376 = sand.u32 %s49, 1
          %s377 = scalar_lea.sflag [#allocation4], %s376
          %s378 = sand.u32 %s49, 1
          %s379 = smul.addr %s378, 128
          %s380 = scalar_lea.vmem [#allocation3], %s379
          %s381 = smul.u32 2, %s32
          %s382 = smul.u32 8, %s33
          %384 = vsyncadd %s377, 0
          %s385 = smul.addr %s381, 24
          %s386 = sadd.s32 %s382, %s385
          %s387 = smul.addr %s386, 8
          %s388 = scalar_lea.hbm %s0, %s387
          %s389 = sshll.u32 %s388, 4
          %s390 = int_to_ptr.hbm [resolvable:$true] %s389
          %s391 = sshll.u32 %s380, 4
          %s392 = int_to_ptr.vmem [resolvable:$true] %s391
          %397 = dma.hbm_to_vmem [thread:$0]  %s390, 2048, %s392, %s377, 3072, 1024, 64
        $region48: #{tpu_custom_call.1} parent=43 // pred_fallthru
          _
        // Predicated region
        $region49: #{tpu_custom_call.1} parent=43 // pred_check
          %p398 = pneg %p85
        $region50: #{tpu_custom_call.1} parent=43 // pred_check_branch
          %400 = sbr.rel (%p398) target = $region52
        $region51: #{tpu_custom_call.1} parent=43 // pred_region
          %s401 = sand.u32 %s25, 1
          %s402 = scalar_lea.sflag [#allocation7], %s401
          %s403 = sand.u32 %s75, 1
          %s404 = smul.addr %s403, 2048
          %s405 = scalar_lea.vmem [#allocation6], %s404
          %s406 = smul.u32 128, %s33
          %408 = vsyncadd %s402, 0
          %s409 = smul.addr %s406, 4
          %s410 = smul.addr %s409, 4
          %s411 = scalar_lea.hbm %s1, %s410
          %s412 = sshll.u32 %s411, 4
          %s413 = int_to_ptr.hbm [resolvable:$true] %s412
          %s414 = sshll.u32 %s405, 4
          %s415 = int_to_ptr.vmem [resolvable:$true] %s414
          %420 = dma.hbm_to_vmem [thread:$0]  %s413, 32768, %s415, %s402, 256, 256, 16
        $region52: #{tpu_custom_call.1} parent=43 // pred_fallthru
          _
      $region44: #{tpu_custom_call.1} parent=5 // pred_fallthru
        _
      %p421 = scmp.le.s32.totalorder 1, %s25
      %p422 = scmp.lt.s32.totalorder %s25, 4
      %p423 = pnand %p421, %p422
      %p424 = pneg %p423
      // Predicated region
      $region53: #{tpu_custom_call.1} parent=5 // pred_check
        _
      $region54: #{tpu_custom_call.1} parent=5 // pred_check_branch
        %426 = sbr.rel (%p423) target = $region56
      $region55: #{tpu_custom_call.1} parent=5 // pred_region
        %s427 = ssub.s32 %s25, 1
        %s428 = sand.u32 %s52, 1
        %s429 = scalar_lea.sflag [#allocation4], %s428
        %s430 = sand.u32 %s52, 1
        %s431 = smul.addr %s430, 128
        %s432 = scalar_lea.vmem [#allocation3], %s431
        // Predicated region
        $region57: #{tpu_custom_call.1} parent=55 // pred_check
          %p433 = pneg %p65
        $region58: #{tpu_custom_call.1} parent=55 // pred_check_branch
          %435 = sbr.rel (%p433) target = $region60
        $region59: #{tpu_custom_call.1} parent=55 // pred_region
          %437 = dma.done %s429, 2048
        $region60: #{tpu_custom_call.1} parent=55 // pred_fallthru
          _
        %s438 = sand.u32 %s30, 1
        %s439 = scalar_lea.sflag [#allocation7], %s438
        %s440 = sand.u32 %s78, 1
        %s441 = smul.addr %s440, 2048
        %s442 = scalar_lea.vmem [#allocation6], %s441
        // Predicated region
        $region61: #{tpu_custom_call.1} parent=55 // pred_check
          %p443 = pneg %p91
        $region62: #{tpu_custom_call.1} parent=55 // pred_check_branch
          %445 = sbr.rel (%p443) target = $region64
        $region63: #{tpu_custom_call.1} parent=55 // pred_region
          %447 = dma.done %s439, 32768
        $region64: #{tpu_custom_call.1} parent=55 // pred_fallthru
          _
        // Predicated region
        $region65: #{tpu_custom_call.1} parent=55 // pred_check
          %p448 = pneg %p112
        $region66: #{tpu_custom_call.1} parent=55 // pred_check_branch
          %450 = sbr.rel (%p448) target = $region68
        $region67: #{tpu_custom_call.1} parent=55 // pred_region
          %452 = dma.done [#allocation7], 64
        $region68: #{tpu_custom_call.1} parent=55 // pred_fallthru
          _
        // Predicated region
        $region69: #{tpu_custom_call.1} parent=55 // pred_check
          %p453 = pneg %p133
        $region70: #{tpu_custom_call.1} parent=55 // pred_check_branch
          %455 = sbr.rel (%p453) target = $region72
        $region71: #{tpu_custom_call.1} parent=55 // pred_region
          %457 = dma.done [#allocation10], 8192
        $region72: #{tpu_custom_call.1} parent=55 // pred_fallthru
          _
        // Predicated region
        $region73: #{tpu_custom_call.1} parent=55 // pred_check
          %p458 = pneg %p154
        $region74: #{tpu_custom_call.1} parent=55 // pred_check_branch
          %460 = sbr.rel (%p458) target = $region76
        $region75: #{tpu_custom_call.1} parent=55 // pred_region
          %462 = dma.done [#allocation10], 32
        $region76: #{tpu_custom_call.1} parent=55 // pred_fallthru
          _
        // Predicated region
        $region77: #{tpu_custom_call.1} parent=55 // pred_check
          %p463 = pneg %p175
        $region78: #{tpu_custom_call.1} parent=55 // pred_check_branch
          %465 = sbr.rel (%p463) target = $region80
        $region79: #{tpu_custom_call.1} parent=55 // pred_region
          %467 = dma.done [#allocation13], 2048
        $region80: #{tpu_custom_call.1} parent=55 // pred_fallthru
          _
        // Predicated region
        $region81: #{tpu_custom_call.1} parent=55 // pred_check
          %p468 = pneg %p196
        $region82: #{tpu_custom_call.1} parent=55 // pred_check_branch
          %470 = sbr.rel (%p468) target = $region84
        $region83: #{tpu_custom_call.1} parent=55 // pred_region
          %472 = dma.done [#allocation13], 16
        $region84: #{tpu_custom_call.1} parent=55 // pred_fallthru
          _
        // Predicated region
        $region85: #{tpu_custom_call.1} parent=55 // pred_check
          %p473 = pneg %p217
        $region86: #{tpu_custom_call.1} parent=55 // pred_check_branch
          %475 = sbr.rel (%p473) target = $region88
        $region87: #{tpu_custom_call.1} parent=55 // pred_region
          %477 = dma.done [#allocation16], 1024
        $region88: #{tpu_custom_call.1} parent=55 // pred_fallthru
          _
        // Predicated region
        $region89: #{tpu_custom_call.1} parent=55 // pred_check
          %p478 = pneg %p238
        $region90: #{tpu_custom_call.1} parent=55 // pred_check_branch
          %480 = sbr.rel (%p478) target = $region92
        $region91: #{tpu_custom_call.1} parent=55 // pred_region
          %482 = dma.done [#allocation16], 16
        $region92: #{tpu_custom_call.1} parent=55 // pred_fallthru
          _
        %s483 = sand.u32 %s52, 1
        %s484 = scalar_lea.sflag [#allocation4], %s483
        %s485 = sand.u32 %s52, 1
        %s486 = smul.addr %s485, 128
        %s487 = scalar_lea.vmem [#allocation3], %s486
        %p488 = pneg %p65
        %p489 = pneg %p62
        %s490 = sand.u32 %s30, 1
        %s491 = scalar_lea.sflag [#allocation7], %s490
        %s492 = sand.u32 %s78, 1
        %s493 = smul.addr %s492, 2048
        %s494 = scalar_lea.vmem [#allocation6], %s493
        %p495 = pneg %p91
        %p496 = pneg %p88
        %p497 = pneg %p112
        %p498 = pneg %p109
        %p499 = pneg %p133
        %p500 = pneg %p130
        %p501 = pneg %p154
        %p502 = pneg %p151
        %p503 = pneg %p175
        %p504 = pneg %p172
        %p505 = pneg %p196
        %p506 = pneg %p193
        %p507 = pneg %p217
        %p508 = pneg %p214
        %p509 = pneg %p238
        %p510 = pneg %p235
        %p511 = pneg %p264
        %p512 = pneg %p261
        %s513 = smul.u32 2, %s34
        %s514 = smul.u32 8, %s35
        %s515 = smul.u32 128, %s35
        %s516 = smul.u32 2, %s34
        %p517 = scmp.eq.s32.totalorder %s35, 0
        // Predicated region
        $region93: #{tpu_custom_call.1} parent=55 // pred_check
          %p518 = pneg %p517
        $region94: #{tpu_custom_call.1} parent=55 // pred_check_branch
          %520 = sbr.rel (%p518) target = $region96
        $region95: #{tpu_custom_call.1} parent=55 // pred_region
          %521 = vst [vmem:[#allocation2] sm:$0xff] 0.0
          %522 = vst [vmem:[#allocation2 + $0x8] sm:$0xff] 0.0
          %523 = vst [vmem:[#allocation2 + $0x10] sm:$0xff] 0.0
          %524 = vst [vmem:[#allocation2 + $0x18] sm:$0xff] 0.0
          %525 = vst [vmem:[#allocation2 + $0x20] sm:$0xff] 0.0
          %526 = vst [vmem:[#allocation2 + $0x28] sm:$0xff] 0.0
          %527 = vst [vmem:[#allocation2 + $0x30] sm:$0xff] 0.0
          %528 = vst [vmem:[#allocation2 + $0x38] sm:$0xff] 0.0
        $region96: #{tpu_custom_call.1} parent=55 // pred_fallthru
          _
        %v529 = vld [vmem:[%s432] sm:$0xff]
        %v530 = vld [vmem:[%s432 + $0x8] sm:$0xff]
        %v531 = vld [vmem:[%s432 + $0x10] sm:$0xff]
        %v532 = vld [vmem:[%s432 + $0x18] sm:$0xff]
        %v533 = vld [vmem:[%s432 + $0x20] sm:$0xff]
        %v534 = vld [vmem:[%s432 + $0x28] sm:$0xff]
        %v535 = vld [vmem:[%s432 + $0x30] sm:$0xff]
        %v536 = vld [vmem:[%s432 + $0x38] sm:$0xff]
        %v537 = vld [vmem:[%s432 + $0x40] sm:$0xff]
        %v538 = vld [vmem:[%s432 + $0x48] sm:$0xff]
        %v539 = vld [vmem:[%s432 + $0x50] sm:$0xff]
        %v540 = vld [vmem:[%s432 + $0x58] sm:$0xff]
        %v541 = vld [vmem:[%s432 + $0x60] sm:$0xff]
        %v542 = vld [vmem:[%s432 + $0x68] sm:$0xff]
        %v543 = vld [vmem:[%s432 + $0x70] sm:$0xff]
        %v544 = vld [vmem:[%s432 + $0x78] sm:$0xff]
        %v545 = vpack.c.bf16 %v537, %v529
        %v546 = vpack.c.bf16 %v538, %v530
        %v547 = vpack.c.bf16 %v539, %v531
        %v548 = vpack.c.bf16 %v540, %v532
        %v549 = vpack.c.bf16 %v541, %v533
        %v550 = vpack.c.bf16 %v542, %v534
        %v551 = vpack.c.bf16 %v543, %v535
        %v552 = vpack.c.bf16 %v544, %v536
        %v553 = vld [vmem:[#allocation2] sm:$0xff]
        %v554 = vld [vmem:[#allocation2 + $0x8] sm:$0xff]
        %v555 = vld [vmem:[#allocation2 + $0x10] sm:$0xff]
        %v556 = vld [vmem:[#allocation2 + $0x18] sm:$0xff]
        %v557 = vld [vmem:[#allocation2 + $0x20] sm:$0xff]
        %v558 = vld [vmem:[#allocation2 + $0x28] sm:$0xff]
        %v559 = vld [vmem:[#allocation2 + $0x30] sm:$0xff]
        %v560 = vld [vmem:[#allocation2 + $0x38] sm:$0xff]
        %v561 = vld [vmem:[%s442] sm:$0xff]
        %v562 = vld [vmem:[%s442 + $0x8] sm:$0xff]
        %v563 = vld [vmem:[%s442 + $0x10] sm:$0xff]
        %v564 = vld [vmem:[%s442 + $0x18] sm:$0xff]
        %v565 = vld [vmem:[%s442 + $0x20] sm:$0xff]
        %v566 = vld [vmem:[%s442 + $0x28] sm:$0xff]
        %v567 = vld [vmem:[%s442 + $0x30] sm:$0xff]
        %v568 = vld [vmem:[%s442 + $0x38] sm:$0xff]
        %v569 = vld [vmem:[%s442 + $0x40] sm:$0xff]
        %v570 = vld [vmem:[%s442 + $0x48] sm:$0xff]
        %v571 = vld [vmem:[%s442 + $0x50] sm:$0xff]
        %v572 = vld [vmem:[%s442 + $0x58] sm:$0xff]
        %v573 = vld [vmem:[%s442 + $0x60] sm:$0xff]
        %v574 = vld [vmem:[%s442 + $0x68] sm:$0xff]
        %v575 = vld [vmem:[%s442 + $0x70] sm:$0xff]
        %v576 = vld [vmem:[%s442 + $0x78] sm:$0xff]
        %v577 = vld [vmem:[%s442 + $0x80] sm:$0xff]
        %v578 = vld [vmem:[%s442 + $0x88] sm:$0xff]
        %v579 = vld [vmem:[%s442 + $0x90] sm:$0xff]
        %v580 = vld [vmem:[%s442 + $0x98] sm:$0xff]
        %v581 = vld [vmem:[%s442 + $0xa0] sm:$0xff]
        %v582 = vld [vmem:[%s442 + $0xa8] sm:$0xff]
        %v583 = vld [vmem:[%s442 + $0xb0] sm:$0xff]
        %v584 = vld [vmem:[%s442 + $0xb8] sm:$0xff]
        %v585 = vld [vmem:[%s442 + $0xc0] sm:$0xff]
        %v586 = vld [vmem:[%s442 + $0xc8] sm:$0xff]
        %v587 = vld [vmem:[%s442 + $0xd0] sm:$0xff]
        %v588 = vld [vmem:[%s442 + $0xd8] sm:$0xff]
        %v589 = vld [vmem:[%s442 + $0xe0] sm:$0xff]
        %v590 = vld [vmem:[%s442 + $0xe8] sm:$0xff]
        %v591 = vld [vmem:[%s442 + $0xf0] sm:$0xff]
        %v592 = vld [vmem:[%s442 + $0xf8] sm:$0xff]
        %v593 = vld [vmem:[%s442 + $0x100] sm:$0xff]
        %v594 = vld [vmem:[%s442 + $0x108] sm:$0xff]
        %v595 = vld [vmem:[%s442 + $0x110] sm:$0xff]
        %v596 = vld [vmem:[%s442 + $0x118] sm:$0xff]
        %v597 = vld [vmem:[%s442 + $0x120] sm:$0xff]
        %v598 = vld [vmem:[%s442 + $0x128] sm:$0xff]
        %v599 = vld [vmem:[%s442 + $0x130] sm:$0xff]
        %v600 = vld [vmem:[%s442 + $0x138] sm:$0xff]
        %v601 = vld [vmem:[%s442 + $0x140] sm:$0xff]
        %v602 = vld [vmem:[%s442 + $0x148] sm:$0xff]
        %v603 = vld [vmem:[%s442 + $0x150] sm:$0xff]
        %v604 = vld [vmem:[%s442 + $0x158] sm:$0xff]
        %v605 = vld [vmem:[%s442 + $0x160] sm:$0xff]
        %v606 = vld [vmem:[%s442 + $0x168] sm:$0xff]
        %v607 = vld [vmem:[%s442 + $0x170] sm:$0xff]
        %v608 = vld [vmem:[%s442 + $0x178] sm:$0xff]
        %v609 = vld [vmem:[%s442 + $0x180] sm:$0xff]
        %v610 = vld [vmem:[%s442 + $0x188] sm:$0xff]
        %v611 = vld [vmem:[%s442 + $0x190] sm:$0xff]
        %v612 = vld [vmem:[%s442 + $0x198] sm:$0xff]
        %v613 = vld [vmem:[%s442 + $0x1a0] sm:$0xff]
        %v614 = vld [vmem:[%s442 + $0x1a8] sm:$0xff]
        %v615 = vld [vmem:[%s442 + $0x1b0] sm:$0xff]
        %v616 = vld [vmem:[%s442 + $0x1b8] sm:$0xff]
        %v617 = vld [vmem:[%s442 + $0x1c0] sm:$0xff]
        %v618 = vld [vmem:[%s442 + $0x1c8] sm:$0xff]
        %v619 = vld [vmem:[%s442 + $0x1d0] sm:$0xff]
        %v620 = vld [vmem:[%s442 + $0x1d8] sm:$0xff]
        %v621 = vld [vmem:[%s442 + $0x1e0] sm:$0xff]
        %v622 = vld [vmem:[%s442 + $0x1e8] sm:$0xff]
        %v623 = vld [vmem:[%s442 + $0x1f0] sm:$0xff]
        %v624 = vld [vmem:[%s442 + $0x1f8] sm:$0xff]
        %v625 = vld [vmem:[%s442 + $0x200] sm:$0xff]
        %v626 = vld [vmem:[%s442 + $0x208] sm:$0xff]
        %v627 = vld [vmem:[%s442 + $0x210] sm:$0xff]
        %v628 = vld [vmem:[%s442 + $0x218] sm:$0xff]
        %v629 = vld [vmem:[%s442 + $0x220] sm:$0xff]
        %v630 = vld [vmem:[%s442 + $0x228] sm:$0xff]
        %v631 = vld [vmem:[%s442 + $0x230] sm:$0xff]
        %v632 = vld [vmem:[%s442 + $0x238] sm:$0xff]
        %v633 = vld [vmem:[%s442 + $0x240] sm:$0xff]
        %v634 = vld [vmem:[%s442 + $0x248] sm:$0xff]
        %v635 = vld [vmem:[%s442 + $0x250] sm:$0xff]
        %v636 = vld [vmem:[%s442 + $0x258] sm:$0xff]
        %v637 = vld [vmem:[%s442 + $0x260] sm:$0xff]
        %v638 = vld [vmem:[%s442 + $0x268] sm:$0xff]
        %v639 = vld [vmem:[%s442 + $0x270] sm:$0xff]
        %v640 = vld [vmem:[%s442 + $0x278] sm:$0xff]
        %v641 = vld [vmem:[%s442 + $0x280] sm:$0xff]
        %v642 = vld [vmem:[%s442 + $0x288] sm:$0xff]
        %v643 = vld [vmem:[%s442 + $0x290] sm:$0xff]
        %v644 = vld [vmem:[%s442 + $0x298] sm:$0xff]
        %v645 = vld [vmem:[%s442 + $0x2a0] sm:$0xff]
        %v646 = vld [vmem:[%s442 + $0x2a8] sm:$0xff]
        %v647 = vld [vmem:[%s442 + $0x2b0] sm:$0xff]
        %v648 = vld [vmem:[%s442 + $0x2b8] sm:$0xff]
        %v649 = vld [vmem:[%s442 + $0x2c0] sm:$0xff]
        %v650 = vld [vmem:[%s442 + $0x2c8] sm:$0xff]
        %v651 = vld [vmem:[%s442 + $0x2d0] sm:$0xff]
        %v652 = vld [vmem:[%s442 + $0x2d8] sm:$0xff]
        %v653 = vld [vmem:[%s442 + $0x2e0] sm:$0xff]
        %v654 = vld [vmem:[%s442 + $0x2e8] sm:$0xff]
        %v655 = vld [vmem:[%s442 + $0x2f0] sm:$0xff]
        %v656 = vld [vmem:[%s442 + $0x2f8] sm:$0xff]
        %v657 = vld [vmem:[%s442 + $0x300] sm:$0xff]
        %v658 = vld [vmem:[%s442 + $0x308] sm:$0xff]
        %v659 = vld [vmem:[%s442 + $0x310] sm:$0xff]
        %v660 = vld [vmem:[%s442 + $0x318] sm:$0xff]
        %v661 = vld [vmem:[%s442 + $0x320] sm:$0xff]
        %v662 = vld [vmem:[%s442 + $0x328] sm:$0xff]
        %v663 = vld [vmem:[%s442 + $0x330] sm:$0xff]
        %v664 = vld [vmem:[%s442 + $0x338] sm:$0xff]
        %v665 = vld [vmem:[%s442 + $0x340] sm:$0xff]
        %v666 = vld [vmem:[%s442 + $0x348] sm:$0xff]
        %v667 = vld [vmem:[%s442 + $0x350] sm:$0xff]
        %v668 = vld [vmem:[%s442 + $0x358] sm:$0xff]
        %v669 = vld [vmem:[%s442 + $0x360] sm:$0xff]
        %v670 = vld [vmem:[%s442 + $0x368] sm:$0xff]
        %v671 = vld [vmem:[%s442 + $0x370] sm:$0xff]
        %v672 = vld [vmem:[%s442 + $0x378] sm:$0xff]
        %v673 = vld [vmem:[%s442 + $0x380] sm:$0xff]
        %v674 = vld [vmem:[%s442 + $0x388] sm:$0xff]
        %v675 = vld [vmem:[%s442 + $0x390] sm:$0xff]
        %v676 = vld [vmem:[%s442 + $0x398] sm:$0xff]
        %v677 = vld [vmem:[%s442 + $0x3a0] sm:$0xff]
        %v678 = vld [vmem:[%s442 + $0x3a8] sm:$0xff]
        %v679 = vld [vmem:[%s442 + $0x3b0] sm:$0xff]
        %v680 = vld [vmem:[%s442 + $0x3b8] sm:$0xff]
        %v681 = vld [vmem:[%s442 + $0x3c0] sm:$0xff]
        %v682 = vld [vmem:[%s442 + $0x3c8] sm:$0xff]
        %v683 = vld [vmem:[%s442 + $0x3d0] sm:$0xff]
        %v684 = vld [vmem:[%s442 + $0x3d8] sm:$0xff]
        %v685 = vld [vmem:[%s442 + $0x3e0] sm:$0xff]
        %v686 = vld [vmem:[%s442 + $0x3e8] sm:$0xff]
        %v687 = vld [vmem:[%s442 + $0x3f0] sm:$0xff]
        %v688 = vld [vmem:[%s442 + $0x3f8] sm:$0xff]
        %v689 = vld [vmem:[%s442 + $0x400] sm:$0xff]
        %v690 = vld [vmem:[%s442 + $0x408] sm:$0xff]
        %v691 = vld [vmem:[%s442 + $0x410] sm:$0xff]
        %v692 = vld [vmem:[%s442 + $0x418] sm:$0xff]
        %v693 = vld [vmem:[%s442 + $0x420] sm:$0xff]
        %v694 = vld [vmem:[%s442 + $0x428] sm:$0xff]
        %v695 = vld [vmem:[%s442 + $0x430] sm:$0xff]
        %v696 = vld [vmem:[%s442 + $0x438] sm:$0xff]
        %v697 = vld [vmem:[%s442 + $0x440] sm:$0xff]
        %v698 = vld [vmem:[%s442 + $0x448] sm:$0xff]
        %v699 = vld [vmem:[%s442 + $0x450] sm:$0xff]
        %v700 = vld [vmem:[%s442 + $0x458] sm:$0xff]
        %v701 = vld [vmem:[%s442 + $0x460] sm:$0xff]
        %v702 = vld [vmem:[%s442 + $0x468] sm:$0xff]
        %v703 = vld [vmem:[%s442 + $0x470] sm:$0xff]
        %v704 = vld [vmem:[%s442 + $0x478] sm:$0xff]
        %v705 = vld [vmem:[%s442 + $0x480] sm:$0xff]
        %v706 = vld [vmem:[%s442 + $0x488] sm:$0xff]
        %v707 = vld [vmem:[%s442 + $0x490] sm:$0xff]
        %v708 = vld [vmem:[%s442 + $0x498] sm:$0xff]
        %v709 = vld [vmem:[%s442 + $0x4a0] sm:$0xff]
        %v710 = vld [vmem:[%s442 + $0x4a8] sm:$0xff]
        %v711 = vld [vmem:[%s442 + $0x4b0] sm:$0xff]
        %v712 = vld [vmem:[%s442 + $0x4b8] sm:$0xff]
        %v713 = vld [vmem:[%s442 + $0x4c0] sm:$0xff]
        %v714 = vld [vmem:[%s442 + $0x4c8] sm:$0xff]
        %v715 = vld [vmem:[%s442 + $0x4d0] sm:$0xff]
        %v716 = vld [vmem:[%s442 + $0x4d8] sm:$0xff]
        %v717 = vld [vmem:[%s442 + $0x4e0] sm:$0xff]
        %v718 = vld [vmem:[%s442 + $0x4e8] sm:$0xff]
        %v719 = vld [vmem:[%s442 + $0x4f0] sm:$0xff]
        %v720 = vld [vmem:[%s442 + $0x4f8] sm:$0xff]
        %v721 = vld [vmem:[%s442 + $0x500] sm:$0xff]
        %v722 = vld [vmem:[%s442 + $0x508] sm:$0xff]
        %v723 = vld [vmem:[%s442 + $0x510] sm:$0xff]
        %v724 = vld [vmem:[%s442 + $0x518] sm:$0xff]
        %v725 = vld [vmem:[%s442 + $0x520] sm:$0xff]
        %v726 = vld [vmem:[%s442 + $0x528] sm:$0xff]
        %v727 = vld [vmem:[%s442 + $0x530] sm:$0xff]
        %v728 = vld [vmem:[%s442 + $0x538] sm:$0xff]
        %v729 = vld [vmem:[%s442 + $0x540] sm:$0xff]
        %v730 = vld [vmem:[%s442 + $0x548] sm:$0xff]
        %v731 = vld [vmem:[%s442 + $0x550] sm:$0xff]
        %v732 = vld [vmem:[%s442 + $0x558] sm:$0xff]
        %v733 = vld [vmem:[%s442 + $0x560] sm:$0xff]
        %v734 = vld [vmem:[%s442 + $0x568] sm:$0xff]
        %v735 = vld [vmem:[%s442 + $0x570] sm:$0xff]
        %v736 = vld [vmem:[%s442 + $0x578] sm:$0xff]
        %v737 = vld [vmem:[%s442 + $0x580] sm:$0xff]
        %v738 = vld [vmem:[%s442 + $0x588] sm:$0xff]
        %v739 = vld [vmem:[%s442 + $0x590] sm:$0xff]
        %v740 = vld [vmem:[%s442 + $0x598] sm:$0xff]
        %v741 = vld [vmem:[%s442 + $0x5a0] sm:$0xff]
        %v742 = vld [vmem:[%s442 + $0x5a8] sm:$0xff]
        %v743 = vld [vmem:[%s442 + $0x5b0] sm:$0xff]
        %v744 = vld [vmem:[%s442 + $0x5b8] sm:$0xff]
        %v745 = vld [vmem:[%s442 + $0x5c0] sm:$0xff]
        %v746 = vld [vmem:[%s442 + $0x5c8] sm:$0xff]
        %v747 = vld [vmem:[%s442 + $0x5d0] sm:$0xff]
        %v748 = vld [vmem:[%s442 + $0x5d8] sm:$0xff]
        %v749 = vld [vmem:[%s442 + $0x5e0] sm:$0xff]
        %v750 = vld [vmem:[%s442 + $0x5e8] sm:$0xff]
        %v751 = vld [vmem:[%s442 + $0x5f0] sm:$0xff]
        %v752 = vld [vmem:[%s442 + $0x5f8] sm:$0xff]
        %v753 = vld [vmem:[%s442 + $0x600] sm:$0xff]
        %v754 = vld [vmem:[%s442 + $0x608] sm:$0xff]
        %v755 = vld [vmem:[%s442 + $0x610] sm:$0xff]
        %v756 = vld [vmem:[%s442 + $0x618] sm:$0xff]
        %v757 = vld [vmem:[%s442 + $0x620] sm:$0xff]
        %v758 = vld [vmem:[%s442 + $0x628] sm:$0xff]
        %v759 = vld [vmem:[%s442 + $0x630] sm:$0xff]
        %v760 = vld [vmem:[%s442 + $0x638] sm:$0xff]
        %v761 = vld [vmem:[%s442 + $0x640] sm:$0xff]
        %v762 = vld [vmem:[%s442 + $0x648] sm:$0xff]
        %v763 = vld [vmem:[%s442 + $0x650] sm:$0xff]
        %v764 = vld [vmem:[%s442 + $0x658] sm:$0xff]
        %v765 = vld [vmem:[%s442 + $0x660] sm:$0xff]
        %v766 = vld [vmem:[%s442 + $0x668] sm:$0xff]
        %v767 = vld [vmem:[%s442 + $0x670] sm:$0xff]
        %v768 = vld [vmem:[%s442 + $0x678] sm:$0xff]
        %v769 = vld [vmem:[%s442 + $0x680] sm:$0xff]
        %v770 = vld [vmem:[%s442 + $0x688] sm:$0xff]
        %v771 = vld [vmem:[%s442 + $0x690] sm:$0xff]
        %v772 = vld [vmem:[%s442 + $0x698] sm:$0xff]
        %v773 = vld [vmem:[%s442 + $0x6a0] sm:$0xff]
        %v774 = vld [vmem:[%s442 + $0x6a8] sm:$0xff]
        %v775 = vld [vmem:[%s442 + $0x6b0] sm:$0xff]
        %v776 = vld [vmem:[%s442 + $0x6b8] sm:$0xff]
        %v777 = vld [vmem:[%s442 + $0x6c0] sm:$0xff]
        %v778 = vld [vmem:[%s442 + $0x6c8] sm:$0xff]
        %v779 = vld [vmem:[%s442 + $0x6d0] sm:$0xff]
        %v780 = vld [vmem:[%s442 + $0x6d8] sm:$0xff]
        %v781 = vld [vmem:[%s442 + $0x6e0] sm:$0xff]
        %v782 = vld [vmem:[%s442 + $0x6e8] sm:$0xff]
        %v783 = vld [vmem:[%s442 + $0x6f0] sm:$0xff]
        %v784 = vld [vmem:[%s442 + $0x6f8] sm:$0xff]
        %v785 = vld [vmem:[%s442 + $0x700] sm:$0xff]
        %v786 = vld [vmem:[%s442 + $0x708] sm:$0xff]
        %v787 = vld [vmem:[%s442 + $0x710] sm:$0xff]
        %v788 = vld [vmem:[%s442 + $0x718] sm:$0xff]
        %v789 = vld [vmem:[%s442 + $0x720] sm:$0xff]
        %v790 = vld [vmem:[%s442 + $0x728] sm:$0xff]
        %v791 = vld [vmem:[%s442 + $0x730] sm:$0xff]
        %v792 = vld [vmem:[%s442 + $0x738] sm:$0xff]
        %v793 = vld [vmem:[%s442 + $0x740] sm:$0xff]
        %v794 = vld [vmem:[%s442 + $0x748] sm:$0xff]
        %v795 = vld [vmem:[%s442 + $0x750] sm:$0xff]
        %v796 = vld [vmem:[%s442 + $0x758] sm:$0xff]
        %v797 = vld [vmem:[%s442 + $0x760] sm:$0xff]
        %v798 = vld [vmem:[%s442 + $0x768] sm:$0xff]
        %v799 = vld [vmem:[%s442 + $0x770] sm:$0xff]
        %v800 = vld [vmem:[%s442 + $0x778] sm:$0xff]
        %v801 = vld [vmem:[%s442 + $0x780] sm:$0xff]
        %v802 = vld [vmem:[%s442 + $0x788] sm:$0xff]
        %v803 = vld [vmem:[%s442 + $0x790] sm:$0xff]
        %v804 = vld [vmem:[%s442 + $0x798] sm:$0xff]
        %v805 = vld [vmem:[%s442 + $0x7a0] sm:$0xff]
        %v806 = vld [vmem:[%s442 + $0x7a8] sm:$0xff]
        %v807 = vld [vmem:[%s442 + $0x7b0] sm:$0xff]
        %v808 = vld [vmem:[%s442 + $0x7b8] sm:$0xff]
        %v809 = vld [vmem:[%s442 + $0x7c0] sm:$0xff]
        %v810 = vld [vmem:[%s442 + $0x7c8] sm:$0xff]
        %v811 = vld [vmem:[%s442 + $0x7d0] sm:$0xff]
        %v812 = vld [vmem:[%s442 + $0x7d8] sm:$0xff]
        %v813 = vld [vmem:[%s442 + $0x7e0] sm:$0xff]
        %v814 = vld [vmem:[%s442 + $0x7e8] sm:$0xff]
        %v815 = vld [vmem:[%s442 + $0x7f0] sm:$0xff]
        %v816 = vld [vmem:[%s442 + $0x7f8] sm:$0xff]
        %v1073 = vunpack.c.l.b16 %v561
        %v1074 = vunpack.c.h.b16 %v561
        %v1075 = vunpack.c.l.b16 %v562
        %v1076 = vunpack.c.h.b16 %v562
        %v1077 = vunpack.c.l.b16 %v563
        %v1078 = vunpack.c.h.b16 %v563
        %v1079 = vunpack.c.l.b16 %v564
        %v1080 = vunpack.c.h.b16 %v564
        %v1081 = vunpack.c.l.b16 %v565
        %v1082 = vunpack.c.h.b16 %v565
        %v1083 = vunpack.c.l.b16 %v566
        %v1084 = vunpack.c.h.b16 %v566
        %v1085 = vunpack.c.l.b16 %v567
        %v1086 = vunpack.c.h.b16 %v567
        %v1087 = vunpack.c.l.b16 %v568
        %v1088 = vunpack.c.h.b16 %v568
        %v1089 = vunpack.c.l.b16 %v569
        %v1090 = vunpack.c.h.b16 %v569
        %v1091 = vunpack.c.l.b16 %v570
        %v1092 = vunpack.c.h.b16 %v570
        %v1093 = vunpack.c.l.b16 %v571
        %v1094 = vunpack.c.h.b16 %v571
        %v1095 = vunpack.c.l.b16 %v572
        %v1096 = vunpack.c.h.b16 %v572
        %v1097 = vunpack.c.l.b16 %v573
        %v1098 = vunpack.c.h.b16 %v573
        %v1099 = vunpack.c.l.b16 %v574
        %v1100 = vunpack.c.h.b16 %v574
        %v1101 = vunpack.c.l.b16 %v575
        %v1102 = vunpack.c.h.b16 %v575
        %v1103 = vunpack.c.l.b16 %v576
        %v1104 = vunpack.c.h.b16 %v576
        %v1105 = vunpack.c.l.b16 %v577
        %v1106 = vunpack.c.h.b16 %v577
        %v1107 = vunpack.c.l.b16 %v578
        %v1108 = vunpack.c.h.b16 %v578
        %v1109 = vunpack.c.l.b16 %v579
        %v1110 = vunpack.c.h.b16 %v579
        %v1111 = vunpack.c.l.b16 %v580
        %v1112 = vunpack.c.h.b16 %v580
        %v1113 = vunpack.c.l.b16 %v581
        %v1114 = vunpack.c.h.b16 %v581
        %v1115 = vunpack.c.l.b16 %v582
        %v1116 = vunpack.c.h.b16 %v582
        %v1117 = vunpack.c.l.b16 %v583
        %v1118 = vunpack.c.h.b16 %v583
        %v1119 = vunpack.c.l.b16 %v584
        %v1120 = vunpack.c.h.b16 %v584
        %v1121 = vunpack.c.l.b16 %v585
        %v1122 = vunpack.c.h.b16 %v585
        %v1123 = vunpack.c.l.b16 %v586
        %v1124 = vunpack.c.h.b16 %v586
        %v1125 = vunpack.c.l.b16 %v587
        %v1126 = vunpack.c.h.b16 %v587
        %v1127 = vunpack.c.l.b16 %v588
        %v1128 = vunpack.c.h.b16 %v588
        %v1129 = vunpack.c.l.b16 %v589
        %v1130 = vunpack.c.h.b16 %v589
        %v1131 = vunpack.c.l.b16 %v590
        %v1132 = vunpack.c.h.b16 %v590
        %v1133 = vunpack.c.l.b16 %v591
        %v1134 = vunpack.c.h.b16 %v591
        %v1135 = vunpack.c.l.b16 %v592
        %v1136 = vunpack.c.h.b16 %v592
        %v1137 = vunpack.c.l.b16 %v593
        %v1138 = vunpack.c.h.b16 %v593
        %v1139 = vunpack.c.l.b16 %v594
        %v1140 = vunpack.c.h.b16 %v594
        %v1141 = vunpack.c.l.b16 %v595
        %v1142 = vunpack.c.h.b16 %v595
        %v1143 = vunpack.c.l.b16 %v596
        %v1144 = vunpack.c.h.b16 %v596
        %v1145 = vunpack.c.l.b16 %v597
        %v1146 = vunpack.c.h.b16 %v597
        %v1147 = vunpack.c.l.b16 %v598
        %v1148 = vunpack.c.h.b16 %v598
        %v1149 = vunpack.c.l.b16 %v599
        %v1150 = vunpack.c.h.b16 %v599
        %v1151 = vunpack.c.l.b16 %v600
        %v1152 = vunpack.c.h.b16 %v600
        %v1153 = vunpack.c.l.b16 %v601
        %v1154 = vunpack.c.h.b16 %v601
        %v1155 = vunpack.c.l.b16 %v602
        %v1156 = vunpack.c.h.b16 %v602
        %v1157 = vunpack.c.l.b16 %v603
        %v1158 = vunpack.c.h.b16 %v603
        %v1159 = vunpack.c.l.b16 %v604
        %v1160 = vunpack.c.h.b16 %v604
        %v1161 = vunpack.c.l.b16 %v605
        %v1162 = vunpack.c.h.b16 %v605
        %v1163 = vunpack.c.l.b16 %v606
        %v1164 = vunpack.c.h.b16 %v606
        %v1165 = vunpack.c.l.b16 %v607
        %v1166 = vunpack.c.h.b16 %v607
        %v1167 = vunpack.c.l.b16 %v608
        %v1168 = vunpack.c.h.b16 %v608
        %v1169 = vunpack.c.l.b16 %v609
        %v1170 = vunpack.c.h.b16 %v609
        %v1171 = vunpack.c.l.b16 %v610
        %v1172 = vunpack.c.h.b16 %v610
        %v1173 = vunpack.c.l.b16 %v611
        %v1174 = vunpack.c.h.b16 %v611
        %v1175 = vunpack.c.l.b16 %v612
        %v1176 = vunpack.c.h.b16 %v612
        %v1177 = vunpack.c.l.b16 %v613
        %v1178 = vunpack.c.h.b16 %v613
        %v1179 = vunpack.c.l.b16 %v614
        %v1180 = vunpack.c.h.b16 %v614
        %v1181 = vunpack.c.l.b16 %v615
        %v1182 = vunpack.c.h.b16 %v615
        %v1183 = vunpack.c.l.b16 %v616
        %v1184 = vunpack.c.h.b16 %v616
        %v1185 = vunpack.c.l.b16 %v617
        %v1186 = vunpack.c.h.b16 %v617
        %v1187 = vunpack.c.l.b16 %v618
        %v1188 = vunpack.c.h.b16 %v618
        %v1189 = vunpack.c.l.b16 %v619
        %v1190 = vunpack.c.h.b16 %v619
        %v1191 = vunpack.c.l.b16 %v620
        %v1192 = vunpack.c.h.b16 %v620
        %v1193 = vunpack.c.l.b16 %v621
        %v1194 = vunpack.c.h.b16 %v621
        %v1195 = vunpack.c.l.b16 %v622
        %v1196 = vunpack.c.h.b16 %v622
        %v1197 = vunpack.c.l.b16 %v623
        %v1198 = vunpack.c.h.b16 %v623
        %v1199 = vunpack.c.l.b16 %v624
        %v1200 = vunpack.c.h.b16 %v624
        %v1201 = vunpack.c.l.b16 %v625
        %v1202 = vunpack.c.h.b16 %v625
        %v1203 = vunpack.c.l.b16 %v626
        %v1204 = vunpack.c.h.b16 %v626
        %v1205 = vunpack.c.l.b16 %v627
        %v1206 = vunpack.c.h.b16 %v627
        %v1207 = vunpack.c.l.b16 %v628
        %v1208 = vunpack.c.h.b16 %v628
        %v1209 = vunpack.c.l.b16 %v629
        %v1210 = vunpack.c.h.b16 %v629
        %v1211 = vunpack.c.l.b16 %v630
        %v1212 = vunpack.c.h.b16 %v630
        %v1213 = vunpack.c.l.b16 %v631
        %v1214 = vunpack.c.h.b16 %v631
        %v1215 = vunpack.c.l.b16 %v632
        %v1216 = vunpack.c.h.b16 %v632
        %v1217 = vunpack.c.l.b16 %v633
        %v1218 = vunpack.c.h.b16 %v633
        %v1219 = vunpack.c.l.b16 %v634
        %v1220 = vunpack.c.h.b16 %v634
        %v1221 = vunpack.c.l.b16 %v635
        %v1222 = vunpack.c.h.b16 %v635
        %v1223 = vunpack.c.l.b16 %v636
        %v1224 = vunpack.c.h.b16 %v636
        %v1225 = vunpack.c.l.b16 %v637
        %v1226 = vunpack.c.h.b16 %v637
        %v1227 = vunpack.c.l.b16 %v638
        %v1228 = vunpack.c.h.b16 %v638
        %v1229 = vunpack.c.l.b16 %v639
        %v1230 = vunpack.c.h.b16 %v639
        %v1231 = vunpack.c.l.b16 %v640
        %v1232 = vunpack.c.h.b16 %v640
        %v1233 = vunpack.c.l.b16 %v641
        %v1234 = vunpack.c.h.b16 %v641
        %v1235 = vunpack.c.l.b16 %v642
        %v1236 = vunpack.c.h.b16 %v642
        %v1237 = vunpack.c.l.b16 %v643
        %v1238 = vunpack.c.h.b16 %v643
        %v1239 = vunpack.c.l.b16 %v644
        %v1240 = vunpack.c.h.b16 %v644
        %v1241 = vunpack.c.l.b16 %v645
        %v1242 = vunpack.c.h.b16 %v645
        %v1243 = vunpack.c.l.b16 %v646
        %v1244 = vunpack.c.h.b16 %v646
        %v1245 = vunpack.c.l.b16 %v647
        %v1246 = vunpack.c.h.b16 %v647
        %v1247 = vunpack.c.l.b16 %v648
        %v1248 = vunpack.c.h.b16 %v648
        %v1249 = vunpack.c.l.b16 %v649
        %v1250 = vunpack.c.h.b16 %v649
        %v1251 = vunpack.c.l.b16 %v650
        %v1252 = vunpack.c.h.b16 %v650
        %v1253 = vunpack.c.l.b16 %v651
        %v1254 = vunpack.c.h.b16 %v651
        %v1255 = vunpack.c.l.b16 %v652
        %v1256 = vunpack.c.h.b16 %v652
        %v1257 = vunpack.c.l.b16 %v653
        %v1258 = vunpack.c.h.b16 %v653
        %v1259 = vunpack.c.l.b16 %v654
        %v1260 = vunpack.c.h.b16 %v654
        %v1261 = vunpack.c.l.b16 %v655
        %v1262 = vunpack.c.h.b16 %v655
        %v1263 = vunpack.c.l.b16 %v656
        %v1264 = vunpack.c.h.b16 %v656
        %v1265 = vunpack.c.l.b16 %v657
        %v1266 = vunpack.c.h.b16 %v657
        %v1267 = vunpack.c.l.b16 %v658
        %v1268 = vunpack.c.h.b16 %v658
        %v1269 = vunpack.c.l.b16 %v659
        %v1270 = vunpack.c.h.b16 %v659
        %v1271 = vunpack.c.l.b16 %v660
        %v1272 = vunpack.c.h.b16 %v660
        %v1273 = vunpack.c.l.b16 %v661
        %v1274 = vunpack.c.h.b16 %v661
        %v1275 = vunpack.c.l.b16 %v662
        %v1276 = vunpack.c.h.b16 %v662
        %v1277 = vunpack.c.l.b16 %v663
        %v1278 = vunpack.c.h.b16 %v663
        %v1279 = vunpack.c.l.b16 %v664
        %v1280 = vunpack.c.h.b16 %v664
        %v1281 = vunpack.c.l.b16 %v665
        %v1282 = vunpack.c.h.b16 %v665
        %v1283 = vunpack.c.l.b16 %v666
        %v1284 = vunpack.c.h.b16 %v666
        %v1285 = vunpack.c.l.b16 %v667
        %v1286 = vunpack.c.h.b16 %v667
        %v1287 = vunpack.c.l.b16 %v668
        %v1288 = vunpack.c.h.b16 %v668
        %v1289 = vunpack.c.l.b16 %v669
        %v1290 = vunpack.c.h.b16 %v669
        %v1291 = vunpack.c.l.b16 %v670
        %v1292 = vunpack.c.h.b16 %v670
        %v1293 = vunpack.c.l.b16 %v671
        %v1294 = vunpack.c.h.b16 %v671
        %v1295 = vunpack.c.l.b16 %v672
        %v1296 = vunpack.c.h.b16 %v672
        %v1297 = vunpack.c.l.b16 %v673
        %v1298 = vunpack.c.h.b16 %v673
        %v1299 = vunpack.c.l.b16 %v674
        %v1300 = vunpack.c.h.b16 %v674
        %v1301 = vunpack.c.l.b16 %v675
        %v1302 = vunpack.c.h.b16 %v675
        %v1303 = vunpack.c.l.b16 %v676
        %v1304 = vunpack.c.h.b16 %v676
        %v1305 = vunpack.c.l.b16 %v677
        %v1306 = vunpack.c.h.b16 %v677
        %v1307 = vunpack.c.l.b16 %v678
        %v1308 = vunpack.c.h.b16 %v678
        %v1309 = vunpack.c.l.b16 %v679
        %v1310 = vunpack.c.h.b16 %v679
        %v1311 = vunpack.c.l.b16 %v680
        %v1312 = vunpack.c.h.b16 %v680
        %v1313 = vunpack.c.l.b16 %v681
        %v1314 = vunpack.c.h.b16 %v681
        %v1315 = vunpack.c.l.b16 %v682
        %v1316 = vunpack.c.h.b16 %v682
        %v1317 = vunpack.c.l.b16 %v683
        %v1318 = vunpack.c.h.b16 %v683
        %v1319 = vunpack.c.l.b16 %v684
        %v1320 = vunpack.c.h.b16 %v684
        %v1321 = vunpack.c.l.b16 %v685
        %v1322 = vunpack.c.h.b16 %v685
        %v1323 = vunpack.c.l.b16 %v686
        %v1324 = vunpack.c.h.b16 %v686
        %v1325 = vunpack.c.l.b16 %v687
        %v1326 = vunpack.c.h.b16 %v687
        %v1327 = vunpack.c.l.b16 %v688
        %v1328 = vunpack.c.h.b16 %v688
        %v1329 = vunpack.c.l.b16 %v689
        %v1330 = vunpack.c.h.b16 %v689
        %v1331 = vunpack.c.l.b16 %v690
        %v1332 = vunpack.c.h.b16 %v690
        %v1333 = vunpack.c.l.b16 %v691
        %v1334 = vunpack.c.h.b16 %v691
        %v1335 = vunpack.c.l.b16 %v692
        %v1336 = vunpack.c.h.b16 %v692
        %v1337 = vunpack.c.l.b16 %v693
        %v1338 = vunpack.c.h.b16 %v693
        %v1339 = vunpack.c.l.b16 %v694
        %v1340 = vunpack.c.h.b16 %v694
        %v1341 = vunpack.c.l.b16 %v695
        %v1342 = vunpack.c.h.b16 %v695
        %v1343 = vunpack.c.l.b16 %v696
        %v1344 = vunpack.c.h.b16 %v696
        %v1345 = vunpack.c.l.b16 %v697
        %v1346 = vunpack.c.h.b16 %v697
        %v1347 = vunpack.c.l.b16 %v698
        %v1348 = vunpack.c.h.b16 %v698
        %v1349 = vunpack.c.l.b16 %v699
        %v1350 = vunpack.c.h.b16 %v699
        %v1351 = vunpack.c.l.b16 %v700
        %v1352 = vunpack.c.h.b16 %v700
        %v1353 = vunpack.c.l.b16 %v701
        %v1354 = vunpack.c.h.b16 %v701
        %v1355 = vunpack.c.l.b16 %v702
        %v1356 = vunpack.c.h.b16 %v702
        %v1357 = vunpack.c.l.b16 %v703
        %v1358 = vunpack.c.h.b16 %v703
        %v1359 = vunpack.c.l.b16 %v704
        %v1360 = vunpack.c.h.b16 %v704
        %v1361 = vunpack.c.l.b16 %v705
        %v1362 = vunpack.c.h.b16 %v705
        %v1363 = vunpack.c.l.b16 %v706
        %v1364 = vunpack.c.h.b16 %v706
        %v1365 = vunpack.c.l.b16 %v707
        %v1366 = vunpack.c.h.b16 %v707
        %v1367 = vunpack.c.l.b16 %v708
        %v1368 = vunpack.c.h.b16 %v708
        %v1369 = vunpack.c.l.b16 %v709
        %v1370 = vunpack.c.h.b16 %v709
        %v1371 = vunpack.c.l.b16 %v710
        %v1372 = vunpack.c.h.b16 %v710
        %v1373 = vunpack.c.l.b16 %v711
        %v1374 = vunpack.c.h.b16 %v711
        %v1375 = vunpack.c.l.b16 %v712
        %v1376 = vunpack.c.h.b16 %v712
        %v1377 = vunpack.c.l.b16 %v713
        %v1378 = vunpack.c.h.b16 %v713
        %v1379 = vunpack.c.l.b16 %v714
        %v1380 = vunpack.c.h.b16 %v714
        %v1381 = vunpack.c.l.b16 %v715
        %v1382 = vunpack.c.h.b16 %v715
        %v1383 = vunpack.c.l.b16 %v716
        %v1384 = vunpack.c.h.b16 %v716
        %v1385 = vunpack.c.l.b16 %v717
        %v1386 = vunpack.c.h.b16 %v717
        %v1387 = vunpack.c.l.b16 %v718
        %v1388 = vunpack.c.h.b16 %v718
        %v1389 = vunpack.c.l.b16 %v719
        %v1390 = vunpack.c.h.b16 %v719
        %v1391 = vunpack.c.l.b16 %v720
        %v1392 = vunpack.c.h.b16 %v720
        %v1393 = vunpack.c.l.b16 %v721
        %v1394 = vunpack.c.h.b16 %v721
        %v1395 = vunpack.c.l.b16 %v722
        %v1396 = vunpack.c.h.b16 %v722
        %v1397 = vunpack.c.l.b16 %v723
        %v1398 = vunpack.c.h.b16 %v723
        %v1399 = vunpack.c.l.b16 %v724
        %v1400 = vunpack.c.h.b16 %v724
        %v1401 = vunpack.c.l.b16 %v725
        %v1402 = vunpack.c.h.b16 %v725
        %v1403 = vunpack.c.l.b16 %v726
        %v1404 = vunpack.c.h.b16 %v726
        %v1405 = vunpack.c.l.b16 %v727
        %v1406 = vunpack.c.h.b16 %v727
        %v1407 = vunpack.c.l.b16 %v728
        %v1408 = vunpack.c.h.b16 %v728
        %v1409 = vunpack.c.l.b16 %v729
        %v1410 = vunpack.c.h.b16 %v729
        %v1411 = vunpack.c.l.b16 %v730
        %v1412 = vunpack.c.h.b16 %v730
        %v1413 = vunpack.c.l.b16 %v731
        %v1414 = vunpack.c.h.b16 %v731
        %v1415 = vunpack.c.l.b16 %v732
        %v1416 = vunpack.c.h.b16 %v732
        %v1417 = vunpack.c.l.b16 %v733
        %v1418 = vunpack.c.h.b16 %v733
        %v1419 = vunpack.c.l.b16 %v734
        %v1420 = vunpack.c.h.b16 %v734
        %v1421 = vunpack.c.l.b16 %v735
        %v1422 = vunpack.c.h.b16 %v735
        %v1423 = vunpack.c.l.b16 %v736
        %v1424 = vunpack.c.h.b16 %v736
        %v1425 = vunpack.c.l.b16 %v737
        %v1426 = vunpack.c.h.b16 %v737
        %v1427 = vunpack.c.l.b16 %v738
        %v1428 = vunpack.c.h.b16 %v738
        %v1429 = vunpack.c.l.b16 %v739
        %v1430 = vunpack.c.h.b16 %v739
        %v1431 = vunpack.c.l.b16 %v740
        %v1432 = vunpack.c.h.b16 %v740
        %v1433 = vunpack.c.l.b16 %v741
        %v1434 = vunpack.c.h.b16 %v741
        %v1435 = vunpack.c.l.b16 %v742
        %v1436 = vunpack.c.h.b16 %v742
        %v1437 = vunpack.c.l.b16 %v743
        %v1438 = vunpack.c.h.b16 %v743
        %v1439 = vunpack.c.l.b16 %v744
        %v1440 = vunpack.c.h.b16 %v744
        %v1441 = vunpack.c.l.b16 %v745
        %v1442 = vunpack.c.h.b16 %v745
        %v1443 = vunpack.c.l.b16 %v746
        %v1444 = vunpack.c.h.b16 %v746
        %v1445 = vunpack.c.l.b16 %v747
        %v1446 = vunpack.c.h.b16 %v747
        %v1447 = vunpack.c.l.b16 %v748
        %v1448 = vunpack.c.h.b16 %v748
        %v1449 = vunpack.c.l.b16 %v749
        %v1450 = vunpack.c.h.b16 %v749
        %v1451 = vunpack.c.l.b16 %v750
        %v1452 = vunpack.c.h.b16 %v750
        %v1453 = vunpack.c.l.b16 %v751
        %v1454 = vunpack.c.h.b16 %v751
        %v1455 = vunpack.c.l.b16 %v752
        %v1456 = vunpack.c.h.b16 %v752
        %v1457 = vunpack.c.l.b16 %v753
        %v1458 = vunpack.c.h.b16 %v753
        %v1459 = vunpack.c.l.b16 %v754
        %v1460 = vunpack.c.h.b16 %v754
        %v1461 = vunpack.c.l.b16 %v755
        %v1462 = vunpack.c.h.b16 %v755
        %v1463 = vunpack.c.l.b16 %v756
        %v1464 = vunpack.c.h.b16 %v756
        %v1465 = vunpack.c.l.b16 %v757
        %v1466 = vunpack.c.h.b16 %v757
        %v1467 = vunpack.c.l.b16 %v758
        %v1468 = vunpack.c.h.b16 %v758
        %v1469 = vunpack.c.l.b16 %v759
        %v1470 = vunpack.c.h.b16 %v759
        %v1471 = vunpack.c.l.b16 %v760
        %v1472 = vunpack.c.h.b16 %v760
        %v1473 = vunpack.c.l.b16 %v761
        %v1474 = vunpack.c.h.b16 %v761
        %v1475 = vunpack.c.l.b16 %v762
        %v1476 = vunpack.c.h.b16 %v762
        %v1477 = vunpack.c.l.b16 %v763
        %v1478 = vunpack.c.h.b16 %v763
        %v1479 = vunpack.c.l.b16 %v764
        %v1480 = vunpack.c.h.b16 %v764
        %v1481 = vunpack.c.l.b16 %v765
        %v1482 = vunpack.c.h.b16 %v765
        %v1483 = vunpack.c.l.b16 %v766
        %v1484 = vunpack.c.h.b16 %v766
        %v1485 = vunpack.c.l.b16 %v767
        %v1486 = vunpack.c.h.b16 %v767
        %v1487 = vunpack.c.l.b16 %v768
        %v1488 = vunpack.c.h.b16 %v768
        %v1489 = vunpack.c.l.b16 %v769
        %v1490 = vunpack.c.h.b16 %v769
        %v1491 = vunpack.c.l.b16 %v770
        %v1492 = vunpack.c.h.b16 %v770
        %v1493 = vunpack.c.l.b16 %v771
        %v1494 = vunpack.c.h.b16 %v771
        %v1495 = vunpack.c.l.b16 %v772
        %v1496 = vunpack.c.h.b16 %v772
        %v1497 = vunpack.c.l.b16 %v773
        %v1498 = vunpack.c.h.b16 %v773
        %v1499 = vunpack.c.l.b16 %v774
        %v1500 = vunpack.c.h.b16 %v774
        %v1501 = vunpack.c.l.b16 %v775
        %v1502 = vunpack.c.h.b16 %v775
        %v1503 = vunpack.c.l.b16 %v776
        %v1504 = vunpack.c.h.b16 %v776
        %v1505 = vunpack.c.l.b16 %v777
        %v1506 = vunpack.c.h.b16 %v777
        %v1507 = vunpack.c.l.b16 %v778
        %v1508 = vunpack.c.h.b16 %v778
        %v1509 = vunpack.c.l.b16 %v779
        %v1510 = vunpack.c.h.b16 %v779
        %v1511 = vunpack.c.l.b16 %v780
        %v1512 = vunpack.c.h.b16 %v780
        %v1513 = vunpack.c.l.b16 %v781
        %v1514 = vunpack.c.h.b16 %v781
        %v1515 = vunpack.c.l.b16 %v782
        %v1516 = vunpack.c.h.b16 %v782
        %v1517 = vunpack.c.l.b16 %v783
        %v1518 = vunpack.c.h.b16 %v783
        %v1519 = vunpack.c.l.b16 %v784
        %v1520 = vunpack.c.h.b16 %v784
        %v1521 = vunpack.c.l.b16 %v785
        %v1522 = vunpack.c.h.b16 %v785
        %v1523 = vunpack.c.l.b16 %v786
        %v1524 = vunpack.c.h.b16 %v786
        %v1525 = vunpack.c.l.b16 %v787
        %v1526 = vunpack.c.h.b16 %v787
        %v1527 = vunpack.c.l.b16 %v788
        %v1528 = vunpack.c.h.b16 %v788
        %v1529 = vunpack.c.l.b16 %v789
        %v1530 = vunpack.c.h.b16 %v789
        %v1531 = vunpack.c.l.b16 %v790
        %v1532 = vunpack.c.h.b16 %v790
        %v1533 = vunpack.c.l.b16 %v791
        %v1534 = vunpack.c.h.b16 %v791
        %v1535 = vunpack.c.l.b16 %v792
        %v1536 = vunpack.c.h.b16 %v792
        %v1537 = vunpack.c.l.b16 %v793
        %v1538 = vunpack.c.h.b16 %v793
        %v1539 = vunpack.c.l.b16 %v794
        %v1540 = vunpack.c.h.b16 %v794
        %v1541 = vunpack.c.l.b16 %v795
        %v1542 = vunpack.c.h.b16 %v795
        %v1543 = vunpack.c.l.b16 %v796
        %v1544 = vunpack.c.h.b16 %v796
        %v1545 = vunpack.c.l.b16 %v797
        %v1546 = vunpack.c.h.b16 %v797
        %v1547 = vunpack.c.l.b16 %v798
        %v1548 = vunpack.c.h.b16 %v798
        %v1549 = vunpack.c.l.b16 %v799
        %v1550 = vunpack.c.h.b16 %v799
        %v1551 = vunpack.c.l.b16 %v800
        %v1552 = vunpack.c.h.b16 %v800
        %v1553 = vunpack.c.l.b16 %v801
        %v1554 = vunpack.c.h.b16 %v801
        %v1555 = vunpack.c.l.b16 %v802
        %v1556 = vunpack.c.h.b16 %v802
        %v1557 = vunpack.c.l.b16 %v803
        %v1558 = vunpack.c.h.b16 %v803
        %v1559 = vunpack.c.l.b16 %v804
        %v1560 = vunpack.c.h.b16 %v804
        %v1561 = vunpack.c.l.b16 %v805
        %v1562 = vunpack.c.h.b16 %v805
        %v1563 = vunpack.c.l.b16 %v806
        %v1564 = vunpack.c.h.b16 %v806
        %v1565 = vunpack.c.l.b16 %v807
        %v1566 = vunpack.c.h.b16 %v807
        %v1567 = vunpack.c.l.b16 %v808
        %v1568 = vunpack.c.h.b16 %v808
        %v1569 = vunpack.c.l.b16 %v809
        %v1570 = vunpack.c.h.b16 %v809
        %v1571 = vunpack.c.l.b16 %v810
        %v1572 = vunpack.c.h.b16 %v810
        %v1573 = vunpack.c.l.b16 %v811
        %v1574 = vunpack.c.h.b16 %v811
        %v1575 = vunpack.c.l.b16 %v812
        %v1576 = vunpack.c.h.b16 %v812
        %v1577 = vunpack.c.l.b16 %v813
        %v1578 = vunpack.c.h.b16 %v813
        %v1579 = vunpack.c.l.b16 %v814
        %v1580 = vunpack.c.h.b16 %v814
        %v1581 = vunpack.c.l.b16 %v815
        %v1582 = vunpack.c.h.b16 %v815
        %v1583 = vunpack.c.l.b16 %v816
        %v1584 = vunpack.c.h.b16 %v816
        %v1585 = vpack.c.b16 %v1077, %v1073
        %v1586 = vpack.c.b16 %v1078, %v1074
        %v1587 = vpack.c.b16 %v1079, %v1075
        %v1588 = vpack.c.b16 %v1080, %v1076
        %v1589 = vpack.c.b16 %v1085, %v1081
        %v1590 = vpack.c.b16 %v1086, %v1082
        %v1591 = vpack.c.b16 %v1087, %v1083
        %v1592 = vpack.c.b16 %v1088, %v1084
        %v1593 = vpack.c.b16 %v1093, %v1089
        %v1594 = vpack.c.b16 %v1094, %v1090
        %v1595 = vpack.c.b16 %v1095, %v1091
        %v1596 = vpack.c.b16 %v1096, %v1092
        %v1597 = vpack.c.b16 %v1101, %v1097
        %v1598 = vpack.c.b16 %v1102, %v1098
        %v1599 = vpack.c.b16 %v1103, %v1099
        %v1600 = vpack.c.b16 %v1104, %v1100
        %v1601 = vpack.c.b16 %v1109, %v1105
        %v1602 = vpack.c.b16 %v1110, %v1106
        %v1603 = vpack.c.b16 %v1111, %v1107
        %v1604 = vpack.c.b16 %v1112, %v1108
        %v1605 = vpack.c.b16 %v1117, %v1113
        %v1606 = vpack.c.b16 %v1118, %v1114
        %v1607 = vpack.c.b16 %v1119, %v1115
        %v1608 = vpack.c.b16 %v1120, %v1116
        %v1609 = vpack.c.b16 %v1125, %v1121
        %v1610 = vpack.c.b16 %v1126, %v1122
        %v1611 = vpack.c.b16 %v1127, %v1123
        %v1612 = vpack.c.b16 %v1128, %v1124
        %v1613 = vpack.c.b16 %v1133, %v1129
        %v1614 = vpack.c.b16 %v1134, %v1130
        %v1615 = vpack.c.b16 %v1135, %v1131
        %v1616 = vpack.c.b16 %v1136, %v1132
        %v1617 = vpack.c.b16 %v1141, %v1137
        %v1618 = vpack.c.b16 %v1142, %v1138
        %v1619 = vpack.c.b16 %v1143, %v1139
        %v1620 = vpack.c.b16 %v1144, %v1140
        %v1621 = vpack.c.b16 %v1149, %v1145
        %v1622 = vpack.c.b16 %v1150, %v1146
        %v1623 = vpack.c.b16 %v1151, %v1147
        %v1624 = vpack.c.b16 %v1152, %v1148
        %v1625 = vpack.c.b16 %v1157, %v1153
        %v1626 = vpack.c.b16 %v1158, %v1154
        %v1627 = vpack.c.b16 %v1159, %v1155
        %v1628 = vpack.c.b16 %v1160, %v1156
        %v1629 = vpack.c.b16 %v1165, %v1161
        %v1630 = vpack.c.b16 %v1166, %v1162
        %v1631 = vpack.c.b16 %v1167, %v1163
        %v1632 = vpack.c.b16 %v1168, %v1164
        %v1633 = vpack.c.b16 %v1173, %v1169
        %v1634 = vpack.c.b16 %v1174, %v1170
        %v1635 = vpack.c.b16 %v1175, %v1171
        %v1636 = vpack.c.b16 %v1176, %v1172
        %v1637 = vpack.c.b16 %v1181, %v1177
        %v1638 = vpack.c.b16 %v1182, %v1178
        %v1639 = vpack.c.b16 %v1183, %v1179
        %v1640 = vpack.c.b16 %v1184, %v1180
        %v1641 = vpack.c.b16 %v1189, %v1185
        %v1642 = vpack.c.b16 %v1190, %v1186
        %v1643 = vpack.c.b16 %v1191, %v1187
        %v1644 = vpack.c.b16 %v1192, %v1188
        %v1645 = vpack.c.b16 %v1197, %v1193
        %v1646 = vpack.c.b16 %v1198, %v1194
        %v1647 = vpack.c.b16 %v1199, %v1195
        %v1648 = vpack.c.b16 %v1200, %v1196
        %v1649 = vpack.c.b16 %v1205, %v1201
        %v1650 = vpack.c.b16 %v1206, %v1202
        %v1651 = vpack.c.b16 %v1207, %v1203
        %v1652 = vpack.c.b16 %v1208, %v1204
        %v1653 = vpack.c.b16 %v1213, %v1209
        %v1654 = vpack.c.b16 %v1214, %v1210
        %v1655 = vpack.c.b16 %v1215, %v1211
        %v1656 = vpack.c.b16 %v1216, %v1212
        %v1657 = vpack.c.b16 %v1221, %v1217
        %v1658 = vpack.c.b16 %v1222, %v1218
        %v1659 = vpack.c.b16 %v1223, %v1219
        %v1660 = vpack.c.b16 %v1224, %v1220
        %v1661 = vpack.c.b16 %v1229, %v1225
        %v1662 = vpack.c.b16 %v1230, %v1226
        %v1663 = vpack.c.b16 %v1231, %v1227
        %v1664 = vpack.c.b16 %v1232, %v1228
        %v1665 = vpack.c.b16 %v1237, %v1233
        %v1666 = vpack.c.b16 %v1238, %v1234
        %v1667 = vpack.c.b16 %v1239, %v1235
        %v1668 = vpack.c.b16 %v1240, %v1236
        %v1669 = vpack.c.b16 %v1245, %v1241
        %v1670 = vpack.c.b16 %v1246, %v1242
        %v1671 = vpack.c.b16 %v1247, %v1243
        %v1672 = vpack.c.b16 %v1248, %v1244
        %v1673 = vpack.c.b16 %v1253, %v1249
        %v1674 = vpack.c.b16 %v1254, %v1250
        %v1675 = vpack.c.b16 %v1255, %v1251
        %v1676 = vpack.c.b16 %v1256, %v1252
        %v1677 = vpack.c.b16 %v1261, %v1257
        %v1678 = vpack.c.b16 %v1262, %v1258
        %v1679 = vpack.c.b16 %v1263, %v1259
        %v1680 = vpack.c.b16 %v1264, %v1260
        %v1681 = vpack.c.b16 %v1269, %v1265
        %v1682 = vpack.c.b16 %v1270, %v1266
        %v1683 = vpack.c.b16 %v1271, %v1267
        %v1684 = vpack.c.b16 %v1272, %v1268
        %v1685 = vpack.c.b16 %v1277, %v1273
        %v1686 = vpack.c.b16 %v1278, %v1274
        %v1687 = vpack.c.b16 %v1279, %v1275
        %v1688 = vpack.c.b16 %v1280, %v1276
        %v1689 = vpack.c.b16 %v1285, %v1281
        %v1690 = vpack.c.b16 %v1286, %v1282
        %v1691 = vpack.c.b16 %v1287, %v1283
        %v1692 = vpack.c.b16 %v1288, %v1284
        %v1693 = vpack.c.b16 %v1293, %v1289
        %v1694 = vpack.c.b16 %v1294, %v1290
        %v1695 = vpack.c.b16 %v1295, %v1291
        %v1696 = vpack.c.b16 %v1296, %v1292
        %v1697 = vpack.c.b16 %v1301, %v1297
        %v1698 = vpack.c.b16 %v1302, %v1298
        %v1699 = vpack.c.b16 %v1303, %v1299
        %v1700 = vpack.c.b16 %v1304, %v1300
        %v1701 = vpack.c.b16 %v1309, %v1305
        %v1702 = vpack.c.b16 %v1310, %v1306
        %v1703 = vpack.c.b16 %v1311, %v1307
        %v1704 = vpack.c.b16 %v1312, %v1308
        %v1705 = vpack.c.b16 %v1317, %v1313
        %v1706 = vpack.c.b16 %v1318, %v1314
        %v1707 = vpack.c.b16 %v1319, %v1315
        %v1708 = vpack.c.b16 %v1320, %v1316
        %v1709 = vpack.c.b16 %v1325, %v1321
        %v1710 = vpack.c.b16 %v1326, %v1322
        %v1711 = vpack.c.b16 %v1327, %v1323
        %v1712 = vpack.c.b16 %v1328, %v1324
        %v1713 = vpack.c.b16 %v1333, %v1329
        %v1714 = vpack.c.b16 %v1334, %v1330
        %v1715 = vpack.c.b16 %v1335, %v1331
        %v1716 = vpack.c.b16 %v1336, %v1332
        %v1717 = vpack.c.b16 %v1341, %v1337
        %v1718 = vpack.c.b16 %v1342, %v1338
        %v1719 = vpack.c.b16 %v1343, %v1339
        %v1720 = vpack.c.b16 %v1344, %v1340
        %v1721 = vpack.c.b16 %v1349, %v1345
        %v1722 = vpack.c.b16 %v1350, %v1346
        %v1723 = vpack.c.b16 %v1351, %v1347
        %v1724 = vpack.c.b16 %v1352, %v1348
        %v1725 = vpack.c.b16 %v1357, %v1353
        %v1726 = vpack.c.b16 %v1358, %v1354
        %v1727 = vpack.c.b16 %v1359, %v1355
        %v1728 = vpack.c.b16 %v1360, %v1356
        %v1729 = vpack.c.b16 %v1365, %v1361
        %v1730 = vpack.c.b16 %v1366, %v1362
        %v1731 = vpack.c.b16 %v1367, %v1363
        %v1732 = vpack.c.b16 %v1368, %v1364
        %v1733 = vpack.c.b16 %v1373, %v1369
        %v1734 = vpack.c.b16 %v1374, %v1370
        %v1735 = vpack.c.b16 %v1375, %v1371
        %v1736 = vpack.c.b16 %v1376, %v1372
        %v1737 = vpack.c.b16 %v1381, %v1377
        %v1738 = vpack.c.b16 %v1382, %v1378
        %v1739 = vpack.c.b16 %v1383, %v1379
        %v1740 = vpack.c.b16 %v1384, %v1380
        %v1741 = vpack.c.b16 %v1389, %v1385
        %v1742 = vpack.c.b16 %v1390, %v1386
        %v1743 = vpack.c.b16 %v1391, %v1387
        %v1744 = vpack.c.b16 %v1392, %v1388
        %v1745 = vpack.c.b16 %v1397, %v1393
        %v1746 = vpack.c.b16 %v1398, %v1394
        %v1747 = vpack.c.b16 %v1399, %v1395
        %v1748 = vpack.c.b16 %v1400, %v1396
        %v1749 = vpack.c.b16 %v1405, %v1401
        %v1750 = vpack.c.b16 %v1406, %v1402
        %v1751 = vpack.c.b16 %v1407, %v1403
        %v1752 = vpack.c.b16 %v1408, %v1404
        %v1753 = vpack.c.b16 %v1413, %v1409
        %v1754 = vpack.c.b16 %v1414, %v1410
        %v1755 = vpack.c.b16 %v1415, %v1411
        %v1756 = vpack.c.b16 %v1416, %v1412
        %v1757 = vpack.c.b16 %v1421, %v1417
        %v1758 = vpack.c.b16 %v1422, %v1418
        %v1759 = vpack.c.b16 %v1423, %v1419
        %v1760 = vpack.c.b16 %v1424, %v1420
        %v1761 = vpack.c.b16 %v1429, %v1425
        %v1762 = vpack.c.b16 %v1430, %v1426
        %v1763 = vpack.c.b16 %v1431, %v1427
        %v1764 = vpack.c.b16 %v1432, %v1428
        %v1765 = vpack.c.b16 %v1437, %v1433
        %v1766 = vpack.c.b16 %v1438, %v1434
        %v1767 = vpack.c.b16 %v1439, %v1435
        %v1768 = vpack.c.b16 %v1440, %v1436
        %v1769 = vpack.c.b16 %v1445, %v1441
        %v1770 = vpack.c.b16 %v1446, %v1442
        %v1771 = vpack.c.b16 %v1447, %v1443
        %v1772 = vpack.c.b16 %v1448, %v1444
        %v1773 = vpack.c.b16 %v1453, %v1449
        %v1774 = vpack.c.b16 %v1454, %v1450
        %v1775 = vpack.c.b16 %v1455, %v1451
        %v1776 = vpack.c.b16 %v1456, %v1452
        %v1777 = vpack.c.b16 %v1461, %v1457
        %v1778 = vpack.c.b16 %v1462, %v1458
        %v1779 = vpack.c.b16 %v1463, %v1459
        %v1780 = vpack.c.b16 %v1464, %v1460
        %v1781 = vpack.c.b16 %v1469, %v1465
        %v1782 = vpack.c.b16 %v1470, %v1466
        %v1783 = vpack.c.b16 %v1471, %v1467
        %v1784 = vpack.c.b16 %v1472, %v1468
        %v1785 = vpack.c.b16 %v1477, %v1473
        %v1786 = vpack.c.b16 %v1478, %v1474
        %v1787 = vpack.c.b16 %v1479, %v1475
        %v1788 = vpack.c.b16 %v1480, %v1476
        %v1789 = vpack.c.b16 %v1485, %v1481
        %v1790 = vpack.c.b16 %v1486, %v1482
        %v1791 = vpack.c.b16 %v1487, %v1483
        %v1792 = vpack.c.b16 %v1488, %v1484
        %v1793 = vpack.c.b16 %v1493, %v1489
        %v1794 = vpack.c.b16 %v1494, %v1490
        %v1795 = vpack.c.b16 %v1495, %v1491
        %v1796 = vpack.c.b16 %v1496, %v1492
        %v1797 = vpack.c.b16 %v1501, %v1497
        %v1798 = vpack.c.b16 %v1502, %v1498
        %v1799 = vpack.c.b16 %v1503, %v1499
        %v1800 = vpack.c.b16 %v1504, %v1500
        %v1801 = vpack.c.b16 %v1509, %v1505
        %v1802 = vpack.c.b16 %v1510, %v1506
        %v1803 = vpack.c.b16 %v1511, %v1507
        %v1804 = vpack.c.b16 %v1512, %v1508
        %v1805 = vpack.c.b16 %v1517, %v1513
        %v1806 = vpack.c.b16 %v1518, %v1514
        %v1807 = vpack.c.b16 %v1519, %v1515
        %v1808 = vpack.c.b16 %v1520, %v1516
        %v1809 = vpack.c.b16 %v1525, %v1521
        %v1810 = vpack.c.b16 %v1526, %v1522
        %v1811 = vpack.c.b16 %v1527, %v1523
        %v1812 = vpack.c.b16 %v1528, %v1524
        %v1813 = vpack.c.b16 %v1533, %v1529
        %v1814 = vpack.c.b16 %v1534, %v1530
        %v1815 = vpack.c.b16 %v1535, %v1531
        %v1816 = vpack.c.b16 %v1536, %v1532
        %v1817 = vpack.c.b16 %v1541, %v1537
        %v1818 = vpack.c.b16 %v1542, %v1538
        %v1819 = vpack.c.b16 %v1543, %v1539
        %v1820 = vpack.c.b16 %v1544, %v1540
        %v1821 = vpack.c.b16 %v1549, %v1545
        %v1822 = vpack.c.b16 %v1550, %v1546
        %v1823 = vpack.c.b16 %v1551, %v1547
        %v1824 = vpack.c.b16 %v1552, %v1548
        %v1825 = vpack.c.b16 %v1557, %v1553
        %v1826 = vpack.c.b16 %v1558, %v1554
        %v1827 = vpack.c.b16 %v1559, %v1555
        %v1828 = vpack.c.b16 %v1560, %v1556
        %v1829 = vpack.c.b16 %v1565, %v1561
        %v1830 = vpack.c.b16 %v1566, %v1562
        %v1831 = vpack.c.b16 %v1567, %v1563
        %v1832 = vpack.c.b16 %v1568, %v1564
        %v1833 = vpack.c.b16 %v1573, %v1569
        %v1834 = vpack.c.b16 %v1574, %v1570
        %v1835 = vpack.c.b16 %v1575, %v1571
        %v1836 = vpack.c.b16 %v1576, %v1572
        %v1837 = vpack.c.b16 %v1581, %v1577
        %v1838 = vpack.c.b16 %v1582, %v1578
        %v1839 = vpack.c.b16 %v1583, %v1579
        %v1840 = vpack.c.b16 %v1584, %v1580
        %2097 = vmatpush.bf16.msra.mxu0 %v1613
        %2098 = vmatpush.bf16.msra.mxu0 %v1609
        %2099 = vmatpush.bf16.msra.mxu0 %v1605
        %2100 = vmatpush.bf16.msra.mxu0 %v1601
        %2101 = vmatpush.bf16.msra.mxu0 %v1597
        %2102 = vmatpush.bf16.msra.mxu0 %v1593
        %2103 = vmatpush.bf16.msra.mxu0 %v1589
        %2104 = vmatpush.bf16.msra.mxu0 %v1585
        %2105 = vmatmul.bf16.gmra.mxu0 %v545
        %v2106 = vpop.f32.mrf.mxu0
        %v2107 = vadd.f32 0.0, %v2106
        %v2108 = vpop.f32.mrf.mxu0
        %v2109 = vadd.f32 0.0, %v2108
        %2110 = vdwg.mxu0
        %2111 = vmatpush.bf16.msra.mxu0 %v1645
        %2112 = vmatpush.bf16.msra.mxu0 %v1641
        %2113 = vmatpush.bf16.msra.mxu0 %v1637
        %2114 = vmatpush.bf16.msra.mxu0 %v1633
        %2115 = vmatpush.bf16.msra.mxu0 %v1629
        %2116 = vmatpush.bf16.msra.mxu0 %v1625
        %2117 = vmatpush.bf16.msra.mxu0 %v1621
        %2118 = vmatpush.bf16.msra.mxu0 %v1617
        %2119 = vmatmul.bf16.gmra.mxu0 %v546
        %v2120 = vpop.f32.mrf.mxu0
        %v2121 = vadd.f32 %v2107, %v2120
        %v2122 = vpop.f32.mrf.mxu0
        %v2123 = vadd.f32 %v2109, %v2122
        %2124 = vdwg.mxu0
        %2125 = vmatpush.bf16.msra.mxu0 %v1677
        %2126 = vmatpush.bf16.msra.mxu0 %v1673
        %2127 = vmatpush.bf16.msra.mxu0 %v1669
        %2128 = vmatpush.bf16.msra.mxu0 %v1665
        %2129 = vmatpush.bf16.msra.mxu0 %v1661
        %2130 = vmatpush.bf16.msra.mxu0 %v1657
        %2131 = vmatpush.bf16.msra.mxu0 %v1653
        %2132 = vmatpush.bf16.msra.mxu0 %v1649
        %2133 = vmatmul.bf16.gmra.mxu0 %v547
        %v2134 = vpop.f32.mrf.mxu0
        %v2135 = vadd.f32 %v2121, %v2134
        %v2136 = vpop.f32.mrf.mxu0
        %v2137 = vadd.f32 %v2123, %v2136
        %2138 = vdwg.mxu0
        %2139 = vmatpush.bf16.msra.mxu0 %v1709
        %2140 = vmatpush.bf16.msra.mxu0 %v1705
        %2141 = vmatpush.bf16.msra.mxu0 %v1701
        %2142 = vmatpush.bf16.msra.mxu0 %v1697
        %2143 = vmatpush.bf16.msra.mxu0 %v1693
        %2144 = vmatpush.bf16.msra.mxu0 %v1689
        %2145 = vmatpush.bf16.msra.mxu0 %v1685
        %2146 = vmatpush.bf16.msra.mxu0 %v1681
        %2147 = vmatmul.bf16.gmra.mxu0 %v548
        %v2148 = vpop.f32.mrf.mxu0
        %v2149 = vadd.f32 %v2135, %v2148
        %v2150 = vpop.f32.mrf.mxu0
        %v2151 = vadd.f32 %v2137, %v2150
        %2152 = vdwg.mxu0
        %2153 = vmatpush.bf16.msra.mxu0 %v1741
        %2154 = vmatpush.bf16.msra.mxu0 %v1737
        %2155 = vmatpush.bf16.msra.mxu0 %v1733
        %2156 = vmatpush.bf16.msra.mxu0 %v1729
        %2157 = vmatpush.bf16.msra.mxu0 %v1725
        %2158 = vmatpush.bf16.msra.mxu0 %v1721
        %2159 = vmatpush.bf16.msra.mxu0 %v1717
        %2160 = vmatpush.bf16.msra.mxu0 %v1713
        %2161 = vmatmul.bf16.gmra.mxu0 %v549
        %v2162 = vpop.f32.mrf.mxu0
        %v2163 = vadd.f32 %v2149, %v2162
        %v2164 = vpop.f32.mrf.mxu0
        %v2165 = vadd.f32 %v2151, %v2164
        %2166 = vdwg.mxu0
        %2167 = vmatpush.bf16.msra.mxu0 %v1773
        %2168 = vmatpush.bf16.msra.mxu0 %v1769
        %2169 = vmatpush.bf16.msra.mxu0 %v1765
        %2170 = vmatpush.bf16.msra.mxu0 %v1761
        %2171 = vmatpush.bf16.msra.mxu0 %v1757
        %2172 = vmatpush.bf16.msra.mxu0 %v1753
        %2173 = vmatpush.bf16.msra.mxu0 %v1749
        %2174 = vmatpush.bf16.msra.mxu0 %v1745
        %2175 = vmatmul.bf16.gmra.mxu0 %v550
        %v2176 = vpop.f32.mrf.mxu0
        %v2177 = vadd.f32 %v2163, %v2176
        %v2178 = vpop.f32.mrf.mxu0
        %v2179 = vadd.f32 %v2165, %v2178
        %2180 = vdwg.mxu0
        %2181 = vmatpush.bf16.msra.mxu0 %v1805
        %2182 = vmatpush.bf16.msra.mxu0 %v1801
        %2183 = vmatpush.bf16.msra.mxu0 %v1797
        %2184 = vmatpush.bf16.msra.mxu0 %v1793
        %2185 = vmatpush.bf16.msra.mxu0 %v1789
        %2186 = vmatpush.bf16.msra.mxu0 %v1785
        %2187 = vmatpush.bf16.msra.mxu0 %v1781
        %2188 = vmatpush.bf16.msra.mxu0 %v1777
        %2189 = vmatmul.bf16.gmra.mxu0 %v551
        %v2190 = vpop.f32.mrf.mxu0
        %v2191 = vadd.f32 %v2177, %v2190
        %v2192 = vpop.f32.mrf.mxu0
        %v2193 = vadd.f32 %v2179, %v2192
        %2194 = vdwg.mxu0
        %2195 = vmatpush.bf16.msra.mxu0 %v1837
        %2196 = vmatpush.bf16.msra.mxu0 %v1833
        %2197 = vmatpush.bf16.msra.mxu0 %v1829
        %2198 = vmatpush.bf16.msra.mxu0 %v1825
        %2199 = vmatpush.bf16.msra.mxu0 %v1821
        %2200 = vmatpush.bf16.msra.mxu0 %v1817
        %2201 = vmatpush.bf16.msra.mxu0 %v1813
        %2202 = vmatpush.bf16.msra.mxu0 %v1809
        %2203 = vmatmul.bf16.gmra.mxu0 %v552
        %v2204 = vpop.f32.mrf.mxu0
        %v2205 = vadd.f32 %v2191, %v2204
        %v2206 = vpop.f32.mrf.mxu0
        %v2207 = vadd.f32 %v2193, %v2206
        %2208 = vdwg.mxu0
        %2209 = vmatpush.bf16.msra.mxu0 %v1614
        %2210 = vmatpush.bf16.msra.mxu0 %v1610
        %2211 = vmatpush.bf16.msra.mxu0 %v1606
        %2212 = vmatpush.bf16.msra.mxu0 %v1602
        %2213 = vmatpush.bf16.msra.mxu0 %v1598
        %2214 = vmatpush.bf16.msra.mxu0 %v1594
        %2215 = vmatpush.bf16.msra.mxu0 %v1590
        %2216 = vmatpush.bf16.msra.mxu0 %v1586
        %2217 = vmatmul.bf16.gmra.mxu0 %v545
        %v2218 = vpop.f32.mrf.mxu0
        %v2219 = vadd.f32 0.0, %v2218
        %v2220 = vpop.f32.mrf.mxu0
        %v2221 = vadd.f32 0.0, %v2220
        %2222 = vdwg.mxu0
        %2223 = vmatpush.bf16.msra.mxu0 %v1646
        %2224 = vmatpush.bf16.msra.mxu0 %v1642
        %2225 = vmatpush.bf16.msra.mxu0 %v1638
        %2226 = vmatpush.bf16.msra.mxu0 %v1634
        %2227 = vmatpush.bf16.msra.mxu0 %v1630
        %2228 = vmatpush.bf16.msra.mxu0 %v1626
        %2229 = vmatpush.bf16.msra.mxu0 %v1622
        %2230 = vmatpush.bf16.msra.mxu0 %v1618
        %2231 = vmatmul.bf16.gmra.mxu0 %v546
        %v2232 = vpop.f32.mrf.mxu0
        %v2233 = vadd.f32 %v2219, %v2232
        %v2234 = vpop.f32.mrf.mxu0
        %v2235 = vadd.f32 %v2221, %v2234
        %2236 = vdwg.mxu0
        %2237 = vmatpush.bf16.msra.mxu0 %v1678
        %2238 = vmatpush.bf16.msra.mxu0 %v1674
        %2239 = vmatpush.bf16.msra.mxu0 %v1670
        %2240 = vmatpush.bf16.msra.mxu0 %v1666
        %2241 = vmatpush.bf16.msra.mxu0 %v1662
        %2242 = vmatpush.bf16.msra.mxu0 %v1658
        %2243 = vmatpush.bf16.msra.mxu0 %v1654
        %2244 = vmatpush.bf16.msra.mxu0 %v1650
        %2245 = vmatmul.bf16.gmra.mxu0 %v547
        %v2246 = vpop.f32.mrf.mxu0
        %v2247 = vadd.f32 %v2233, %v2246
        %v2248 = vpop.f32.mrf.mxu0
        %v2249 = vadd.f32 %v2235, %v2248
        %2250 = vdwg.mxu0
        %2251 = vmatpush.bf16.msra.mxu0 %v1710
        %2252 = vmatpush.bf16.msra.mxu0 %v1706
        %2253 = vmatpush.bf16.msra.mxu0 %v1702
        %2254 = vmatpush.bf16.msra.mxu0 %v1698
        %2255 = vmatpush.bf16.msra.mxu0 %v1694
        %2256 = vmatpush.bf16.msra.mxu0 %v1690
        %2257 = vmatpush.bf16.msra.mxu0 %v1686
        %2258 = vmatpush.bf16.msra.mxu0 %v1682
        %2259 = vmatmul.bf16.gmra.mxu0 %v548
        %v2260 = vpop.f32.mrf.mxu0
        %v2261 = vadd.f32 %v2247, %v2260
        %v2262 = vpop.f32.mrf.mxu0
        %v2263 = vadd.f32 %v2249, %v2262
        %2264 = vdwg.mxu0
        %2265 = vmatpush.bf16.msra.mxu0 %v1742
        %2266 = vmatpush.bf16.msra.mxu0 %v1738
        %2267 = vmatpush.bf16.msra.mxu0 %v1734
        %2268 = vmatpush.bf16.msra.mxu0 %v1730
        %2269 = vmatpush.bf16.msra.mxu0 %v1726
        %2270 = vmatpush.bf16.msra.mxu0 %v1722
        %2271 = vmatpush.bf16.msra.mxu0 %v1718
        %2272 = vmatpush.bf16.msra.mxu0 %v1714
        %2273 = vmatmul.bf16.gmra.mxu0 %v549
        %v2274 = vpop.f32.mrf.mxu0
        %v2275 = vadd.f32 %v2261, %v2274
        %v2276 = vpop.f32.mrf.mxu0
        %v2277 = vadd.f32 %v2263, %v2276
        %2278 = vdwg.mxu0
        %2279 = vmatpush.bf16.msra.mxu0 %v1774
        %2280 = vmatpush.bf16.msra.mxu0 %v1770
        %2281 = vmatpush.bf16.msra.mxu0 %v1766
        %2282 = vmatpush.bf16.msra.mxu0 %v1762
        %2283 = vmatpush.bf16.msra.mxu0 %v1758
        %2284 = vmatpush.bf16.msra.mxu0 %v1754
        %2285 = vmatpush.bf16.msra.mxu0 %v1750
        %2286 = vmatpush.bf16.msra.mxu0 %v1746
        %2287 = vmatmul.bf16.gmra.mxu0 %v550
        %v2288 = vpop.f32.mrf.mxu0
        %v2289 = vadd.f32 %v2275, %v2288
        %v2290 = vpop.f32.mrf.mxu0
        %v2291 = vadd.f32 %v2277, %v2290
        %2292 = vdwg.mxu0
        %2293 = vmatpush.bf16.msra.mxu0 %v1806
        %2294 = vmatpush.bf16.msra.mxu0 %v1802
        %2295 = vmatpush.bf16.msra.mxu0 %v1798
        %2296 = vmatpush.bf16.msra.mxu0 %v1794
        %2297 = vmatpush.bf16.msra.mxu0 %v1790
        %2298 = vmatpush.bf16.msra.mxu0 %v1786
        %2299 = vmatpush.bf16.msra.mxu0 %v1782
        %2300 = vmatpush.bf16.msra.mxu0 %v1778
        %2301 = vmatmul.bf16.gmra.mxu0 %v551
        %v2302 = vpop.f32.mrf.mxu0
        %v2303 = vadd.f32 %v2289, %v2302
        %v2304 = vpop.f32.mrf.mxu0
        %v2305 = vadd.f32 %v2291, %v2304
        %2306 = vdwg.mxu0
        %2307 = vmatpush.bf16.msra.mxu0 %v1838
        %2308 = vmatpush.bf16.msra.mxu0 %v1834
        %2309 = vmatpush.bf16.msra.mxu0 %v1830
        %2310 = vmatpush.bf16.msra.mxu0 %v1826
        %2311 = vmatpush.bf16.msra.mxu0 %v1822
        %2312 = vmatpush.bf16.msra.mxu0 %v1818
        %2313 = vmatpush.bf16.msra.mxu0 %v1814
        %2314 = vmatpush.bf16.msra.mxu0 %v1810
        %2315 = vmatmul.bf16.gmra.mxu0 %v552
        %v2316 = vpop.f32.mrf.mxu0
        %v2317 = vadd.f32 %v2303, %v2316
        %v2318 = vpop.f32.mrf.mxu0
        %v2319 = vadd.f32 %v2305, %v2318
        %2320 = vdwg.mxu0
        %2321 = vmatpush.bf16.msra.mxu0 %v1615
        %2322 = vmatpush.bf16.msra.mxu0 %v1611
        %2323 = vmatpush.bf16.msra.mxu0 %v1607
        %2324 = vmatpush.bf16.msra.mxu0 %v1603
        %2325 = vmatpush.bf16.msra.mxu0 %v1599
        %2326 = vmatpush.bf16.msra.mxu0 %v1595
        %2327 = vmatpush.bf16.msra.mxu0 %v1591
        %2328 = vmatpush.bf16.msra.mxu0 %v1587
        %2329 = vmatmul.bf16.gmra.mxu0 %v545
        %v2330 = vpop.f32.mrf.mxu0
        %v2331 = vadd.f32 0.0, %v2330
        %v2332 = vpop.f32.mrf.mxu0
        %v2333 = vadd.f32 0.0, %v2332
        %2334 = vdwg.mxu0
        %2335 = vmatpush.bf16.msra.mxu0 %v1647
        %2336 = vmatpush.bf16.msra.mxu0 %v1643
        %2337 = vmatpush.bf16.msra.mxu0 %v1639
        %2338 = vmatpush.bf16.msra.mxu0 %v1635
        %2339 = vmatpush.bf16.msra.mxu0 %v1631
        %2340 = vmatpush.bf16.msra.mxu0 %v1627
        %2341 = vmatpush.bf16.msra.mxu0 %v1623
        %2342 = vmatpush.bf16.msra.mxu0 %v1619
        %2343 = vmatmul.bf16.gmra.mxu0 %v546
        %v2344 = vpop.f32.mrf.mxu0
        %v2345 = vadd.f32 %v2331, %v2344
        %v2346 = vpop.f32.mrf.mxu0
        %v2347 = vadd.f32 %v2333, %v2346
        %2348 = vdwg.mxu0
        %2349 = vmatpush.bf16.msra.mxu0 %v1679
        %2350 = vmatpush.bf16.msra.mxu0 %v1675
        %2351 = vmatpush.bf16.msra.mxu0 %v1671
        %2352 = vmatpush.bf16.msra.mxu0 %v1667
        %2353 = vmatpush.bf16.msra.mxu0 %v1663
        %2354 = vmatpush.bf16.msra.mxu0 %v1659
        %2355 = vmatpush.bf16.msra.mxu0 %v1655
        %2356 = vmatpush.bf16.msra.mxu0 %v1651
        %2357 = vmatmul.bf16.gmra.mxu0 %v547
        %v2358 = vpop.f32.mrf.mxu0
        %v2359 = vadd.f32 %v2345, %v2358
        %v2360 = vpop.f32.mrf.mxu0
        %v2361 = vadd.f32 %v2347, %v2360
        %2362 = vdwg.mxu0
        %2363 = vmatpush.bf16.msra.mxu0 %v1711
        %2364 = vmatpush.bf16.msra.mxu0 %v1707
        %2365 = vmatpush.bf16.msra.mxu0 %v1703
        %2366 = vmatpush.bf16.msra.mxu0 %v1699
        %2367 = vmatpush.bf16.msra.mxu0 %v1695
        %2368 = vmatpush.bf16.msra.mxu0 %v1691
        %2369 = vmatpush.bf16.msra.mxu0 %v1687
        %2370 = vmatpush.bf16.msra.mxu0 %v1683
        %2371 = vmatmul.bf16.gmra.mxu0 %v548
        %v2372 = vpop.f32.mrf.mxu0
        %v2373 = vadd.f32 %v2359, %v2372
        %v2374 = vpop.f32.mrf.mxu0
        %v2375 = vadd.f32 %v2361, %v2374
        %2376 = vdwg.mxu0
        %2377 = vmatpush.bf16.msra.mxu0 %v1743
        %2378 = vmatpush.bf16.msra.mxu0 %v1739
        %2379 = vmatpush.bf16.msra.mxu0 %v1735
        %2380 = vmatpush.bf16.msra.mxu0 %v1731
        %2381 = vmatpush.bf16.msra.mxu0 %v1727
        %2382 = vmatpush.bf16.msra.mxu0 %v1723
        %2383 = vmatpush.bf16.msra.mxu0 %v1719
        %2384 = vmatpush.bf16.msra.mxu0 %v1715
        %2385 = vmatmul.bf16.gmra.mxu0 %v549
        %v2386 = vpop.f32.mrf.mxu0
        %v2387 = vadd.f32 %v2373, %v2386
        %v2388 = vpop.f32.mrf.mxu0
        %v2389 = vadd.f32 %v2375, %v2388
        %2390 = vdwg.mxu0
        %2391 = vmatpush.bf16.msra.mxu0 %v1775
        %2392 = vmatpush.bf16.msra.mxu0 %v1771
        %2393 = vmatpush.bf16.msra.mxu0 %v1767
        %2394 = vmatpush.bf16.msra.mxu0 %v1763
        %2395 = vmatpush.bf16.msra.mxu0 %v1759
        %2396 = vmatpush.bf16.msra.mxu0 %v1755
        %2397 = vmatpush.bf16.msra.mxu0 %v1751
        %2398 = vmatpush.bf16.msra.mxu0 %v1747
        %2399 = vmatmul.bf16.gmra.mxu0 %v550
        %v2400 = vpop.f32.mrf.mxu0
        %v2401 = vadd.f32 %v2387, %v2400
        %v2402 = vpop.f32.mrf.mxu0
        %v2403 = vadd.f32 %v2389, %v2402
        %2404 = vdwg.mxu0
        %2405 = vmatpush.bf16.msra.mxu0 %v1807
        %2406 = vmatpush.bf16.msra.mxu0 %v1803
        %2407 = vmatpush.bf16.msra.mxu0 %v1799
        %2408 = vmatpush.bf16.msra.mxu0 %v1795
        %2409 = vmatpush.bf16.msra.mxu0 %v1791
        %2410 = vmatpush.bf16.msra.mxu0 %v1787
        %2411 = vmatpush.bf16.msra.mxu0 %v1783
        %2412 = vmatpush.bf16.msra.mxu0 %v1779
        %2413 = vmatmul.bf16.gmra.mxu0 %v551
        %v2414 = vpop.f32.mrf.mxu0
        %v2415 = vadd.f32 %v2401, %v2414
        %v2416 = vpop.f32.mrf.mxu0
        %v2417 = vadd.f32 %v2403, %v2416
        %2418 = vdwg.mxu0
        %2419 = vmatpush.bf16.msra.mxu0 %v1839
        %2420 = vmatpush.bf16.msra.mxu0 %v1835
        %2421 = vmatpush.bf16.msra.mxu0 %v1831
        %2422 = vmatpush.bf16.msra.mxu0 %v1827
        %2423 = vmatpush.bf16.msra.mxu0 %v1823
        %2424 = vmatpush.bf16.msra.mxu0 %v1819
        %2425 = vmatpush.bf16.msra.mxu0 %v1815
        %2426 = vmatpush.bf16.msra.mxu0 %v1811
        %2427 = vmatmul.bf16.gmra.mxu0 %v552
        %v2428 = vpop.f32.mrf.mxu0
        %v2429 = vadd.f32 %v2415, %v2428
        %v2430 = vpop.f32.mrf.mxu0
        %v2431 = vadd.f32 %v2417, %v2430
        %2432 = vdwg.mxu0
        %2433 = vmatpush.bf16.msra.mxu0 %v1616
        %2434 = vmatpush.bf16.msra.mxu0 %v1612
        %2435 = vmatpush.bf16.msra.mxu0 %v1608
        %2436 = vmatpush.bf16.msra.mxu0 %v1604
        %2437 = vmatpush.bf16.msra.mxu0 %v1600
        %2438 = vmatpush.bf16.msra.mxu0 %v1596
        %2439 = vmatpush.bf16.msra.mxu0 %v1592
        %2440 = vmatpush.bf16.msra.mxu0 %v1588
        %2441 = vmatmul.bf16.gmra.mxu0 %v545
        %v2442 = vpop.f32.mrf.mxu0
        %v2443 = vadd.f32 0.0, %v2442
        %v2444 = vpop.f32.mrf.mxu0
        %v2445 = vadd.f32 0.0, %v2444
        %2446 = vdwg.mxu0
        %2447 = vmatpush.bf16.msra.mxu0 %v1648
        %2448 = vmatpush.bf16.msra.mxu0 %v1644
        %2449 = vmatpush.bf16.msra.mxu0 %v1640
        %2450 = vmatpush.bf16.msra.mxu0 %v1636
        %2451 = vmatpush.bf16.msra.mxu0 %v1632
        %2452 = vmatpush.bf16.msra.mxu0 %v1628
        %2453 = vmatpush.bf16.msra.mxu0 %v1624
        %2454 = vmatpush.bf16.msra.mxu0 %v1620
        %2455 = vmatmul.bf16.gmra.mxu0 %v546
        %v2456 = vpop.f32.mrf.mxu0
        %v2457 = vadd.f32 %v2443, %v2456
        %v2458 = vpop.f32.mrf.mxu0
        %v2459 = vadd.f32 %v2445, %v2458
        %2460 = vdwg.mxu0
        %2461 = vmatpush.bf16.msra.mxu0 %v1680
        %2462 = vmatpush.bf16.msra.mxu0 %v1676
        %2463 = vmatpush.bf16.msra.mxu0 %v1672
        %2464 = vmatpush.bf16.msra.mxu0 %v1668
        %2465 = vmatpush.bf16.msra.mxu0 %v1664
        %2466 = vmatpush.bf16.msra.mxu0 %v1660
        %2467 = vmatpush.bf16.msra.mxu0 %v1656
        %2468 = vmatpush.bf16.msra.mxu0 %v1652
        %2469 = vmatmul.bf16.gmra.mxu0 %v547
        %v2470 = vpop.f32.mrf.mxu0
        %v2471 = vadd.f32 %v2457, %v2470
        %v2472 = vpop.f32.mrf.mxu0
        %v2473 = vadd.f32 %v2459, %v2472
        %2474 = vdwg.mxu0
        %2475 = vmatpush.bf16.msra.mxu0 %v1712
        %2476 = vmatpush.bf16.msra.mxu0 %v1708
        %2477 = vmatpush.bf16.msra.mxu0 %v1704
        %2478 = vmatpush.bf16.msra.mxu0 %v1700
        %2479 = vmatpush.bf16.msra.mxu0 %v1696
        %2480 = vmatpush.bf16.msra.mxu0 %v1692
        %2481 = vmatpush.bf16.msra.mxu0 %v1688
        %2482 = vmatpush.bf16.msra.mxu0 %v1684
        %2483 = vmatmul.bf16.gmra.mxu0 %v548
        %v2484 = vpop.f32.mrf.mxu0
        %v2485 = vadd.f32 %v2471, %v2484
        %v2486 = vpop.f32.mrf.mxu0
        %v2487 = vadd.f32 %v2473, %v2486
        %2488 = vdwg.mxu0
        %2489 = vmatpush.bf16.msra.mxu0 %v1744
        %2490 = vmatpush.bf16.msra.mxu0 %v1740
        %2491 = vmatpush.bf16.msra.mxu0 %v1736
        %2492 = vmatpush.bf16.msra.mxu0 %v1732
        %2493 = vmatpush.bf16.msra.mxu0 %v1728
        %2494 = vmatpush.bf16.msra.mxu0 %v1724
        %2495 = vmatpush.bf16.msra.mxu0 %v1720
        %2496 = vmatpush.bf16.msra.mxu0 %v1716
        %2497 = vmatmul.bf16.gmra.mxu0 %v549
        %v2498 = vpop.f32.mrf.mxu0
        %v2499 = vadd.f32 %v2485, %v2498
        %v2500 = vpop.f32.mrf.mxu0
        %v2501 = vadd.f32 %v2487, %v2500
        %2502 = vdwg.mxu0
        %2503 = vmatpush.bf16.msra.mxu0 %v1776
        %2504 = vmatpush.bf16.msra.mxu0 %v1772
        %2505 = vmatpush.bf16.msra.mxu0 %v1768
        %2506 = vmatpush.bf16.msra.mxu0 %v1764
        %2507 = vmatpush.bf16.msra.mxu0 %v1760
        %2508 = vmatpush.bf16.msra.mxu0 %v1756
        %2509 = vmatpush.bf16.msra.mxu0 %v1752
        %2510 = vmatpush.bf16.msra.mxu0 %v1748
        %2511 = vmatmul.bf16.gmra.mxu0 %v550
        %v2512 = vpop.f32.mrf.mxu0
        %v2513 = vadd.f32 %v2499, %v2512
        %v2514 = vpop.f32.mrf.mxu0
        %v2515 = vadd.f32 %v2501, %v2514
        %2516 = vdwg.mxu0
        %2517 = vmatpush.bf16.msra.mxu0 %v1808
        %2518 = vmatpush.bf16.msra.mxu0 %v1804
        %2519 = vmatpush.bf16.msra.mxu0 %v1800
        %2520 = vmatpush.bf16.msra.mxu0 %v1796
        %2521 = vmatpush.bf16.msra.mxu0 %v1792
        %2522 = vmatpush.bf16.msra.mxu0 %v1788
        %2523 = vmatpush.bf16.msra.mxu0 %v1784
        %2524 = vmatpush.bf16.msra.mxu0 %v1780
        %2525 = vmatmul.bf16.gmra.mxu0 %v551
        %v2526 = vpop.f32.mrf.mxu0
        %v2527 = vadd.f32 %v2513, %v2526
        %v2528 = vpop.f32.mrf.mxu0
        %v2529 = vadd.f32 %v2515, %v2528
        %2530 = vdwg.mxu0
        %2531 = vmatpush.bf16.msra.mxu0 %v1840
        %2532 = vmatpush.bf16.msra.mxu0 %v1836
        %2533 = vmatpush.bf16.msra.mxu0 %v1832
        %2534 = vmatpush.bf16.msra.mxu0 %v1828
        %2535 = vmatpush.bf16.msra.mxu0 %v1824
        %2536 = vmatpush.bf16.msra.mxu0 %v1820
        %2537 = vmatpush.bf16.msra.mxu0 %v1816
        %2538 = vmatpush.bf16.msra.mxu0 %v1812
        %2539 = vmatmul.bf16.gmra.mxu0 %v552
        %v2540 = vpop.f32.mrf.mxu0
        %v2541 = vadd.f32 %v2527, %v2540
        %v2542 = vpop.f32.mrf.mxu0
        %v2543 = vadd.f32 %v2529, %v2542
        %2544 = vdwg.mxu0
        %v2545 = vadd.f32 %v553, %v2205
        %v2546 = vadd.f32 %v554, %v2317
        %v2547 = vadd.f32 %v555, %v2429
        %v2548 = vadd.f32 %v556, %v2541
        %v2549 = vadd.f32 %v557, %v2207
        %v2550 = vadd.f32 %v558, %v2319
        %v2551 = vadd.f32 %v559, %v2431
        %v2552 = vadd.f32 %v560, %v2543
        %2553 = vst [vmem:[#allocation2] sm:$0xff] %v2545
        %2554 = vst [vmem:[#allocation2 + $0x8] sm:$0xff] %v2546
        %2555 = vst [vmem:[#allocation2 + $0x10] sm:$0xff] %v2547
        %2556 = vst [vmem:[#allocation2 + $0x18] sm:$0xff] %v2548
        %2557 = vst [vmem:[#allocation2 + $0x20] sm:$0xff] %v2549
        %2558 = vst [vmem:[#allocation2 + $0x28] sm:$0xff] %v2550
        %2559 = vst [vmem:[#allocation2 + $0x30] sm:$0xff] %v2551
        %2560 = vst [vmem:[#allocation2 + $0x38] sm:$0xff] %v2552
        %p2561 = scmp.eq.s32.totalorder %s35, 2
        // Predicated region
        $region97: #{tpu_custom_call.1} parent=55 // pred_check
          %p2562 = pneg %p2561
        $region98: #{tpu_custom_call.1} parent=55 // pred_check_branch
          %2564 = sbr.rel (%p2562) target = $region100
        $region99: #{tpu_custom_call.1} parent=55 // pred_region
          %v2565 = vld [vmem:[#allocation2] sm:$0xff]
          %v2566 = vld [vmem:[#allocation2 + $0x8] sm:$0xff]
          %v2567 = vld [vmem:[#allocation2 + $0x10] sm:$0xff]
          %v2568 = vld [vmem:[#allocation2 + $0x18] sm:$0xff]
          %v2569 = vld [vmem:[#allocation2 + $0x20] sm:$0xff]
          %v2570 = vld [vmem:[#allocation2 + $0x28] sm:$0xff]
          %v2571 = vld [vmem:[#allocation2 + $0x30] sm:$0xff]
          %v2572 = vld [vmem:[#allocation2 + $0x38] sm:$0xff]
          %v2573 = vld [vmem:[#allocation8] sm:$0xf]
          %v2575 = vperm.slane %v2573, 0
          %v2576 = vperm.slane %v2573, 1
          %v2577 = vperm.slane %v2573, 2
          %v2578 = vperm.slane %v2573, 3
          %v2583 = vadd.f32 %v2565, %v2575
          %v2584 = vadd.f32 %v2566, %v2576
          %v2585 = vadd.f32 %v2567, %v2577
          %v2586 = vadd.f32 %v2568, %v2578
          %v2587 = vadd.f32 %v2569, %v2575
          %v2588 = vadd.f32 %v2570, %v2576
          %v2589 = vadd.f32 %v2571, %v2577
          %v2590 = vadd.f32 %v2572, %v2578
          %v2591 = vmax.f32 %v2583, 0.0
          %v2592 = vmax.f32 %v2584, 0.0
          %v2593 = vmax.f32 %v2585, 0.0
          %v2594 = vmax.f32 %v2586, 0.0
          %v2595 = vmax.f32 %v2587, 0.0
          %v2596 = vmax.f32 %v2588, 0.0
          %v2597 = vmax.f32 %v2589, 0.0
          %v2598 = vmax.f32 %v2590, 0.0
          %v2599 = vpack.c.bf16 %v2595, %v2591
          %v2600 = vpack.c.bf16 %v2596, %v2592
          %v2601 = vpack.c.bf16 %v2597, %v2593
          %v2602 = vpack.c.bf16 %v2598, %v2594
          %v2603 = vld [vmem:[#allocation9] sm:$0xff]
          %v2604 = vld [vmem:[#allocation9 + $0x8] sm:$0xff]
          %v2605 = vld [vmem:[#allocation9 + $0x10] sm:$0xff]
          %v2606 = vld [vmem:[#allocation9 + $0x18] sm:$0xff]
          %v2607 = vld [vmem:[#allocation9 + $0x20] sm:$0xff]
          %v2608 = vld [vmem:[#allocation9 + $0x28] sm:$0xff]
          %v2609 = vld [vmem:[#allocation9 + $0x30] sm:$0xff]
          %v2610 = vld [vmem:[#allocation9 + $0x38] sm:$0xff]
          %v2611 = vld [vmem:[#allocation9 + $0x40] sm:$0xff]
          %v2612 = vld [vmem:[#allocation9 + $0x48] sm:$0xff]
          %v2613 = vld [vmem:[#allocation9 + $0x50] sm:$0xff]
          %v2614 = vld [vmem:[#allocation9 + $0x58] sm:$0xff]
          %v2615 = vld [vmem:[#allocation9 + $0x60] sm:$0xff]
          %v2616 = vld [vmem:[#allocation9 + $0x68] sm:$0xff]
          %v2617 = vld [vmem:[#allocation9 + $0x70] sm:$0xff]
          %v2618 = vld [vmem:[#allocation9 + $0x78] sm:$0xff]
          %v2619 = vld [vmem:[#allocation9 + $0x80] sm:$0xff]
          %v2620 = vld [vmem:[#allocation9 + $0x88] sm:$0xff]
          %v2621 = vld [vmem:[#allocation9 + $0x90] sm:$0xff]
          %v2622 = vld [vmem:[#allocation9 + $0x98] sm:$0xff]
          %v2623 = vld [vmem:[#allocation9 + $0xa0] sm:$0xff]
          %v2624 = vld [vmem:[#allocation9 + $0xa8] sm:$0xff]
          %v2625 = vld [vmem:[#allocation9 + $0xb0] sm:$0xff]
          %v2626 = vld [vmem:[#allocation9 + $0xb8] sm:$0xff]
          %v2627 = vld [vmem:[#allocation9 + $0xc0] sm:$0xff]
          %v2628 = vld [vmem:[#allocation9 + $0xc8] sm:$0xff]
          %v2629 = vld [vmem:[#allocation9 + $0xd0] sm:$0xff]
          %v2630 = vld [vmem:[#allocation9 + $0xd8] sm:$0xff]
          %v2631 = vld [vmem:[#allocation9 + $0xe0] sm:$0xff]
          %v2632 = vld [vmem:[#allocation9 + $0xe8] sm:$0xff]
          %v2633 = vld [vmem:[#allocation9 + $0xf0] sm:$0xff]
          %v2634 = vld [vmem:[#allocation9 + $0xf8] sm:$0xff]
          %v2635 = vld [vmem:[#allocation9 + $0x100] sm:$0xff]
          %v2636 = vld [vmem:[#allocation9 + $0x108] sm:$0xff]
          %v2637 = vld [vmem:[#allocation9 + $0x110] sm:$0xff]
          %v2638 = vld [vmem:[#allocation9 + $0x118] sm:$0xff]
          %v2639 = vld [vmem:[#allocation9 + $0x120] sm:$0xff]
          %v2640 = vld [vmem:[#allocation9 + $0x128] sm:$0xff]
          %v2641 = vld [vmem:[#allocation9 + $0x130] sm:$0xff]
          %v2642 = vld [vmem:[#allocation9 + $0x138] sm:$0xff]
          %v2643 = vld [vmem:[#allocation9 + $0x140] sm:$0xff]
          %v2644 = vld [vmem:[#allocation9 + $0x148] sm:$0xff]
          %v2645 = vld [vmem:[#allocation9 + $0x150] sm:$0xff]
          %v2646 = vld [vmem:[#allocation9 + $0x158] sm:$0xff]
          %v2647 = vld [vmem:[#allocation9 + $0x160] sm:$0xff]
          %v2648 = vld [vmem:[#allocation9 + $0x168] sm:$0xff]
          %v2649 = vld [vmem:[#allocation9 + $0x170] sm:$0xff]
          %v2650 = vld [vmem:[#allocation9 + $0x178] sm:$0xff]
          %v2651 = vld [vmem:[#allocation9 + $0x180] sm:$0xff]
          %v2652 = vld [vmem:[#allocation9 + $0x188] sm:$0xff]
          %v2653 = vld [vmem:[#allocation9 + $0x190] sm:$0xff]
          %v2654 = vld [vmem:[#allocation9 + $0x198] sm:$0xff]
          %v2655 = vld [vmem:[#allocation9 + $0x1a0] sm:$0xff]
          %v2656 = vld [vmem:[#allocation9 + $0x1a8] sm:$0xff]
          %v2657 = vld [vmem:[#allocation9 + $0x1b0] sm:$0xff]
          %v2658 = vld [vmem:[#allocation9 + $0x1b8] sm:$0xff]
          %v2659 = vld [vmem:[#allocation9 + $0x1c0] sm:$0xff]
          %v2660 = vld [vmem:[#allocation9 + $0x1c8] sm:$0xff]
          %v2661 = vld [vmem:[#allocation9 + $0x1d0] sm:$0xff]
          %v2662 = vld [vmem:[#allocation9 + $0x1d8] sm:$0xff]
          %v2663 = vld [vmem:[#allocation9 + $0x1e0] sm:$0xff]
          %v2664 = vld [vmem:[#allocation9 + $0x1e8] sm:$0xff]
          %v2665 = vld [vmem:[#allocation9 + $0x1f0] sm:$0xff]
          %v2666 = vld [vmem:[#allocation9 + $0x1f8] sm:$0xff]
          %v2667 = vld [vmem:[#allocation11] sm:$0x3]
          %v2669 = vperm.slane %v2667, 0
          %v2670 = vperm.slane %v2667, 1
          %v2737 = vunpack.c.l.b16 %v2603
          %v2738 = vunpack.c.h.b16 %v2603
          %v2739 = vunpack.c.l.b16 %v2604
          %v2740 = vunpack.c.h.b16 %v2604
          %v2741 = vunpack.c.l.b16 %v2605
          %v2742 = vunpack.c.h.b16 %v2605
          %v2743 = vunpack.c.l.b16 %v2606
          %v2744 = vunpack.c.h.b16 %v2606
          %v2745 = vunpack.c.l.b16 %v2607
          %v2746 = vunpack.c.h.b16 %v2607
          %v2747 = vunpack.c.l.b16 %v2608
          %v2748 = vunpack.c.h.b16 %v2608
          %v2749 = vunpack.c.l.b16 %v2609
          %v2750 = vunpack.c.h.b16 %v2609
          %v2751 = vunpack.c.l.b16 %v2610
          %v2752 = vunpack.c.h.b16 %v2610
          %v2753 = vunpack.c.l.b16 %v2611
          %v2754 = vunpack.c.h.b16 %v2611
          %v2755 = vunpack.c.l.b16 %v2612
          %v2756 = vunpack.c.h.b16 %v2612
          %v2757 = vunpack.c.l.b16 %v2613
          %v2758 = vunpack.c.h.b16 %v2613
          %v2759 = vunpack.c.l.b16 %v2614
          %v2760 = vunpack.c.h.b16 %v2614
          %v2761 = vunpack.c.l.b16 %v2615
          %v2762 = vunpack.c.h.b16 %v2615
          %v2763 = vunpack.c.l.b16 %v2616
          %v2764 = vunpack.c.h.b16 %v2616
          %v2765 = vunpack.c.l.b16 %v2617
          %v2766 = vunpack.c.h.b16 %v2617
          %v2767 = vunpack.c.l.b16 %v2618
          %v2768 = vunpack.c.h.b16 %v2618
          %v2769 = vunpack.c.l.b16 %v2619
          %v2770 = vunpack.c.h.b16 %v2619
          %v2771 = vunpack.c.l.b16 %v2620
          %v2772 = vunpack.c.h.b16 %v2620
          %v2773 = vunpack.c.l.b16 %v2621
          %v2774 = vunpack.c.h.b16 %v2621
          %v2775 = vunpack.c.l.b16 %v2622
          %v2776 = vunpack.c.h.b16 %v2622
          %v2777 = vunpack.c.l.b16 %v2623
          %v2778 = vunpack.c.h.b16 %v2623
          %v2779 = vunpack.c.l.b16 %v2624
          %v2780 = vunpack.c.h.b16 %v2624
          %v2781 = vunpack.c.l.b16 %v2625
          %v2782 = vunpack.c.h.b16 %v2625
          %v2783 = vunpack.c.l.b16 %v2626
          %v2784 = vunpack.c.h.b16 %v2626
          %v2785 = vunpack.c.l.b16 %v2627
          %v2786 = vunpack.c.h.b16 %v2627
          %v2787 = vunpack.c.l.b16 %v2628
          %v2788 = vunpack.c.h.b16 %v2628
          %v2789 = vunpack.c.l.b16 %v2629
          %v2790 = vunpack.c.h.b16 %v2629
          %v2791 = vunpack.c.l.b16 %v2630
          %v2792 = vunpack.c.h.b16 %v2630
          %v2793 = vunpack.c.l.b16 %v2631
          %v2794 = vunpack.c.h.b16 %v2631
          %v2795 = vunpack.c.l.b16 %v2632
          %v2796 = vunpack.c.h.b16 %v2632
          %v2797 = vunpack.c.l.b16 %v2633
          %v2798 = vunpack.c.h.b16 %v2633
          %v2799 = vunpack.c.l.b16 %v2634
          %v2800 = vunpack.c.h.b16 %v2634
          %v2801 = vunpack.c.l.b16 %v2635
          %v2802 = vunpack.c.h.b16 %v2635
          %v2803 = vunpack.c.l.b16 %v2636
          %v2804 = vunpack.c.h.b16 %v2636
          %v2805 = vunpack.c.l.b16 %v2637
          %v2806 = vunpack.c.h.b16 %v2637
          %v2807 = vunpack.c.l.b16 %v2638
          %v2808 = vunpack.c.h.b16 %v2638
          %v2809 = vunpack.c.l.b16 %v2639
          %v2810 = vunpack.c.h.b16 %v2639
          %v2811 = vunpack.c.l.b16 %v2640
          %v2812 = vunpack.c.h.b16 %v2640
          %v2813 = vunpack.c.l.b16 %v2641
          %v2814 = vunpack.c.h.b16 %v2641
          %v2815 = vunpack.c.l.b16 %v2642
          %v2816 = vunpack.c.h.b16 %v2642
          %v2817 = vunpack.c.l.b16 %v2643
          %v2818 = vunpack.c.h.b16 %v2643
          %v2819 = vunpack.c.l.b16 %v2644
          %v2820 = vunpack.c.h.b16 %v2644
          %v2821 = vunpack.c.l.b16 %v2645
          %v2822 = vunpack.c.h.b16 %v2645
          %v2823 = vunpack.c.l.b16 %v2646
          %v2824 = vunpack.c.h.b16 %v2646
          %v2825 = vunpack.c.l.b16 %v2647
          %v2826 = vunpack.c.h.b16 %v2647
          %v2827 = vunpack.c.l.b16 %v2648
          %v2828 = vunpack.c.h.b16 %v2648
          %v2829 = vunpack.c.l.b16 %v2649
          %v2830 = vunpack.c.h.b16 %v2649
          %v2831 = vunpack.c.l.b16 %v2650
          %v2832 = vunpack.c.h.b16 %v2650
          %v2833 = vunpack.c.l.b16 %v2651
          %v2834 = vunpack.c.h.b16 %v2651
          %v2835 = vunpack.c.l.b16 %v2652
          %v2836 = vunpack.c.h.b16 %v2652
          %v2837 = vunpack.c.l.b16 %v2653
          %v2838 = vunpack.c.h.b16 %v2653
          %v2839 = vunpack.c.l.b16 %v2654
          %v2840 = vunpack.c.h.b16 %v2654
          %v2841 = vunpack.c.l.b16 %v2655
          %v2842 = vunpack.c.h.b16 %v2655
          %v2843 = vunpack.c.l.b16 %v2656
          %v2844 = vunpack.c.h.b16 %v2656
          %v2845 = vunpack.c.l.b16 %v2657
          %v2846 = vunpack.c.h.b16 %v2657
          %v2847 = vunpack.c.l.b16 %v2658
          %v2848 = vunpack.c.h.b16 %v2658
          %v2849 = vunpack.c.l.b16 %v2659
          %v2850 = vunpack.c.h.b16 %v2659
          %v2851 = vunpack.c.l.b16 %v2660
          %v2852 = vunpack.c.h.b16 %v2660
          %v2853 = vunpack.c.l.b16 %v2661
          %v2854 = vunpack.c.h.b16 %v2661
          %v2855 = vunpack.c.l.b16 %v2662
          %v2856 = vunpack.c.h.b16 %v2662
          %v2857 = vunpack.c.l.b16 %v2663
          %v2858 = vunpack.c.h.b16 %v2663
          %v2859 = vunpack.c.l.b16 %v2664
          %v2860 = vunpack.c.h.b16 %v2664
          %v2861 = vunpack.c.l.b16 %v2665
          %v2862 = vunpack.c.h.b16 %v2665
          %v2863 = vunpack.c.l.b16 %v2666
          %v2864 = vunpack.c.h.b16 %v2666
          %v2865 = vpack.c.b16 %v2739, %v2737
          %v2866 = vpack.c.b16 %v2740, %v2738
          %v2867 = vpack.c.b16 %v2743, %v2741
          %v2868 = vpack.c.b16 %v2744, %v2742
          %v2869 = vpack.c.b16 %v2747, %v2745
          %v2870 = vpack.c.b16 %v2748, %v2746
          %v2871 = vpack.c.b16 %v2751, %v2749
          %v2872 = vpack.c.b16 %v2752, %v2750
          %v2873 = vpack.c.b16 %v2755, %v2753
          %v2874 = vpack.c.b16 %v2756, %v2754
          %v2875 = vpack.c.b16 %v2759, %v2757
          %v2876 = vpack.c.b16 %v2760, %v2758
          %v2877 = vpack.c.b16 %v2763, %v2761
          %v2878 = vpack.c.b16 %v2764, %v2762
          %v2879 = vpack.c.b16 %v2767, %v2765
          %v2880 = vpack.c.b16 %v2768, %v2766
          %v2881 = vpack.c.b16 %v2771, %v2769
          %v2882 = vpack.c.b16 %v2772, %v2770
          %v2883 = vpack.c.b16 %v2775, %v2773
          %v2884 = vpack.c.b16 %v2776, %v2774
          %v2885 = vpack.c.b16 %v2779, %v2777
          %v2886 = vpack.c.b16 %v2780, %v2778
          %v2887 = vpack.c.b16 %v2783, %v2781
          %v2888 = vpack.c.b16 %v2784, %v2782
          %v2889 = vpack.c.b16 %v2787, %v2785
          %v2890 = vpack.c.b16 %v2788, %v2786
          %v2891 = vpack.c.b16 %v2791, %v2789
          %v2892 = vpack.c.b16 %v2792, %v2790
          %v2893 = vpack.c.b16 %v2795, %v2793
          %v2894 = vpack.c.b16 %v2796, %v2794
          %v2895 = vpack.c.b16 %v2799, %v2797
          %v2896 = vpack.c.b16 %v2800, %v2798
          %v2897 = vpack.c.b16 %v2803, %v2801
          %v2898 = vpack.c.b16 %v2804, %v2802
          %v2899 = vpack.c.b16 %v2807, %v2805
          %v2900 = vpack.c.b16 %v2808, %v2806
          %v2901 = vpack.c.b16 %v2811, %v2809
          %v2902 = vpack.c.b16 %v2812, %v2810
          %v2903 = vpack.c.b16 %v2815, %v2813
          %v2904 = vpack.c.b16 %v2816, %v2814
          %v2905 = vpack.c.b16 %v2819, %v2817
          %v2906 = vpack.c.b16 %v2820, %v2818
          %v2907 = vpack.c.b16 %v2823, %v2821
          %v2908 = vpack.c.b16 %v2824, %v2822
          %v2909 = vpack.c.b16 %v2827, %v2825
          %v2910 = vpack.c.b16 %v2828, %v2826
          %v2911 = vpack.c.b16 %v2831, %v2829
          %v2912 = vpack.c.b16 %v2832, %v2830
          %v2913 = vpack.c.b16 %v2835, %v2833
          %v2914 = vpack.c.b16 %v2836, %v2834
          %v2915 = vpack.c.b16 %v2839, %v2837
          %v2916 = vpack.c.b16 %v2840, %v2838
          %v2917 = vpack.c.b16 %v2843, %v2841
          %v2918 = vpack.c.b16 %v2844, %v2842
          %v2919 = vpack.c.b16 %v2847, %v2845
          %v2920 = vpack.c.b16 %v2848, %v2846
          %v2921 = vpack.c.b16 %v2851, %v2849
          %v2922 = vpack.c.b16 %v2852, %v2850
          %v2923 = vpack.c.b16 %v2855, %v2853
          %v2924 = vpack.c.b16 %v2856, %v2854
          %v2925 = vpack.c.b16 %v2859, %v2857
          %v2926 = vpack.c.b16 %v2860, %v2858
          %v2927 = vpack.c.b16 %v2863, %v2861
          %v2928 = vpack.c.b16 %v2864, %v2862
          %2993 = vmatpush.bf16.msra.mxu0 %v2879
          %2994 = vmatpush.bf16.msra.mxu0 %v2877
          %2995 = vmatpush.bf16.msra.mxu0 %v2875
          %2996 = vmatpush.bf16.msra.mxu0 %v2873
          %2997 = vmatpush.bf16.msra.mxu0 %v2871
          %2998 = vmatpush.bf16.msra.mxu0 %v2869
          %2999 = vmatpush.bf16.msra.mxu0 %v2867
          %3000 = vmatpush.bf16.msra.mxu0 %v2865
          %3001 = vmatmul.bf16.gmra.mxu0 %v2599
          %v3002 = vpop.f32.mrf.mxu0
          %v3003 = vadd.f32 %v2669, %v3002
          %v3004 = vpop.f32.mrf.mxu0
          %v3005 = vadd.f32 %v2669, %v3004
          %3006 = vdwg.mxu0
          %3007 = vmatpush.bf16.msra.mxu0 %v2895
          %3008 = vmatpush.bf16.msra.mxu0 %v2893
          %3009 = vmatpush.bf16.msra.mxu0 %v2891
          %3010 = vmatpush.bf16.msra.mxu0 %v2889
          %3011 = vmatpush.bf16.msra.mxu0 %v2887
          %3012 = vmatpush.bf16.msra.mxu0 %v2885
          %3013 = vmatpush.bf16.msra.mxu0 %v2883
          %3014 = vmatpush.bf16.msra.mxu0 %v2881
          %3015 = vmatmul.bf16.gmra.mxu0 %v2600
          %v3016 = vpop.f32.mrf.mxu0
          %v3017 = vadd.f32 %v3003, %v3016
          %v3018 = vpop.f32.mrf.mxu0
          %v3019 = vadd.f32 %v3005, %v3018
          %3020 = vdwg.mxu0
          %3021 = vmatpush.bf16.msra.mxu0 %v2911
          %3022 = vmatpush.bf16.msra.mxu0 %v2909
          %3023 = vmatpush.bf16.msra.mxu0 %v2907
          %3024 = vmatpush.bf16.msra.mxu0 %v2905
          %3025 = vmatpush.bf16.msra.mxu0 %v2903
          %3026 = vmatpush.bf16.msra.mxu0 %v2901
          %3027 = vmatpush.bf16.msra.mxu0 %v2899
          %3028 = vmatpush.bf16.msra.mxu0 %v2897
          %3029 = vmatmul.bf16.gmra.mxu0 %v2601
          %v3030 = vpop.f32.mrf.mxu0
          %v3031 = vadd.f32 %v3017, %v3030
          %v3032 = vpop.f32.mrf.mxu0
          %v3033 = vadd.f32 %v3019, %v3032
          %3034 = vdwg.mxu0
          %3035 = vmatpush.bf16.msra.mxu0 %v2927
          %3036 = vmatpush.bf16.msra.mxu0 %v2925
          %3037 = vmatpush.bf16.msra.mxu0 %v2923
          %3038 = vmatpush.bf16.msra.mxu0 %v2921
          %3039 = vmatpush.bf16.msra.mxu0 %v2919
          %3040 = vmatpush.bf16.msra.mxu0 %v2917
          %3041 = vmatpush.bf16.msra.mxu0 %v2915
          %3042 = vmatpush.bf16.msra.mxu0 %v2913
          %3043 = vmatmul.bf16.gmra.mxu0 %v2602
          %v3044 = vpop.f32.mrf.mxu0
          %v3045 = vadd.f32 %v3031, %v3044
          %v3046 = vpop.f32.mrf.mxu0
          %v3047 = vadd.f32 %v3033, %v3046
          %3048 = vdwg.mxu0
          %3049 = vmatpush.bf16.msra.mxu0 %v2880
          %3050 = vmatpush.bf16.msra.mxu0 %v2878
          %3051 = vmatpush.bf16.msra.mxu0 %v2876
          %3052 = vmatpush.bf16.msra.mxu0 %v2874
          %3053 = vmatpush.bf16.msra.mxu0 %v2872
          %3054 = vmatpush.bf16.msra.mxu0 %v2870
          %3055 = vmatpush.bf16.msra.mxu0 %v2868
          %3056 = vmatpush.bf16.msra.mxu0 %v2866
          %3057 = vmatmul.bf16.gmra.mxu0 %v2599
          %v3058 = vpop.f32.mrf.mxu0
          %v3059 = vadd.f32 %v2670, %v3058
          %v3060 = vpop.f32.mrf.mxu0
          %v3061 = vadd.f32 %v2670, %v3060
          %3062 = vdwg.mxu0
          %3063 = vmatpush.bf16.msra.mxu0 %v2896
          %3064 = vmatpush.bf16.msra.mxu0 %v2894
          %3065 = vmatpush.bf16.msra.mxu0 %v2892
          %3066 = vmatpush.bf16.msra.mxu0 %v2890
          %3067 = vmatpush.bf16.msra.mxu0 %v2888
          %3068 = vmatpush.bf16.msra.mxu0 %v2886
          %3069 = vmatpush.bf16.msra.mxu0 %v2884
          %3070 = vmatpush.bf16.msra.mxu0 %v2882
          %3071 = vmatmul.bf16.gmra.mxu0 %v2600
          %v3072 = vpop.f32.mrf.mxu0
          %v3073 = vadd.f32 %v3059, %v3072
          %v3074 = vpop.f32.mrf.mxu0
          %v3075 = vadd.f32 %v3061, %v3074
          %3076 = vdwg.mxu0
          %3077 = vmatpush.bf16.msra.mxu0 %v2912
          %3078 = vmatpush.bf16.msra.mxu0 %v2910
          %3079 = vmatpush.bf16.msra.mxu0 %v2908
          %3080 = vmatpush.bf16.msra.mxu0 %v2906
          %3081 = vmatpush.bf16.msra.mxu0 %v2904
          %3082 = vmatpush.bf16.msra.mxu0 %v2902
          %3083 = vmatpush.bf16.msra.mxu0 %v2900
          %3084 = vmatpush.bf16.msra.mxu0 %v2898
          %3085 = vmatmul.bf16.gmra.mxu0 %v2601
          %v3086 = vpop.f32.mrf.mxu0
          %v3087 = vadd.f32 %v3073, %v3086
          %v3088 = vpop.f32.mrf.mxu0
          %v3089 = vadd.f32 %v3075, %v3088
          %3090 = vdwg.mxu0
          %3091 = vmatpush.bf16.msra.mxu0 %v2928
          %3092 = vmatpush.bf16.msra.mxu0 %v2926
          %3093 = vmatpush.bf16.msra.mxu0 %v2924
          %3094 = vmatpush.bf16.msra.mxu0 %v2922
          %3095 = vmatpush.bf16.msra.mxu0 %v2920
          %3096 = vmatpush.bf16.msra.mxu0 %v2918
          %3097 = vmatpush.bf16.msra.mxu0 %v2916
          %3098 = vmatpush.bf16.msra.mxu0 %v2914
          %3099 = vmatmul.bf16.gmra.mxu0 %v2602
          %v3100 = vpop.f32.mrf.mxu0
          %v3101 = vadd.f32 %v3087, %v3100
          %v3102 = vpop.f32.mrf.mxu0
          %v3103 = vadd.f32 %v3089, %v3102
          %3104 = vdwg.mxu0
          %v3105 = vmax.f32 %v3045, 0.0
          %v3106 = vmax.f32 %v3101, 0.0
          %v3107 = vmax.f32 %v3047, 0.0
          %v3108 = vmax.f32 %v3103, 0.0
          %v3109 = vpack.c.bf16 %v3107, %v3105
          %v3110 = vpack.c.bf16 %v3108, %v3106
          %v3111 = vld [vmem:[#allocation12] sm:$0xf]
          %v3112 = vld [vmem:[#allocation12 + $0x4] sm:$0xf]
          %v3113 = vld [vmem:[#allocation12 + $0x8] sm:$0xf]
          %v3114 = vld [vmem:[#allocation12 + $0xc] sm:$0xf]
          %v3115 = vld [vmem:[#allocation12 + $0x10] sm:$0xf]
          %v3116 = vld [vmem:[#allocation12 + $0x14] sm:$0xf]
          %v3117 = vld [vmem:[#allocation12 + $0x18] sm:$0xf]
          %v3118 = vld [vmem:[#allocation12 + $0x1c] sm:$0xf]
          %v3119 = vld [vmem:[#allocation12 + $0x20] sm:$0xf]
          %v3120 = vld [vmem:[#allocation12 + $0x24] sm:$0xf]
          %v3121 = vld [vmem:[#allocation12 + $0x28] sm:$0xf]
          %v3122 = vld [vmem:[#allocation12 + $0x2c] sm:$0xf]
          %v3123 = vld [vmem:[#allocation12 + $0x30] sm:$0xf]
          %v3124 = vld [vmem:[#allocation12 + $0x34] sm:$0xf]
          %v3125 = vld [vmem:[#allocation12 + $0x38] sm:$0xf]
          %v3126 = vld [vmem:[#allocation12 + $0x3c] sm:$0xf]
          %v3127 = vld [vmem:[#allocation12 + $0x40] sm:$0xf]
          %v3128 = vld [vmem:[#allocation12 + $0x44] sm:$0xf]
          %v3129 = vld [vmem:[#allocation12 + $0x48] sm:$0xf]
          %v3130 = vld [vmem:[#allocation12 + $0x4c] sm:$0xf]
          %v3131 = vld [vmem:[#allocation12 + $0x50] sm:$0xf]
          %v3132 = vld [vmem:[#allocation12 + $0x54] sm:$0xf]
          %v3133 = vld [vmem:[#allocation12 + $0x58] sm:$0xf]
          %v3134 = vld [vmem:[#allocation12 + $0x5c] sm:$0xf]
          %v3135 = vld [vmem:[#allocation12 + $0x60] sm:$0xf]
          %v3136 = vld [vmem:[#allocation12 + $0x64] sm:$0xf]
          %v3137 = vld [vmem:[#allocation12 + $0x68] sm:$0xf]
          %v3138 = vld [vmem:[#allocation12 + $0x6c] sm:$0xf]
          %v3139 = vld [vmem:[#allocation12 + $0x70] sm:$0xf]
          %v3140 = vld [vmem:[#allocation12 + $0x74] sm:$0xf]
          %v3141 = vld [vmem:[#allocation12 + $0x78] sm:$0xf]
          %v3142 = vld [vmem:[#allocation12 + $0x7c] sm:$0xf]
          %v3143 = vld [vmem:[#allocation14] sm:$0x1]
          %v3145 = vperm.slane %v3143, 0
          %v3179 = vunpack.c.l.b16 %v3111
          %v3180 = vunpack.c.l.b16 %v3112
          %v3181 = vunpack.c.l.b16 %v3113
          %v3182 = vunpack.c.l.b16 %v3114
          %v3183 = vunpack.c.l.b16 %v3115
          %v3184 = vunpack.c.l.b16 %v3116
          %v3185 = vunpack.c.l.b16 %v3117
          %v3186 = vunpack.c.l.b16 %v3118
          %v3187 = vunpack.c.l.b16 %v3119
          %v3188 = vunpack.c.l.b16 %v3120
          %v3189 = vunpack.c.l.b16 %v3121
          %v3190 = vunpack.c.l.b16 %v3122
          %v3191 = vunpack.c.l.b16 %v3123
          %v3192 = vunpack.c.l.b16 %v3124
          %v3193 = vunpack.c.l.b16 %v3125
          %v3194 = vunpack.c.l.b16 %v3126
          %v3195 = vunpack.c.l.b16 %v3127
          %v3196 = vunpack.c.l.b16 %v3128
          %v3197 = vunpack.c.l.b16 %v3129
          %v3198 = vunpack.c.l.b16 %v3130
          %v3199 = vunpack.c.l.b16 %v3131
          %v3200 = vunpack.c.l.b16 %v3132
          %v3201 = vunpack.c.l.b16 %v3133
          %v3202 = vunpack.c.l.b16 %v3134
          %v3203 = vunpack.c.l.b16 %v3135
          %v3204 = vunpack.c.l.b16 %v3136
          %v3205 = vunpack.c.l.b16 %v3137
          %v3206 = vunpack.c.l.b16 %v3138
          %v3207 = vunpack.c.l.b16 %v3139
          %v3208 = vunpack.c.l.b16 %v3140
          %v3209 = vunpack.c.l.b16 %v3141
          %v3210 = vunpack.c.l.b16 %v3142
          %v3211 = vpack.c.b16 %v3180, %v3179
          %v3212 = vpack.c.b16 %v3182, %v3181
          %v3213 = vpack.c.b16 %v3184, %v3183
          %v3214 = vpack.c.b16 %v3186, %v3185
          %v3215 = vpack.c.b16 %v3188, %v3187
          %v3216 = vpack.c.b16 %v3190, %v3189
          %v3217 = vpack.c.b16 %v3192, %v3191
          %v3218 = vpack.c.b16 %v3194, %v3193
          %v3219 = vpack.c.b16 %v3196, %v3195
          %v3220 = vpack.c.b16 %v3198, %v3197
          %v3221 = vpack.c.b16 %v3200, %v3199
          %v3222 = vpack.c.b16 %v3202, %v3201
          %v3223 = vpack.c.b16 %v3204, %v3203
          %v3224 = vpack.c.b16 %v3206, %v3205
          %v3225 = vpack.c.b16 %v3208, %v3207
          %v3226 = vpack.c.b16 %v3210, %v3209
          %3243 = vmatpush.bf16.msra.mxu0 %v3218
          %3244 = vmatpush.bf16.msra.mxu0 %v3217
          %3245 = vmatpush.bf16.msra.mxu0 %v3216
          %3246 = vmatpush.bf16.msra.mxu0 %v3215
          %3247 = vmatpush.bf16.msra.mxu0 %v3214
          %3248 = vmatpush.bf16.msra.mxu0 %v3213
          %3249 = vmatpush.bf16.msra.mxu0 %v3212
          %3250 = vmatpush.bf16.msra.mxu0 %v3211
          %3251 = vmatmul.bf16.gmra.mxu0 %v3109
          %v3252 = vpop.f32.mrf.mxu0
          %v3253 = vadd.f32 %v3145, %v3252
          %v3254 = vpop.f32.mrf.mxu0
          %v3255 = vadd.f32 %v3145, %v3254
          %3256 = vdwg.mxu0
          %3257 = vmatpush.bf16.msra.mxu0 %v3226
          %3258 = vmatpush.bf16.msra.mxu0 %v3225
          %3259 = vmatpush.bf16.msra.mxu0 %v3224
          %3260 = vmatpush.bf16.msra.mxu0 %v3223
          %3261 = vmatpush.bf16.msra.mxu0 %v3222
          %3262 = vmatpush.bf16.msra.mxu0 %v3221
          %3263 = vmatpush.bf16.msra.mxu0 %v3220
          %3264 = vmatpush.bf16.msra.mxu0 %v3219
          %3265 = vmatmul.bf16.gmra.mxu0 %v3110
          %v3266 = vpop.f32.mrf.mxu0
          %v3267 = vadd.f32 %v3253, %v3266
          %v3268 = vpop.f32.mrf.mxu0
          %v3269 = vadd.f32 %v3255, %v3268
          %3270 = vdwg.mxu0
          %v3271 = vmax.f32 %v3267, 0.0
          %v3272 = vmax.f32 %v3269, 0.0
          %v3273 = vpack.c.bf16 %v3272, %v3271
          %v3274 = vld [vmem:[#allocation15] sm:$0xf]
          %v3275 = vld [vmem:[#allocation15 + $0x4] sm:$0xf]
          %v3276 = vld [vmem:[#allocation15 + $0x8] sm:$0xf]
          %v3277 = vld [vmem:[#allocation15 + $0xc] sm:$0xf]
          %v3278 = vld [vmem:[#allocation15 + $0x10] sm:$0xf]
          %v3279 = vld [vmem:[#allocation15 + $0x14] sm:$0xf]
          %v3280 = vld [vmem:[#allocation15 + $0x18] sm:$0xf]
          %v3281 = vld [vmem:[#allocation15 + $0x1c] sm:$0xf]
          %v3282 = vld [vmem:[#allocation15 + $0x20] sm:$0xf]
          %v3283 = vld [vmem:[#allocation15 + $0x24] sm:$0xf]
          %v3284 = vld [vmem:[#allocation15 + $0x28] sm:$0xf]
          %v3285 = vld [vmem:[#allocation15 + $0x2c] sm:$0xf]
          %v3286 = vld [vmem:[#allocation15 + $0x30] sm:$0xf]
          %v3287 = vld [vmem:[#allocation15 + $0x34] sm:$0xf]
          %v3288 = vld [vmem:[#allocation15 + $0x38] sm:$0xf]
          %v3289 = vld [vmem:[#allocation15 + $0x3c] sm:$0xf]
          %v3290 = vld [vmem:[#allocation17] sm:$0x1]
          %v3292 = vperm.slane %v3290, 0
          %v3310 = vunpack.c.l.b16 %v3274
          %v3311 = vunpack.c.l.b16 %v3275
          %v3312 = vunpack.c.l.b16 %v3276
          %v3313 = vunpack.c.l.b16 %v3277
          %v3314 = vunpack.c.l.b16 %v3278
          %v3315 = vunpack.c.l.b16 %v3279
          %v3316 = vunpack.c.l.b16 %v3280
          %v3317 = vunpack.c.l.b16 %v3281
          %v3318 = vunpack.c.l.b16 %v3282
          %v3319 = vunpack.c.l.b16 %v3283
          %v3320 = vunpack.c.l.b16 %v3284
          %v3321 = vunpack.c.l.b16 %v3285
          %v3322 = vunpack.c.l.b16 %v3286
          %v3323 = vunpack.c.l.b16 %v3287
          %v3324 = vunpack.c.l.b16 %v3288
          %v3325 = vunpack.c.l.b16 %v3289
          %v3326 = vpack.c.b16 %v3311, %v3310
          %v3327 = vpack.c.b16 %v3313, %v3312
          %v3328 = vpack.c.b16 %v3315, %v3314
          %v3329 = vpack.c.b16 %v3317, %v3316
          %v3330 = vpack.c.b16 %v3319, %v3318
          %v3331 = vpack.c.b16 %v3321, %v3320
          %v3332 = vpack.c.b16 %v3323, %v3322
          %v3333 = vpack.c.b16 %v3325, %v3324
          %3342 = vmatpush.bf16.msra.mxu0 %v3333
          %3343 = vmatpush.bf16.msra.mxu0 %v3332
          %3344 = vmatpush.bf16.msra.mxu0 %v3331
          %3345 = vmatpush.bf16.msra.mxu0 %v3330
          %3346 = vmatpush.bf16.msra.mxu0 %v3329
          %3347 = vmatpush.bf16.msra.mxu0 %v3328
          %3348 = vmatpush.bf16.msra.mxu0 %v3327
          %3349 = vmatpush.bf16.msra.mxu0 %v3326
          %3350 = vmatmul.bf16.gmra.mxu0 %v3273
          %v3351 = vpop.f32.mrf.mxu0
          %v3352 = vadd.f32 %v3292, %v3351
          %v3353 = vpop.f32.mrf.mxu0
          %v3354 = vadd.f32 %v3292, %v3353
          %3355 = vdwg.mxu0
          %3356 = vst [vmem:[#allocation18] sm:$0xff] %v3352
          %3357 = vst [vmem:[#allocation18 + $0x8] sm:$0xff] %v3354
        $region100: #{tpu_custom_call.1} parent=55 // pred_fallthru
          _
        // Predicated region
        $region101: #{tpu_custom_call.1} parent=55 // pred_check
          %p3358 = pneg %p261
        $region102: #{tpu_custom_call.1} parent=55 // pred_check_branch
          %3360 = sbr.rel (%p3358) target = $region104
        $region103: #{tpu_custom_call.1} parent=55 // pred_region
          %s3361 = smul.u32 2, %s34
          %3363 = vsyncadd [#allocation5], 0
          %s3364 = smul.addr %s3361, 8
          %s3365 = scalar_lea.hbm %s9, %s3364
          %s3366 = sshll.u32 [#allocation18], 4
          %s3367 = int_to_ptr.vmem [resolvable:$true] %s3366
          %s3368 = sshll.u32 %s3365, 4
          %s3369 = int_to_ptr.hbm [resolvable:$true] %s3368
          %3374 = dma.vmem_to_hbm [thread:$0]  %s3367, 256, %s3369, [#allocation5], 128, 128, 8
        $region104: #{tpu_custom_call.1} parent=55 // pred_fallthru
          _
        // Predicated region
        $region105: #{tpu_custom_call.1} parent=55 // pred_check
          %p3375 = pneg %p261
        $region106: #{tpu_custom_call.1} parent=55 // pred_check_branch
          %3377 = sbr.rel (%p3375) target = $region108
        $region107: #{tpu_custom_call.1} parent=55 // pred_region
          %3379 = dma.done [#allocation5], 256
        $region108: #{tpu_custom_call.1} parent=55 // pred_fallthru
          _
      $region56: #{tpu_custom_call.1} parent=5 // pred_fallthru
        _
      %p3380 = scmp.le.s32.totalorder 2, %s25
      // Predicated region
      $region109: #{tpu_custom_call.1} parent=5 // pred_check
        %p3381 = pneg %p3380
      $region110: #{tpu_custom_call.1} parent=5 // pred_check_branch
        %3383 = sbr.rel (%p3381) target = $region112
      $region111: #{tpu_custom_call.1} parent=5 // pred_region
        %s3384 = ssub.s32 %s25, 2
      $region112: #{tpu_custom_call.1} parent=5 // pred_fallthru
        _
    $region6: #{tpu_custom_call.1} parent=1 // loop_footer
      %s29 = sadd.s32 1, %s25
    $region7: #{tpu_custom_call.1} parent=1 // loop_footer_branch
      %24 = sbr.rel target = $region3
    $region8: #{tpu_custom_call.1} parent=1 // loop_exit
      _
    %3385 = vsyncpa [#allocation4], 1
    %s3386 = scalar_lea.sflag [#allocation4], 1
    %3387 = vsyncpa %s3386, 1
    %3388 = vsyncpa [#allocation7], 1
    %s3389 = scalar_lea.sflag [#allocation7], 1
    %3390 = vsyncpa %s3389, 1
    %3391 = vsyncpa [#allocation10], 1
    %3392 = vsyncpa [#allocation13], 1
    %3393 = vsyncpa [#allocation16], 1
    %3394 = vsyncpa [#allocation5], 1
    %s3395 = scalar_lea.sflag [#allocation5], 1
    %3396 = vsyncpa %s3395, 1

</llo_original>
